<compile_context>
chip_gen: v7x
topology: tpu7x:2x2x1
jax: 0.10.0
libtpu: 0.0.40
codegen_flags: <defaults>
</compile_context>

<pallas_src>
import functools

import jax
import jax.numpy as jnp
from jax.experimental import pallas as pl
from jax.experimental.pallas import tpu as pltpu

# nn.LocalResponseNorm(size=5, k=2, beta=0.75, alpha=0.0001)
LRN_SIZE = 5
LRN_ALPHA = 1e-4
LRN_BETA = 0.75   # applied as base**-0.75 = rsqrt(base) * sqrt(rsqrt(base))
LRN_K = 2.0


def _round_up(x, m):
    return (x + m - 1) // m * m


def _conv_relu_lrn_kernel(p_ref, w_ref, band_ref, o_ref):
    # p_ref: (TM, Kp) f32   w_ref: (Kp, OCp) f32   band_ref: (OCp, OCp) bf16   o_ref: (TM, OCp) f32
    acc = jnp.dot(p_ref[...], w_ref[...], preferred_element_type=jnp.float32)   # conv as matmul
    acc = jnp.maximum(acc, 0.0)                                                 # ReLU
    sq = (acc * acc).astype(jnp.bfloat16)                                       # single-pass MXU band
    wsum = jnp.dot(sq, band_ref[...], preferred_element_type=jnp.float32)       # 5-tap channel sum
    base = LRN_K + (LRN_ALPHA / LRN_SIZE) * wsum
    r = jax.lax.rsqrt(base)                  # base ** -1/2   (base >= k = 2 > 0)
    inv_denom = r * jnp.sqrt(r)              # base ** -3/4 == base ** -beta
    o_ref[...] = (acc * inv_denom).astype(o_ref.dtype)


def _maxpool_kernel(y_hbm, o_ref, buf, *, r, pw):
    # y_hbm: (OH, OW, N, OCp) left in HBM (pl.ANY).  Each grid step pools `r` output rows and
    # streams only the (2r+1)-row input window it needs into the VMEM scratch `buf`.
    i = pl.program_id(0)
    pltpu.sync_copy(y_hbm.at[pl.ds(2 * r * i, 2 * r + 1)], buf)
    # TODO(synk): double-buffer this window DMA across grid steps to hide its latency.
    win = buf[...]                                    # (2r+1, OW, N, OCp)
    _, ow, n, ocp = win.shape
    # rows: max(x[2j], x[2j+1], x[2j+2]) via two pair reductions (no per-row loop, no strides)
    ra = win[0:2 * r].reshape(r, 2, ow, n, ocp).max(axis=1)
    rb = win[1:2 * r + 1].reshape(r, 2, ow, n, ocp).max(axis=1)
    rowmax = jnp.maximum(ra, rb)                      # (r, OW, N, OCp)
    # columns: same trick along W
    ca = rowmax[:, 0:2 * pw].reshape(r, pw, 2, n, ocp).max(axis=2)
    cb = rowmax[:, 1:2 * pw + 1].reshape(r, pw, 2, n, ocp).max(axis=2)
    o_ref[...] = jnp.maximum(ca, cb)                  # (r, PW, N, OCp) single wide store


def crnm_forward(x, weight, *, stride, padding):
    """x: (N, C, H, W) f32, weight: (OC, C, KH, KW) f32 -> (N, OC, PH, PW) f32."""
    n, c, h, w_in = x.shape
    oc, _, kh, kw = weight.shape
    oh = (h + 2 * padding - kh) // stride + 1
    ow = (w_in + 2 * padding - kw) // stride + 1

    k = c * kh * kw
    k_pad = _round_up(k, 128)       # lane-dense contraction axis
    oc_pad = _round_up(oc, 128)     # lane-dense output channels (unmasked stores)
    m = oh * ow * n

    # Row tile: large enough to amortize per-step overhead, capped so the double-buffered
    # input + output tiles stay within a v7x-safe VMEM budget (64 MiB physical there).
    tm = 512
    while tm > 128 and m < tm:
        tm //= 2
    while tm > 128 and 8 * tm * (k_pad + oc_pad) > 24 * 2 ** 20:
        tm //= 2
    m_pad = _round_up(m, tm)

    # ---- im2col (wrapper glue, plain JAX); M ordered (OH, OW, N) ----
    # TODO(synk): fuse im2col into the conv kernel (manual DMA of raw input row windows) to
    # avoid materializing the KH*KW-times-larger patch matrix in HBM.
    xp = jnp.pad(x, ((0, 0), (0, 0), (padding, padding), (padding, padding)))
    cols = []
    for dh in range(kh):
        for dw in range(kw):
            cols.append(xp[:, :, dh:dh + stride * (oh - 1) + 1:stride,
                               dw:dw + stride * (ow - 1) + 1:stride])    # (N, C, OH, OW)
    patches = jnp.stack(cols, axis=-1)                                    # (N, C, OH, OW, T)
    patches = patches.transpose(2, 3, 0, 1, 4).reshape(m, k)              # rows = (OH, OW, N)
    patches = jnp.pad(patches, ((0, m_pad - m), (0, k_pad - k)))

    w2 = weight.transpose(1, 2, 3, 0).reshape(k, oc)
    w2 = jnp.pad(w2, ((0, k_pad - k), (0, oc_pad - oc)))

    # Banded 0/1 matrix for the LRN window sum (|i - j| <= size // 2); padded channels have
    # zero activations so including them changes nothing.  bf16 keeps the MXU single-pass.
    idx = jnp.arange(oc_pad)
    band = (jnp.abs(idx[:, None] - idx[None, :]) <= LRN_SIZE // 2).astype(jnp.bfloat16)

    conv_vmem = 4 * (2 * tm * k_pad + 2 * tm * oc_pad + k_pad * oc_pad) + 2 * oc_pad * oc_pad
    vmem_limit = int(min(64 * 2 ** 20, max(conv_vmem + (4 << 20), 32 << 20)))

    conv_lrn = pl.pallas_call(
        _conv_relu_lrn_kernel,
        out_shape=jax.ShapeDtypeStruct((m_pad, oc_pad), jnp.float32),
        grid=(m_pad // tm,),
        in_specs=[
            pl.BlockSpec((tm, k_pad), lambda i: (i, 0)),
            pl.BlockSpec((k_pad, oc_pad), lambda i: (0, 0)),
            pl.BlockSpec((oc_pad, oc_pad), lambda i: (0, 0)),
        ],
        out_specs=pl.BlockSpec((tm, oc_pad), lambda i: (i, 0)),
        compiler_params=pltpu.CompilerParams(
            dimension_semantics=("parallel",),
            vmem_limit_bytes=vmem_limit),
    )(patches, w2, band)

    # ---- MaxPool2d(kernel_size=3, stride=2), no padding, floor mode ----
    ph = (oh - 3) // 2 + 1
    pw = (ow - 3) // 2 + 1
    y = conv_lrn[:m].reshape(oh, ow, n, oc_pad)   # free reshape: rows already (OH, OW, N)

    # r pooled rows per grid step: a divisor of PH keeps the (2r+1)-row window in bounds, and
    # the window is capped so the streamed input always fits comfortably in VMEM (v7x incl.).
    r_rows = 1
    window_budget = 6 * 2 ** 20
    for cand in range(min(ph, 16), 0, -1):
        if ph % cand == 0 and (2 * cand + 1) * ow * n * oc_pad * 4 <= window_budget:
            r_rows = cand
            break

    pooled = pl.pallas_call(
        functools.partial(_maxpool_kernel, r=r_rows, pw=pw),
        out_shape=jax.ShapeDtypeStruct((ph, pw, n, oc_pad), jnp.float32),
        grid=(ph // r_rows,),
        in_specs=[pl.BlockSpec(memory_space=pl.ANY)],    # stream row windows manually
        out_specs=pl.BlockSpec((r_rows, pw, n, oc_pad), lambda i: (i, 0, 0, 0)),
        scratch_shapes=[pltpu.VMEM((2 * r_rows + 1, ow, n, oc_pad), jnp.float32)],
        compiler_params=pltpu.CompilerParams(dimension_semantics=("parallel",)),
    )(y)

    return pooled[:, :, :, :oc].transpose(2, 3, 0, 1)    # (N, OC, PH, PW)


def crnm_reference(x, weight, *, stride, padding):
    conv = jax.lax.conv_general_dilated(
        x, weight, (stride, stride), [(padding, padding), (padding, padding)],
        dimension_numbers=("NCHW", "OIHW", "NCHW"))
    relu = jnp.maximum(conv, 0.0)
    sq = relu * relu
    oc = relu.shape[1]
    pad_sq = jnp.pad(sq, ((0, 0), (LRN_SIZE // 2, (LRN_SIZE - 1) // 2), (0, 0), (0, 0)))
    wsum = sum(pad_sq[:, s:s + oc] for s in range(LRN_SIZE))
    denom = (LRN_K + (LRN_ALPHA / LRN_SIZE) * wsum) ** LRN_BETA
    lrn = relu / denom
    return jax.lax.reduce_window(lrn, -jnp.inf, jax.lax.max,
                                 (1, 1, 3, 3), (1, 1, 2, 2), "VALID")


if __name__ == "__main__":
    # CRNM(in_channels_=4, out_channels_=8, kernel_size_=3, stride_=1, padding_=1, bias_=False)
    N, C, H, W = 2, 4, 16, 16
    OC, KH, KW = 8, 3, 3
    STRIDE, PAD = 1, 1

    key = jax.random.PRNGKey(0)
    kx, kw_key = jax.random.split(key)
    x = jax.random.normal(kx, (N, C, H, W), dtype=jnp.float32)
    weight = jax.random.normal(kw_key, (OC, C, KH, KW), dtype=jnp.float32) * 0.1

    fwd = jax.jit(functools.partial(crnm_forward, stride=STRIDE, padding=PAD))
    out = jax.block_until_ready(fwd(x, weight))

    ref = crnm_reference(x, weight, stride=STRIDE, padding=PAD)
    assert out.shape == ref.shape, (out.shape, ref.shape)
    assert jnp.allclose(out, ref, rtol=1e-4, atol=1e-4), float(jnp.max(jnp.abs(out - ref)))

    print("KERNEL_OK")
</pallas_src>

<mosaic_0001>
module attributes {stable_mosaic.version = 11 : i64} {
  func.func @_conv_relu_lrn_kernel(%arg0: i32, %arg1: memref<512x128xf32, #tpu.memory_space<vmem>>, %arg2: memref<128x128xf32, #tpu.memory_space<vmem>>, %arg3: memref<128x128xbf16, #tpu.memory_space<vmem>>, %arg4: memref<512x128xf32, #tpu.memory_space<vmem>>) attributes {dimension_semantics = [#tpu.dimension_semantics<parallel>], iteration_bounds = array<i64: 1>, scalar_prefetch = 0 : i64, scratch_operands = 0 : i64, tpu.core_type = #tpu.core_type<tc>, window_params = [{transform_indices = @transform_0, window_bounds = array<i64: 512, 128>}, {pipeline_mode = #tpu.pipeline_mode<synchronous>, transform_indices = @transform_1, window_bounds = array<i64: 128, 128>}, {pipeline_mode = #tpu.pipeline_mode<synchronous>, transform_indices = @transform_2, window_bounds = array<i64: 128, 128>}, {transform_indices = @transform_3, window_bounds = array<i64: 512, 128>}]} {
    %c0 = arith.constant 0 : index
    %c0_0 = arith.constant 0 : index
    %0 = vector.load %arg1[%c0, %c0_0] : memref<512x128xf32, #tpu.memory_space<vmem>>, vector<512x128xf32>
    %c0_1 = arith.constant 0 : index
    %c0_2 = arith.constant 0 : index
    %1 = vector.load %arg2[%c0_1, %c0_2] : memref<128x128xf32, #tpu.memory_space<vmem>>, vector<128x128xf32>
    %cst = arith.constant dense<0.000000e+00> : vector<512x128xf32>
    %2 = tpu.matmul %0, %1, %cst {dimension_numbers = #tpu.dot_dimension_numbers<[1], [0], [0], [1], [0, 0, 1, 1], [], []>} : vector<512x128xf32>, vector<128x128xf32>, vector<512x128xf32> -> vector<512x128xf32>
    %cst_3 = arith.constant 0.000000e+00 : f32
    %3 = vector.broadcast %cst_3 : f32 to vector<512x128xf32>
    %4 = arith.maximumf %2, %3 : vector<512x128xf32>
    %5 = arith.mulf %4, %4 : vector<512x128xf32>
    %6 = arith.truncf %5 : vector<512x128xf32> to vector<512x128xbf16>
    %c0_4 = arith.constant 0 : index
    %c0_5 = arith.constant 0 : index
    %7 = vector.load %arg3[%c0_4, %c0_5] : memref<128x128xbf16, #tpu.memory_space<vmem>>, vector<128x128xbf16>
    %cst_6 = arith.constant dense<0.000000e+00> : vector<512x128xf32>
    %8 = tpu.matmul %6, %7, %cst_6 {dimension_numbers = #tpu.dot_dimension_numbers<[1], [0], [0], [1], [0, 0, 1, 1], [], []>} : vector<512x128xbf16>, vector<128x128xbf16>, vector<512x128xf32> -> vector<512x128xf32>
    %cst_7 = arith.constant 2.000000e-05 : f32
    %9 = vector.broadcast %cst_7 : f32 to vector<512x128xf32>
    %10 = arith.mulf %9, %8 : vector<512x128xf32>
    %cst_8 = arith.constant 2.000000e+00 : f32
    %11 = vector.broadcast %cst_8 : f32 to vector<512x128xf32>
    %12 = arith.addf %11, %10 : vector<512x128xf32>
    %13 = math.rsqrt %12 : vector<512x128xf32>
    %14 = math.sqrt %13 : vector<512x128xf32>
    %15 = arith.mulf %13, %14 : vector<512x128xf32>
    %16 = arith.mulf %4, %15 : vector<512x128xf32>
    %c0_9 = arith.constant 0 : index
    %c0_10 = arith.constant 0 : index
    %17 = vector.load %arg4[%c0_9, %c0_10] : memref<512x128xf32, #tpu.memory_space<vmem>>, vector<512x128xf32>
    tpu.vector_store %arg4[%c0_9, %c0_10], %16 {strides = array<i32>} : memref<512x128xf32, #tpu.memory_space<vmem>>, vector<512x128xf32>,
    return
  }
  func.func @transform_0(%arg0: i32) -> (i32, i32) {
    %c0_i32 = arith.constant 0 : i32
    %c0_i32_0 = arith.constant 0 : i32
    return %arg0, %c0_i32 : i32, i32
  }
  func.func @transform_1(%arg0: i32) -> (i32, i32) {
    %c0_i32 = arith.constant 0 : i32
    %c0_i32_0 = arith.constant 0 : i32
    %c0_i32_1 = arith.constant 0 : i32
    return %c0_i32, %c0_i32_0 : i32, i32
  }
  func.func @transform_2(%arg0: i32) -> (i32, i32) {
    %c0_i32 = arith.constant 0 : i32
    %c0_i32_0 = arith.constant 0 : i32
    %c0_i32_1 = arith.constant 0 : i32
    return %c0_i32, %c0_i32_0 : i32, i32
  }
  func.func @transform_3(%arg0: i32) -> (i32, i32) {
    %c0_i32 = arith.constant 0 : i32
    %c0_i32_0 = arith.constant 0 : i32
    return %arg0, %c0_i32 : i32, i32
  }
}

module attributes {stable_mosaic.version = 11 : i64} {
  func.func @_maxpool_kernel(%arg0: i32, %arg1: memref<16x16x2x128xf32, #tpu.memory_space<any>>, %arg2: memref<7x7x2x128xf32, #tpu.memory_space<vmem>>, %arg3: memref<15x16x2x128xf32, #tpu.memory_space<vmem>>) attributes {dimension_semantics = [#tpu.dimension_semantics<parallel>], iteration_bounds = array<i64: 1>, scalar_prefetch = 0 : i64, scratch_operands = 1 : i64, tpu.core_type = #tpu.core_type<tc>, window_params = [{}, {transform_indices = @transform_1, window_bounds = array<i64: 7, 7, 2, 128>}]} {
    %c14_i32 = arith.constant 14 : i32
    %0 = arith.muli %c14_i32, %arg0 : i32
    "tpu.region"() ({
      %17 = tpu.sem_alloc : memref<!tpu.dma_semaphore, #tpu.memory_space<semaphore_mem>>
      %c0_i32 = arith.constant 0 : i32
      %c0_i32_10 = arith.constant 0 : i32
      %c0_i32_11 = arith.constant 0 : i32
      %18 = tpu.memref_slice %arg1[%0, %c0_i32, %c0_i32_10, %c0_i32_11] : memref<16x16x2x128xf32, #tpu.memory_space<any>> -> memref<15x16x2x128xf32, #tpu.memory_space<any>>
      tpu.enqueue_dma source(%18 : memref<15x16x2x128xf32, #tpu.memory_space<any>>) target(%arg3 : memref<15x16x2x128xf32, #tpu.memory_space<vmem>>) target_semaphore(%17 : memref<!tpu.dma_semaphore, #tpu.memory_space<semaphore_mem>>)
      %c0_i32_12 = arith.constant 0 : i32
      %c0_i32_13 = arith.constant 0 : i32
      %c0_i32_14 = arith.constant 0 : i32
      %19 = tpu.memref_slice %arg1[%0, %c0_i32_12, %c0_i32_13, %c0_i32_14] : memref<16x16x2x128xf32, #tpu.memory_space<any>> -> memref<15x16x2x128xf32, #tpu.memory_space<any>>
      tpu.wait_dma2 semaphore(%17 : memref<!tpu.dma_semaphore, #tpu.memory_space<semaphore_mem>>) src(%19 : memref<15x16x2x128xf32, #tpu.memory_space<any>>) dst(%arg3 : memref<15x16x2x128xf32, #tpu.memory_space<vmem>>)
      tpu.yield
    }) : () -> ()
    %c0 = arith.constant 0 : index
    %c0_0 = arith.constant 0 : index
    %c0_1 = arith.constant 0 : index
    %c0_2 = arith.constant 0 : index
    %1 = vector.load %arg3[%c0, %c0_0, %c0_1, %c0_2] : memref<15x16x2x128xf32, #tpu.memory_space<vmem>>, vector<15x16x2x128xf32>
    %2 = vector.extract_strided_slice %1 {offsets = [0, 0, 0, 0], sizes = [14, 16, 2, 128], strides = [1, 1, 1, 1]} : vector<15x16x2x128xf32> to vector<14x16x2x128xf32>
    %3 = vector.shape_cast %2 : vector<14x16x2x128xf32> to vector<7x2x16x2x128xf32>
    %cst = arith.constant dense<0xFF800000> : vector<7x16x2x128xf32>
    %4 = vector.multi_reduction <maximumf>, %3, %cst [1] : vector<7x2x16x2x128xf32> to vector<7x16x2x128xf32>
    %5 = vector.extract_strided_slice %1 {offsets = [1, 0, 0, 0], sizes = [14, 16, 2, 128], strides = [1, 1, 1, 1]} : vector<15x16x2x128xf32> to vector<14x16x2x128xf32>
    %6 = vector.shape_cast %5 : vector<14x16x2x128xf32> to vector<7x2x16x2x128xf32>
    %cst_3 = arith.constant dense<0xFF800000> : vector<7x16x2x128xf32>
    %7 = vector.multi_reduction <maximumf>, %6, %cst_3 [1] : vector<7x2x16x2x128xf32> to vector<7x16x2x128xf32>
    %8 = arith.maximumf %4, %7 : vector<7x16x2x128xf32>
    %9 = vector.extract_strided_slice %8 {offsets = [0, 0, 0, 0], sizes = [7, 14, 2, 128], strides = [1, 1, 1, 1]} : vector<7x16x2x128xf32> to vector<7x14x2x128xf32>
    %10 = vector.shape_cast %9 : vector<7x14x2x128xf32> to vector<7x7x2x2x128xf32>
    %cst_4 = arith.constant dense<0xFF800000> : vector<7x7x2x128xf32>
    %11 = vector.multi_reduction <maximumf>, %10, %cst_4 [2] : vector<7x7x2x2x128xf32> to vector<7x7x2x128xf32>
    %12 = vector.extract_strided_slice %8 {offsets = [0, 1, 0, 0], sizes = [7, 14, 2, 128], strides = [1, 1, 1, 1]} : vector<7x16x2x128xf32> to vector<7x14x2x128xf32>
    %13 = vector.shape_cast %12 : vector<7x14x2x128xf32> to vector<7x7x2x2x128xf32>
    %cst_5 = arith.constant dense<0xFF800000> : vector<7x7x2x128xf32>
    %14 = vector.multi_reduction <maximumf>, %13, %cst_5 [2] : vector<7x7x2x2x128xf32> to vector<7x7x2x128xf32>
    %15 = arith.maximumf %11, %14 : vector<7x7x2x128xf32>
    %c0_6 = arith.constant 0 : index
    %c0_7 = arith.constant 0 : index
    %c0_8 = arith.constant 0 : index
    %c0_9 = arith.constant 0 : index
    %16 = vector.load %arg2[%c0_6, %c0_7, %c0_8, %c0_9] : memref<7x7x2x128xf32, #tpu.memory_space<vmem>>, vector<7x7x2x128xf32>
    tpu.vector_store %arg2[%c0_6, %c0_7, %c0_8, %c0_9], %15 {strides = array<i32>} : memref<7x7x2x128xf32, #tpu.memory_space<vmem>>, vector<7x7x2x128xf32>,
    return
  }
  func.func @transform_1(%arg0: i32) -> (i32, i32, i32, i32) {
    %c0_i32 = arith.constant 0 : i32
    %c0_i32_0 = arith.constant 0 : i32
    %c0_i32_1 = arith.constant 0 : i32
    %c0_i32_2 = arith.constant 0 : i32
    return %arg0, %c0_i32, %c0_i32_0, %c0_i32_1 : i32, i32, i32, i32
  }
}

</mosaic_0001>

<llo_original>
// kernel: crnm_forward.2
$region0: #{crnm_forward.2}
  #allocation0 [shape = 'u32[]', space=smem, size = 0x4, offset = 0x4, fixed_abs, tag = 'smem constant byte address 0x4 - core index']
  #allocation1 [shape = 'u32[144,128]{1,0:T(1,128)}', space=vmem, size = 0x12000, scoped, tag = 'internal scratch']
  %s0 = inlined_call_operand.vmem [shape: f32[512,128], index: 0, kind: input, shape index: {}]
  %s1 = inlined_call_operand.vmem [shape: f32[128,128], index: 1, kind: input, shape index: {}]
  %s2 = inlined_call_operand.vmem [shape: bf16[128,128], index: 2, kind: input, shape index: {}]
  %s3 = inlined_call_operand.vmem [shape: f32[512,128], index: 3, kind: output, shape index: {}]
  %s4 = sld [smem:[#allocation0]]
  $region22: #{crnm_forward.2} parent=0
    _
  %s6 = ssub.s32 1, %s4
  %s7 = scalar_select 0, %s6, %s4
  // Predicated region
  $region2: #{crnm_forward.2} parent=0 // pred_check
    _
  $region3: #{crnm_forward.2} parent=0 // pred_check_branch
    %9 = sbr.rel (0) target = $region5
  $region4: #{crnm_forward.2} parent=0 // pred_region
    _
  $region5: #{crnm_forward.2} parent=0 // pred_fallthru
    _
  // Predicated region
  $region6: #{crnm_forward.2} parent=0 // pred_check
    _
  $region7: #{crnm_forward.2} parent=0 // pred_check_branch
    %11 = sbr.rel (0) target = $region9
  $region8: #{crnm_forward.2} parent=0 // pred_region
    _
  $region9: #{crnm_forward.2} parent=0 // pred_fallthru
    _
  // Predicated region
  $region10: #{crnm_forward.2} parent=0 // pred_check
    _
  $region11: #{crnm_forward.2} parent=0 // pred_check_branch
    %13 = sbr.rel (0) target = $region13
  $region12: #{crnm_forward.2} parent=0 // pred_region
    _
  $region13: #{crnm_forward.2} parent=0 // pred_fallthru
    _
  %v15 = vld [vmem:[%s0] sm:$0xff]
  %v16 = vld [vmem:[%s0 + $0x8] sm:$0xff]
  %v17 = vld [vmem:[%s0 + $0x10] sm:$0xff]
  %v18 = vld [vmem:[%s0 + $0x18] sm:$0xff]
  %v19 = vld [vmem:[%s0 + $0x20] sm:$0xff]
  %v20 = vld [vmem:[%s0 + $0x28] sm:$0xff]
  %v21 = vld [vmem:[%s0 + $0x30] sm:$0xff]
  %v22 = vld [vmem:[%s0 + $0x38] sm:$0xff]
  %v23 = vld [vmem:[%s0 + $0x40] sm:$0xff]
  %v24 = vld [vmem:[%s0 + $0x48] sm:$0xff]
  %v25 = vld [vmem:[%s0 + $0x50] sm:$0xff]
  %v26 = vld [vmem:[%s0 + $0x58] sm:$0xff]
  %v27 = vld [vmem:[%s0 + $0x60] sm:$0xff]
  %v28 = vld [vmem:[%s0 + $0x68] sm:$0xff]
  %v29 = vld [vmem:[%s0 + $0x70] sm:$0xff]
  %v30 = vld [vmem:[%s0 + $0x78] sm:$0xff]
  %v31 = vld [vmem:[%s0 + $0x80] sm:$0xff]
  %v32 = vld [vmem:[%s0 + $0x88] sm:$0xff]
  %v33 = vld [vmem:[%s0 + $0x90] sm:$0xff]
  %v34 = vld [vmem:[%s0 + $0x98] sm:$0xff]
  %v35 = vld [vmem:[%s0 + $0xa0] sm:$0xff]
  %v36 = vld [vmem:[%s0 + $0xa8] sm:$0xff]
  %v37 = vld [vmem:[%s0 + $0xb0] sm:$0xff]
  %v38 = vld [vmem:[%s0 + $0xb8] sm:$0xff]
  %v39 = vld [vmem:[%s0 + $0xc0] sm:$0xff]
  %v40 = vld [vmem:[%s0 + $0xc8] sm:$0xff]
  %v41 = vld [vmem:[%s0 + $0xd0] sm:$0xff]
  %v42 = vld [vmem:[%s0 + $0xd8] sm:$0xff]
  %v43 = vld [vmem:[%s0 + $0xe0] sm:$0xff]
  %v44 = vld [vmem:[%s0 + $0xe8] sm:$0xff]
  %v45 = vld [vmem:[%s0 + $0xf0] sm:$0xff]
  %v46 = vld [vmem:[%s0 + $0xf8] sm:$0xff]
  %v47 = vld [vmem:[%s0 + $0x100] sm:$0xff]
  %v48 = vld [vmem:[%s0 + $0x108] sm:$0xff]
  %v49 = vld [vmem:[%s0 + $0x110] sm:$0xff]
  %v50 = vld [vmem:[%s0 + $0x118] sm:$0xff]
  %v51 = vld [vmem:[%s0 + $0x120] sm:$0xff]
  %v52 = vld [vmem:[%s0 + $0x128] sm:$0xff]
  %v53 = vld [vmem:[%s0 + $0x130] sm:$0xff]
  %v54 = vld [vmem:[%s0 + $0x138] sm:$0xff]
  %v55 = vld [vmem:[%s0 + $0x140] sm:$0xff]
  %v56 = vld [vmem:[%s0 + $0x148] sm:$0xff]
  %v57 = vld [vmem:[%s0 + $0x150] sm:$0xff]
  %v58 = vld [vmem:[%s0 + $0x158] sm:$0xff]
  %v59 = vld [vmem:[%s0 + $0x160] sm:$0xff]
  %v60 = vld [vmem:[%s0 + $0x168] sm:$0xff]
  %v61 = vld [vmem:[%s0 + $0x170] sm:$0xff]
  %v62 = vld [vmem:[%s0 + $0x178] sm:$0xff]
  %v63 = vld [vmem:[%s0 + $0x180] sm:$0xff]
  %v64 = vld [vmem:[%s0 + $0x188] sm:$0xff]
  %v65 = vld [vmem:[%s0 + $0x190] sm:$0xff]
  %v66 = vld [vmem:[%s0 + $0x198] sm:$0xff]
  %v67 = vld [vmem:[%s0 + $0x1a0] sm:$0xff]
  %v68 = vld [vmem:[%s0 + $0x1a8] sm:$0xff]
  %v69 = vld [vmem:[%s0 + $0x1b0] sm:$0xff]
  %v70 = vld [vmem:[%s0 + $0x1b8] sm:$0xff]
  %v71 = vld [vmem:[%s0 + $0x1c0] sm:$0xff]
  %v72 = vld [vmem:[%s0 + $0x1c8] sm:$0xff]
  %v73 = vld [vmem:[%s0 + $0x1d0] sm:$0xff]
  %v74 = vld [vmem:[%s0 + $0x1d8] sm:$0xff]
  %v75 = vld [vmem:[%s0 + $0x1e0] sm:$0xff]
  %v76 = vld [vmem:[%s0 + $0x1e8] sm:$0xff]
  %v77 = vld [vmem:[%s0 + $0x1f0] sm:$0xff]
  %v78 = vld [vmem:[%s0 + $0x1f8] sm:$0xff]
  %v79 = vld [vmem:[%s1] sm:$0xff]
  %v80 = vld [vmem:[%s1 + $0x8] sm:$0xff]
  %v81 = vld [vmem:[%s1 + $0x10] sm:$0xff]
  %v82 = vld [vmem:[%s1 + $0x18] sm:$0xff]
  %v83 = vld [vmem:[%s1 + $0x20] sm:$0xff]
  %v84 = vld [vmem:[%s1 + $0x28] sm:$0xff]
  %v85 = vld [vmem:[%s1 + $0x30] sm:$0xff]
  %v86 = vld [vmem:[%s1 + $0x38] sm:$0xff]
  %v87 = vld [vmem:[%s1 + $0x40] sm:$0xff]
  %v88 = vld [vmem:[%s1 + $0x48] sm:$0xff]
  %v89 = vld [vmem:[%s1 + $0x50] sm:$0xff]
  %v90 = vld [vmem:[%s1 + $0x58] sm:$0xff]
  %v91 = vld [vmem:[%s1 + $0x60] sm:$0xff]
  %v92 = vld [vmem:[%s1 + $0x68] sm:$0xff]
  %v93 = vld [vmem:[%s1 + $0x70] sm:$0xff]
  %v94 = vld [vmem:[%s1 + $0x78] sm:$0xff]
  %95 = vmatprep.subr.mxu0 0.0
  %96 = vmatpush1.msra.mxu0 %v79
  %97 = vmatprep.subr.mxu0 0.0
  %98 = vmatpush1.msra.mxu0 %v80
  %99 = vmatprep.subr.mxu0 0.0
  %100 = vmatpush1.msra.mxu0 %v81
  %101 = vmatprep.subr.mxu0 0.0
  %102 = vmatpush1.msra.mxu0 %v82
  %103 = vmatprep.subr.mxu0 0.0
  %104 = vmatpush1.msra.mxu0 %v83
  %105 = vmatprep.subr.mxu0 0.0
  %106 = vmatpush1.msra.mxu0 %v84
  %107 = vmatprep.subr.mxu0 0.0
  %108 = vmatpush1.msra.mxu0 %v85
  %109 = vmatprep.subr.mxu0 0.0
  %110 = vmatpush1.msra.mxu0 %v86
  %111 = vmatprep.subr.mxu0 0.0
  %112 = vmatpush1.msra.mxu0 %v87
  %113 = vmatprep.subr.mxu0 0.0
  %114 = vmatpush1.msra.mxu0 %v88
  %115 = vmatprep.subr.mxu0 0.0
  %116 = vmatpush1.msra.mxu0 %v89
  %117 = vmatprep.subr.mxu0 0.0
  %118 = vmatpush1.msra.mxu0 %v90
  %119 = vmatprep.subr.mxu0 0.0
  %120 = vmatpush1.msra.mxu0 %v91
  %121 = vmatprep.subr.mxu0 0.0
  %122 = vmatpush1.msra.mxu0 %v92
  %123 = vmatprep.subr.mxu0 0.0
  %124 = vmatpush1.msra.mxu0 %v93
  %125 = vmatprep.subr.mxu0 0.0
  %126 = vmatpush1.msra.mxu0 %v94
  %127 = vmatprep.subr.mxu0 0.0
  %128 = vmatpush1.msra.mxu0 0.0
  %129 = vmatprep.subr.mxu0 0.0
  %130 = vmatpush1.msra.mxu0 0.0
  %131 = vmatprep.subr.mxu0 0.0
  %132 = vmatpush1.msra.mxu0 0.0
  %133 = vmatprep.subr.mxu0 0.0
  %134 = vmatpush1.msra.mxu0 0.0
  %135 = vmatprep.subr.mxu0 0.0
  %136 = vmatpush1.msra.mxu0 0.0
  %137 = vmatprep.subr.mxu0 0.0
  %138 = vmatpush1.msra.mxu0 0.0
  %139 = vmatprep.subr.mxu0 0.0
  %140 = vmatpush1.msra.mxu0 0.0
  %141 = vmatprep.subr.mxu0 0.0
  %142 = vmatpush1.msra.mxu0 0.0
  %143 = vmatprep.subr.mxu0 0.0
  %144 = vmatpush1.msra.mxu0 0.0
  %145 = vmatprep.subr.mxu0 0.0
  %146 = vmatpush1.msra.mxu0 0.0
  %147 = vmatprep.subr.mxu0 0.0
  %148 = vmatpush1.msra.mxu0 0.0
  %149 = vmatprep.subr.mxu0 0.0
  %150 = vmatpush1.msra.mxu0 0.0
  %151 = vmatprep.subr.mxu0 0.0
  %152 = vmatpush1.msra.mxu0 0.0
  %153 = vmatprep.subr.mxu0 0.0
  %154 = vmatpush1.msra.mxu0 0.0
  %155 = vmatprep.subr.mxu0 0.0
  %156 = vmatpush1.msra.mxu0 0.0
  %157 = vmatprep.subr.mxu0 0.0
  %158 = vmatpush1.msra.mxu0 0.0
  %159 = vmatprep.mubr.f32.mxu0 0.0
  %160 = vmatmul.mubr.f32.gmra.mrb[0].mxu0 %v15
  %v161 = vpop.f32.mrb[0].mxu0
  %v162 = vadd.f32 0.0, %v161
  %v163 = vpop.f32.mrb[0].mxu0
  %164 = vmatprep.mubr.f32.mxu0 0.0
  %165 = vmatmul.mubr.f32.gmra.mrb[0].mxu0 %v16
  %v166 = vpop.f32.mrb[0].mxu0
  %v167 = vadd.f32 0.0, %v166
  %v168 = vpop.f32.mrb[0].mxu0
  %169 = vmatprep.mubr.f32.mxu0 0.0
  %170 = vmatmul.mubr.f32.gmra.mrb[0].mxu0 %v17
  %v171 = vpop.f32.mrb[0].mxu0
  %v172 = vadd.f32 0.0, %v171
  %v173 = vpop.f32.mrb[0].mxu0
  %174 = vmatprep.mubr.f32.mxu0 0.0
  %175 = vmatmul.mubr.f32.gmra.mrb[0].mxu0 %v18
  %v176 = vpop.f32.mrb[0].mxu0
  %v177 = vadd.f32 0.0, %v176
  %v178 = vpop.f32.mrb[0].mxu0
  %179 = vmatprep.mubr.f32.mxu0 0.0
  %180 = vmatmul.mubr.f32.gmra.mrb[0].mxu0 %v19
  %v181 = vpop.f32.mrb[0].mxu0
  %v182 = vadd.f32 0.0, %v181
  %v183 = vpop.f32.mrb[0].mxu0
  %184 = vmatprep.mubr.f32.mxu0 0.0
  %185 = vmatmul.mubr.f32.gmra.mrb[0].mxu0 %v20
  %v186 = vpop.f32.mrb[0].mxu0
  %v187 = vadd.f32 0.0, %v186
  %v188 = vpop.f32.mrb[0].mxu0
  %189 = vmatprep.mubr.f32.mxu0 0.0
  %190 = vmatmul.mubr.f32.gmra.mrb[0].mxu0 %v21
  %v191 = vpop.f32.mrb[0].mxu0
  %v192 = vadd.f32 0.0, %v191
  %v193 = vpop.f32.mrb[0].mxu0
  %194 = vmatprep.mubr.f32.mxu0 0.0
  %195 = vmatmul.mubr.f32.gmra.mrb[0].mxu0 %v22
  %v196 = vpop.f32.mrb[0].mxu0
  %v197 = vadd.f32 0.0, %v196
  %v198 = vpop.f32.mrb[0].mxu0
  %199 = vmatprep.mubr.f32.mxu0 0.0
  %200 = vmatmul.mubr.f32.gmra.mrb[0].mxu0 %v23
  %v201 = vpop.f32.mrb[0].mxu0
  %v202 = vadd.f32 0.0, %v201
  %v203 = vpop.f32.mrb[0].mxu0
  %204 = vmatprep.mubr.f32.mxu0 0.0
  %205 = vmatmul.mubr.f32.gmra.mrb[0].mxu0 %v24
  %v206 = vpop.f32.mrb[0].mxu0
  %v207 = vadd.f32 0.0, %v206
  %v208 = vpop.f32.mrb[0].mxu0
  %209 = vmatprep.mubr.f32.mxu0 0.0
  %210 = vmatmul.mubr.f32.gmra.mrb[0].mxu0 %v25
  %v211 = vpop.f32.mrb[0].mxu0
  %v212 = vadd.f32 0.0, %v211
  %v213 = vpop.f32.mrb[0].mxu0
  %214 = vmatprep.mubr.f32.mxu0 0.0
  %215 = vmatmul.mubr.f32.gmra.mrb[0].mxu0 %v26
  %v216 = vpop.f32.mrb[0].mxu0
  %v217 = vadd.f32 0.0, %v216
  %v218 = vpop.f32.mrb[0].mxu0
  %219 = vmatprep.mubr.f32.mxu0 0.0
  %220 = vmatmul.mubr.f32.gmra.mrb[0].mxu0 %v27
  %v221 = vpop.f32.mrb[0].mxu0
  %v222 = vadd.f32 0.0, %v221
  %v223 = vpop.f32.mrb[0].mxu0
  %224 = vmatprep.mubr.f32.mxu0 0.0
  %225 = vmatmul.mubr.f32.gmra.mrb[0].mxu0 %v28
  %v226 = vpop.f32.mrb[0].mxu0
  %v227 = vadd.f32 0.0, %v226
  %v228 = vpop.f32.mrb[0].mxu0
  %229 = vmatprep.mubr.f32.mxu0 0.0
  %230 = vmatmul.mubr.f32.gmra.mrb[0].mxu0 %v29
  %v231 = vpop.f32.mrb[0].mxu0
  %v232 = vadd.f32 0.0, %v231
  %v233 = vpop.f32.mrb[0].mxu0
  %234 = vmatprep.mubr.f32.mxu0 0.0
  %235 = vmatmul.mubr.f32.gmra.mrb[0].mxu0 %v30
  %v236 = vpop.f32.mrb[0].mxu0
  %v237 = vadd.f32 0.0, %v236
  %v238 = vpop.f32.mrb[0].mxu0
  %239 = vmatprep.mubr.f32.mxu0 0.0
  %240 = vmatmul.mubr.f32.gmra.mrb[0].mxu0 %v31
  %v241 = vpop.f32.mrb[0].mxu0
  %v242 = vadd.f32 0.0, %v241
  %v243 = vpop.f32.mrb[0].mxu0
  %244 = vmatprep.mubr.f32.mxu0 0.0
  %245 = vmatmul.mubr.f32.gmra.mrb[0].mxu0 %v32
  %v246 = vpop.f32.mrb[0].mxu0
  %v247 = vadd.f32 0.0, %v246
  %v248 = vpop.f32.mrb[0].mxu0
  %249 = vmatprep.mubr.f32.mxu0 0.0
  %250 = vmatmul.mubr.f32.gmra.mrb[0].mxu0 %v33
  %v251 = vpop.f32.mrb[0].mxu0
  %v252 = vadd.f32 0.0, %v251
  %v253 = vpop.f32.mrb[0].mxu0
  %254 = vmatprep.mubr.f32.mxu0 0.0
  %255 = vmatmul.mubr.f32.gmra.mrb[0].mxu0 %v34
  %v256 = vpop.f32.mrb[0].mxu0
  %v257 = vadd.f32 0.0, %v256
  %v258 = vpop.f32.mrb[0].mxu0
  %259 = vmatprep.mubr.f32.mxu0 0.0
  %260 = vmatmul.mubr.f32.gmra.mrb[0].mxu0 %v35
  %v261 = vpop.f32.mrb[0].mxu0
  %v262 = vadd.f32 0.0, %v261
  %v263 = vpop.f32.mrb[0].mxu0
  %264 = vmatprep.mubr.f32.mxu0 0.0
  %265 = vmatmul.mubr.f32.gmra.mrb[0].mxu0 %v36
  %v266 = vpop.f32.mrb[0].mxu0
  %v267 = vadd.f32 0.0, %v266
  %v268 = vpop.f32.mrb[0].mxu0
  %269 = vmatprep.mubr.f32.mxu0 0.0
  %270 = vmatmul.mubr.f32.gmra.mrb[0].mxu0 %v37
  %v271 = vpop.f32.mrb[0].mxu0
  %v272 = vadd.f32 0.0, %v271
  %v273 = vpop.f32.mrb[0].mxu0
  %274 = vmatprep.mubr.f32.mxu0 0.0
  %275 = vmatmul.mubr.f32.gmra.mrb[0].mxu0 %v38
  %v276 = vpop.f32.mrb[0].mxu0
  %v277 = vadd.f32 0.0, %v276
  %v278 = vpop.f32.mrb[0].mxu0
  %279 = vmatprep.mubr.f32.mxu0 0.0
  %280 = vmatmul.mubr.f32.gmra.mrb[0].mxu0 %v39
  %v281 = vpop.f32.mrb[0].mxu0
  %v282 = vadd.f32 0.0, %v281
  %v283 = vpop.f32.mrb[0].mxu0
  %284 = vmatprep.mubr.f32.mxu0 0.0
  %285 = vmatmul.mubr.f32.gmra.mrb[0].mxu0 %v40
  %v286 = vpop.f32.mrb[0].mxu0
  %v287 = vadd.f32 0.0, %v286
  %v288 = vpop.f32.mrb[0].mxu0
  %289 = vmatprep.mubr.f32.mxu0 0.0
  %290 = vmatmul.mubr.f32.gmra.mrb[0].mxu0 %v41
  %v291 = vpop.f32.mrb[0].mxu0
  %v292 = vadd.f32 0.0, %v291
  %v293 = vpop.f32.mrb[0].mxu0
  %294 = vmatprep.mubr.f32.mxu0 0.0
  %295 = vmatmul.mubr.f32.gmra.mrb[0].mxu0 %v42
  %v296 = vpop.f32.mrb[0].mxu0
  %v297 = vadd.f32 0.0, %v296
  %v298 = vpop.f32.mrb[0].mxu0
  %299 = vmatprep.mubr.f32.mxu0 0.0
  %300 = vmatmul.mubr.f32.gmra.mrb[0].mxu0 %v43
  %v301 = vpop.f32.mrb[0].mxu0
  %v302 = vadd.f32 0.0, %v301
  %v303 = vpop.f32.mrb[0].mxu0
  %304 = vmatprep.mubr.f32.mxu0 0.0
  %305 = vmatmul.mubr.f32.gmra.mrb[0].mxu0 %v44
  %v306 = vpop.f32.mrb[0].mxu0
  %v307 = vadd.f32 0.0, %v306
  %v308 = vpop.f32.mrb[0].mxu0
  %309 = vmatprep.mubr.f32.mxu0 0.0
  %310 = vmatmul.mubr.f32.gmra.mrb[0].mxu0 %v45
  %v311 = vpop.f32.mrb[0].mxu0
  %v312 = vadd.f32 0.0, %v311
  %v313 = vpop.f32.mrb[0].mxu0
  %314 = vmatprep.mubr.f32.mxu0 0.0
  %315 = vmatmul.mubr.f32.gmra.mrb[0].mxu0 %v46
  %v316 = vpop.f32.mrb[0].mxu0
  %v317 = vadd.f32 0.0, %v316
  %v318 = vpop.f32.mrb[0].mxu0
  %319 = vmatprep.mubr.f32.mxu0 0.0
  %320 = vmatmul.mubr.f32.gmra.mrb[0].mxu0 %v47
  %v321 = vpop.f32.mrb[0].mxu0
  %v322 = vadd.f32 0.0, %v321
  %v323 = vpop.f32.mrb[0].mxu0
  %324 = vmatprep.mubr.f32.mxu0 0.0
  %325 = vmatmul.mubr.f32.gmra.mrb[0].mxu0 %v48
  %v326 = vpop.f32.mrb[0].mxu0
  %v327 = vadd.f32 0.0, %v326
  %v328 = vpop.f32.mrb[0].mxu0
  %329 = vmatprep.mubr.f32.mxu0 0.0
  %330 = vmatmul.mubr.f32.gmra.mrb[0].mxu0 %v49
  %v331 = vpop.f32.mrb[0].mxu0
  %v332 = vadd.f32 0.0, %v331
  %v333 = vpop.f32.mrb[0].mxu0
  %334 = vmatprep.mubr.f32.mxu0 0.0
  %335 = vmatmul.mubr.f32.gmra.mrb[0].mxu0 %v50
  %v336 = vpop.f32.mrb[0].mxu0
  %v337 = vadd.f32 0.0, %v336
  %v338 = vpop.f32.mrb[0].mxu0
  %339 = vmatprep.mubr.f32.mxu0 0.0
  %340 = vmatmul.mubr.f32.gmra.mrb[0].mxu0 %v51
  %v341 = vpop.f32.mrb[0].mxu0
  %v342 = vadd.f32 0.0, %v341
  %v343 = vpop.f32.mrb[0].mxu0
  %344 = vmatprep.mubr.f32.mxu0 0.0
  %345 = vmatmul.mubr.f32.gmra.mrb[0].mxu0 %v52
  %v346 = vpop.f32.mrb[0].mxu0
  %v347 = vadd.f32 0.0, %v346
  %v348 = vpop.f32.mrb[0].mxu0
  %349 = vmatprep.mubr.f32.mxu0 0.0
  %350 = vmatmul.mubr.f32.gmra.mrb[0].mxu0 %v53
  %v351 = vpop.f32.mrb[0].mxu0
  %v352 = vadd.f32 0.0, %v351
  %v353 = vpop.f32.mrb[0].mxu0
  %354 = vmatprep.mubr.f32.mxu0 0.0
  %355 = vmatmul.mubr.f32.gmra.mrb[0].mxu0 %v54
  %v356 = vpop.f32.mrb[0].mxu0
  %v357 = vadd.f32 0.0, %v356
  %v358 = vpop.f32.mrb[0].mxu0
  %359 = vmatprep.mubr.f32.mxu0 0.0
  %360 = vmatmul.mubr.f32.gmra.mrb[0].mxu0 %v55
  %v361 = vpop.f32.mrb[0].mxu0
  %v362 = vadd.f32 0.0, %v361
  %v363 = vpop.f32.mrb[0].mxu0
  %364 = vmatprep.mubr.f32.mxu0 0.0
  %365 = vmatmul.mubr.f32.gmra.mrb[0].mxu0 %v56
  %v366 = vpop.f32.mrb[0].mxu0
  %v367 = vadd.f32 0.0, %v366
  %v368 = vpop.f32.mrb[0].mxu0
  %369 = vmatprep.mubr.f32.mxu0 0.0
  %370 = vmatmul.mubr.f32.gmra.mrb[0].mxu0 %v57
  %v371 = vpop.f32.mrb[0].mxu0
  %v372 = vadd.f32 0.0, %v371
  %v373 = vpop.f32.mrb[0].mxu0
  %374 = vmatprep.mubr.f32.mxu0 0.0
  %375 = vmatmul.mubr.f32.gmra.mrb[0].mxu0 %v58
  %v376 = vpop.f32.mrb[0].mxu0
  %v377 = vadd.f32 0.0, %v376
  %v378 = vpop.f32.mrb[0].mxu0
  %379 = vmatprep.mubr.f32.mxu0 0.0
  %380 = vmatmul.mubr.f32.gmra.mrb[0].mxu0 %v59
  %v381 = vpop.f32.mrb[0].mxu0
  %v382 = vadd.f32 0.0, %v381
  %v383 = vpop.f32.mrb[0].mxu0
  %384 = vmatprep.mubr.f32.mxu0 0.0
  %385 = vmatmul.mubr.f32.gmra.mrb[0].mxu0 %v60
  %v386 = vpop.f32.mrb[0].mxu0
  %v387 = vadd.f32 0.0, %v386
  %v388 = vpop.f32.mrb[0].mxu0
  %389 = vmatprep.mubr.f32.mxu0 0.0
  %390 = vmatmul.mubr.f32.gmra.mrb[0].mxu0 %v61
  %v391 = vpop.f32.mrb[0].mxu0
  %v392 = vadd.f32 0.0, %v391
  %v393 = vpop.f32.mrb[0].mxu0
  %394 = vmatprep.mubr.f32.mxu0 0.0
  %395 = vmatmul.mubr.f32.gmra.mrb[0].mxu0 %v62
  %v396 = vpop.f32.mrb[0].mxu0
  %v397 = vadd.f32 0.0, %v396
  %v398 = vpop.f32.mrb[0].mxu0
  %399 = vmatprep.mubr.f32.mxu0 0.0
  %400 = vmatmul.mubr.f32.gmra.mrb[0].mxu0 %v63
  %v401 = vpop.f32.mrb[0].mxu0
  %v402 = vadd.f32 0.0, %v401
  %v403 = vpop.f32.mrb[0].mxu0
  %404 = vmatprep.mubr.f32.mxu0 0.0
  %405 = vmatmul.mubr.f32.gmra.mrb[0].mxu0 %v64
  %v406 = vpop.f32.mrb[0].mxu0
  %v407 = vadd.f32 0.0, %v406
  %v408 = vpop.f32.mrb[0].mxu0
  %409 = vmatprep.mubr.f32.mxu0 0.0
  %410 = vmatmul.mubr.f32.gmra.mrb[0].mxu0 %v65
  %v411 = vpop.f32.mrb[0].mxu0
  %v412 = vadd.f32 0.0, %v411
  %v413 = vpop.f32.mrb[0].mxu0
  %414 = vmatprep.mubr.f32.mxu0 0.0
  %415 = vmatmul.mubr.f32.gmra.mrb[0].mxu0 %v66
  %v416 = vpop.f32.mrb[0].mxu0
  %v417 = vadd.f32 0.0, %v416
  %v418 = vpop.f32.mrb[0].mxu0
  %419 = vmatprep.mubr.f32.mxu0 0.0
  %420 = vmatmul.mubr.f32.gmra.mrb[0].mxu0 %v67
  %v421 = vpop.f32.mrb[0].mxu0
  %v422 = vadd.f32 0.0, %v421
  %v423 = vpop.f32.mrb[0].mxu0
  %424 = vmatprep.mubr.f32.mxu0 0.0
  %425 = vmatmul.mubr.f32.gmra.mrb[0].mxu0 %v68
  %v426 = vpop.f32.mrb[0].mxu0
  %v427 = vadd.f32 0.0, %v426
  %v428 = vpop.f32.mrb[0].mxu0
  %429 = vmatprep.mubr.f32.mxu0 0.0
  %430 = vmatmul.mubr.f32.gmra.mrb[0].mxu0 %v69
  %v431 = vpop.f32.mrb[0].mxu0
  %v432 = vadd.f32 0.0, %v431
  %v433 = vpop.f32.mrb[0].mxu0
  %434 = vmatprep.mubr.f32.mxu0 0.0
  %435 = vmatmul.mubr.f32.gmra.mrb[0].mxu0 %v70
  %v436 = vpop.f32.mrb[0].mxu0
  %v437 = vadd.f32 0.0, %v436
  %v438 = vpop.f32.mrb[0].mxu0
  %439 = vmatprep.mubr.f32.mxu0 0.0
  %440 = vmatmul.mubr.f32.gmra.mrb[0].mxu0 %v71
  %v441 = vpop.f32.mrb[0].mxu0
  %v442 = vadd.f32 0.0, %v441
  %v443 = vpop.f32.mrb[0].mxu0
  %444 = vmatprep.mubr.f32.mxu0 0.0
  %445 = vmatmul.mubr.f32.gmra.mrb[0].mxu0 %v72
  %v446 = vpop.f32.mrb[0].mxu0
  %v447 = vadd.f32 0.0, %v446
  %v448 = vpop.f32.mrb[0].mxu0
  %449 = vmatprep.mubr.f32.mxu0 0.0
  %450 = vmatmul.mubr.f32.gmra.mrb[0].mxu0 %v73
  %v451 = vpop.f32.mrb[0].mxu0
  %v452 = vadd.f32 0.0, %v451
  %v453 = vpop.f32.mrb[0].mxu0
  %454 = vmatprep.mubr.f32.mxu0 0.0
  %455 = vmatmul.mubr.f32.gmra.mrb[0].mxu0 %v74
  %v456 = vpop.f32.mrb[0].mxu0
  %v457 = vadd.f32 0.0, %v456
  %v458 = vpop.f32.mrb[0].mxu0
  %459 = vmatprep.mubr.f32.mxu0 0.0
  %460 = vmatmul.mubr.f32.gmra.mrb[0].mxu0 %v75
  %v461 = vpop.f32.mrb[0].mxu0
  %v462 = vadd.f32 0.0, %v461
  %v463 = vpop.f32.mrb[0].mxu0
  %464 = vmatprep.mubr.f32.mxu0 0.0
  %465 = vmatmul.mubr.f32.gmra.mrb[0].mxu0 %v76
  %v466 = vpop.f32.mrb[0].mxu0
  %v467 = vadd.f32 0.0, %v466
  %v468 = vpop.f32.mrb[0].mxu0
  %469 = vmatprep.mubr.f32.mxu0 0.0
  %470 = vmatmul.mubr.f32.gmra.mrb[0].mxu0 %v77
  %v471 = vpop.f32.mrb[0].mxu0
  %v472 = vadd.f32 0.0, %v471
  %v473 = vpop.f32.mrb[0].mxu0
  %474 = vmatprep.mubr.f32.mxu0 0.0
  %475 = vmatmul.mubr.f32.gmra.mrb[0].mxu0 %v78
  %v476 = vpop.f32.mrb[0].mxu0
  %v477 = vadd.f32 0.0, %v476
  %v478 = vpop.f32.mrb[0].mxu0
  %479 = vdwg.mxu0
  %v480 = vmax.f32 %v162, 0.0
  %v481 = vmax.f32 %v167, 0.0
  %v482 = vmax.f32 %v172, 0.0
  %v483 = vmax.f32 %v177, 0.0
  %v484 = vmax.f32 %v182, 0.0
  %v485 = vmax.f32 %v187, 0.0
  %v486 = vmax.f32 %v192, 0.0
  %v487 = vmax.f32 %v197, 0.0
  %v488 = vmax.f32 %v202, 0.0
  %v489 = vmax.f32 %v207, 0.0
  %v490 = vmax.f32 %v212, 0.0
  %v491 = vmax.f32 %v217, 0.0
  %v492 = vmax.f32 %v222, 0.0
  %v493 = vmax.f32 %v227, 0.0
  %v494 = vmax.f32 %v232, 0.0
  %v495 = vmax.f32 %v237, 0.0
  %v496 = vmax.f32 %v242, 0.0
  %v497 = vmax.f32 %v247, 0.0
  %v498 = vmax.f32 %v252, 0.0
  %v499 = vmax.f32 %v257, 0.0
  %v500 = vmax.f32 %v262, 0.0
  %v501 = vmax.f32 %v267, 0.0
  %v502 = vmax.f32 %v272, 0.0
  %v503 = vmax.f32 %v277, 0.0
  %v504 = vmax.f32 %v282, 0.0
  %v505 = vmax.f32 %v287, 0.0
  %v506 = vmax.f32 %v292, 0.0
  %v507 = vmax.f32 %v297, 0.0
  %v508 = vmax.f32 %v302, 0.0
  %v509 = vmax.f32 %v307, 0.0
  %v510 = vmax.f32 %v312, 0.0
  %v511 = vmax.f32 %v317, 0.0
  %v512 = vmax.f32 %v322, 0.0
  %v513 = vmax.f32 %v327, 0.0
  %v514 = vmax.f32 %v332, 0.0
  %v515 = vmax.f32 %v337, 0.0
  %v516 = vmax.f32 %v342, 0.0
  %v517 = vmax.f32 %v347, 0.0
  %v518 = vmax.f32 %v352, 0.0
  %v519 = vmax.f32 %v357, 0.0
  %v520 = vmax.f32 %v362, 0.0
  %v521 = vmax.f32 %v367, 0.0
  %v522 = vmax.f32 %v372, 0.0
  %v523 = vmax.f32 %v377, 0.0
  %v524 = vmax.f32 %v382, 0.0
  %v525 = vmax.f32 %v387, 0.0
  %v526 = vmax.f32 %v392, 0.0
  %v527 = vmax.f32 %v397, 0.0
  %v528 = vmax.f32 %v402, 0.0
  %v529 = vmax.f32 %v407, 0.0
  %v530 = vmax.f32 %v412, 0.0
  %v531 = vmax.f32 %v417, 0.0
  %v532 = vmax.f32 %v422, 0.0
  %v533 = vmax.f32 %v427, 0.0
  %v534 = vmax.f32 %v432, 0.0
  %v535 = vmax.f32 %v437, 0.0
  %v536 = vmax.f32 %v442, 0.0
  %v537 = vmax.f32 %v447, 0.0
  %v538 = vmax.f32 %v452, 0.0
  %v539 = vmax.f32 %v457, 0.0
  %v540 = vmax.f32 %v462, 0.0
  %v541 = vmax.f32 %v467, 0.0
  %v542 = vmax.f32 %v472, 0.0
  %v543 = vmax.f32 %v477, 0.0
  %v544 = vmul.f32 %v480, %v480
  %v545 = vmul.f32 %v481, %v481
  %v546 = vmul.f32 %v482, %v482
  %v547 = vmul.f32 %v483, %v483
  %v548 = vmul.f32 %v484, %v484
  %v549 = vmul.f32 %v485, %v485
  %v550 = vmul.f32 %v486, %v486
  %v551 = vmul.f32 %v487, %v487
  %v552 = vmul.f32 %v488, %v488
  %v553 = vmul.f32 %v489, %v489
  %v554 = vmul.f32 %v490, %v490
  %v555 = vmul.f32 %v491, %v491
  %v556 = vmul.f32 %v492, %v492
  %v557 = vmul.f32 %v493, %v493
  %v558 = vmul.f32 %v494, %v494
  %v559 = vmul.f32 %v495, %v495
  %v560 = vmul.f32 %v496, %v496
  %v561 = vmul.f32 %v497, %v497
  %v562 = vmul.f32 %v498, %v498
  %v563 = vmul.f32 %v499, %v499
  %v564 = vmul.f32 %v500, %v500
  %v565 = vmul.f32 %v501, %v501
  %v566 = vmul.f32 %v502, %v502
  %v567 = vmul.f32 %v503, %v503
  %v568 = vmul.f32 %v504, %v504
  %v569 = vmul.f32 %v505, %v505
  %v570 = vmul.f32 %v506, %v506
  %v571 = vmul.f32 %v507, %v507
  %v572 = vmul.f32 %v508, %v508
  %v573 = vmul.f32 %v509, %v509
  %v574 = vmul.f32 %v510, %v510
  %v575 = vmul.f32 %v511, %v511
  %v576 = vmul.f32 %v512, %v512
  %v577 = vmul.f32 %v513, %v513
  %v578 = vmul.f32 %v514, %v514
  %v579 = vmul.f32 %v515, %v515
  %v580 = vmul.f32 %v516, %v516
  %v581 = vmul.f32 %v517, %v517
  %v582 = vmul.f32 %v518, %v518
  %v583 = vmul.f32 %v519, %v519
  %v584 = vmul.f32 %v520, %v520
  %v585 = vmul.f32 %v521, %v521
  %v586 = vmul.f32 %v522, %v522
  %v587 = vmul.f32 %v523, %v523
  %v588 = vmul.f32 %v524, %v524
  %v589 = vmul.f32 %v525, %v525
  %v590 = vmul.f32 %v526, %v526
  %v591 = vmul.f32 %v527, %v527
  %v592 = vmul.f32 %v528, %v528
  %v593 = vmul.f32 %v529, %v529
  %v594 = vmul.f32 %v530, %v530
  %v595 = vmul.f32 %v531, %v531
  %v596 = vmul.f32 %v532, %v532
  %v597 = vmul.f32 %v533, %v533
  %v598 = vmul.f32 %v534, %v534
  %v599 = vmul.f32 %v535, %v535
  %v600 = vmul.f32 %v536, %v536
  %v601 = vmul.f32 %v537, %v537
  %v602 = vmul.f32 %v538, %v538
  %v603 = vmul.f32 %v539, %v539
  %v604 = vmul.f32 %v540, %v540
  %v605 = vmul.f32 %v541, %v541
  %v606 = vmul.f32 %v542, %v542
  %v607 = vmul.f32 %v543, %v543
  %v608 = vpack.c.bf16 %v545, %v544
  %v609 = vpack.c.bf16 %v547, %v546
  %v610 = vpack.c.bf16 %v549, %v548
  %v611 = vpack.c.bf16 %v551, %v550
  %v612 = vpack.c.bf16 %v553, %v552
  %v613 = vpack.c.bf16 %v555, %v554
  %v614 = vpack.c.bf16 %v557, %v556
  %v615 = vpack.c.bf16 %v559, %v558
  %v616 = vpack.c.bf16 %v561, %v560
  %v617 = vpack.c.bf16 %v563, %v562
  %v618 = vpack.c.bf16 %v565, %v564
  %v619 = vpack.c.bf16 %v567, %v566
  %v620 = vpack.c.bf16 %v569, %v568
  %v621 = vpack.c.bf16 %v571, %v570
  %v622 = vpack.c.bf16 %v573, %v572
  %v623 = vpack.c.bf16 %v575, %v574
  %v624 = vpack.c.bf16 %v577, %v576
  %v625 = vpack.c.bf16 %v579, %v578
  %v626 = vpack.c.bf16 %v581, %v580
  %v627 = vpack.c.bf16 %v583, %v582
  %v628 = vpack.c.bf16 %v585, %v584
  %v629 = vpack.c.bf16 %v587, %v586
  %v630 = vpack.c.bf16 %v589, %v588
  %v631 = vpack.c.bf16 %v591, %v590
  %v632 = vpack.c.bf16 %v593, %v592
  %v633 = vpack.c.bf16 %v595, %v594
  %v634 = vpack.c.bf16 %v597, %v596
  %v635 = vpack.c.bf16 %v599, %v598
  %v636 = vpack.c.bf16 %v601, %v600
  %v637 = vpack.c.bf16 %v603, %v602
  %v638 = vpack.c.bf16 %v605, %v604
  %v639 = vpack.c.bf16 %v607, %v606
  %v640 = vld [vmem:[%s2] sm:$0xf]
  %v641 = vld [vmem:[%s2 + $0x4] sm:$0xf]
  %v642 = vld [vmem:[%s2 + $0x8] sm:$0xf]
  %v643 = vld [vmem:[%s2 + $0xc] sm:$0xf]
  %v644 = vld [vmem:[%s2 + $0x10] sm:$0xf]
  %v645 = vld [vmem:[%s2 + $0x14] sm:$0xf]
  %v646 = vld [vmem:[%s2 + $0x18] sm:$0xf]
  %v647 = vld [vmem:[%s2 + $0x1c] sm:$0xf]
  %v648 = vld [vmem:[%s2 + $0x20] sm:$0xf]
  %v649 = vld [vmem:[%s2 + $0x24] sm:$0xf]
  %v650 = vld [vmem:[%s2 + $0x28] sm:$0xf]
  %v651 = vld [vmem:[%s2 + $0x2c] sm:$0xf]
  %v652 = vld [vmem:[%s2 + $0x30] sm:$0xf]
  %v653 = vld [vmem:[%s2 + $0x34] sm:$0xf]
  %v654 = vld [vmem:[%s2 + $0x38] sm:$0xf]
  %v655 = vld [vmem:[%s2 + $0x3c] sm:$0xf]
  %v672 = vunpack.c.l.b16 %v640
  %v673 = vunpack.c.l.b16 %v641
  %v674 = vunpack.c.l.b16 %v642
  %v675 = vunpack.c.l.b16 %v643
  %v676 = vunpack.c.l.b16 %v644
  %v677 = vunpack.c.l.b16 %v645
  %v678 = vunpack.c.l.b16 %v646
  %v679 = vunpack.c.l.b16 %v647
  %v680 = vunpack.c.l.b16 %v648
  %v681 = vunpack.c.l.b16 %v649
  %v682 = vunpack.c.l.b16 %v650
  %v683 = vunpack.c.l.b16 %v651
  %v684 = vunpack.c.l.b16 %v652
  %v685 = vunpack.c.l.b16 %v653
  %v686 = vunpack.c.l.b16 %v654
  %v687 = vunpack.c.l.b16 %v655
  %v688 = vpack.c.b16 %v673, %v672
  %v689 = vpack.c.b16 %v675, %v674
  %v690 = vpack.c.b16 %v677, %v676
  %v691 = vpack.c.b16 %v679, %v678
  %v692 = vpack.c.b16 %v681, %v680
  %v693 = vpack.c.b16 %v683, %v682
  %v694 = vpack.c.b16 %v685, %v684
  %v695 = vpack.c.b16 %v687, %v686
  %704 = vmatprep.subr.bf16.mxu0 0
  %705 = vmatpush1.bf16.msra.mxu0 %v688
  %706 = vmatprep.subr.bf16.mxu0 0
  %707 = vmatpush1.bf16.msra.mxu0 %v689
  %708 = vmatprep.subr.bf16.mxu0 0
  %709 = vmatpush1.bf16.msra.mxu0 %v690
  %710 = vmatprep.subr.bf16.mxu0 0
  %711 = vmatpush1.bf16.msra.mxu0 %v691
  %712 = vmatprep.subr.bf16.mxu0 0
  %713 = vmatpush1.bf16.msra.mxu0 %v692
  %714 = vmatprep.subr.bf16.mxu0 0
  %715 = vmatpush1.bf16.msra.mxu0 %v693
  %716 = vmatprep.subr.bf16.mxu0 0
  %717 = vmatpush1.bf16.msra.mxu0 %v694
  %718 = vmatprep.subr.bf16.mxu0 0
  %719 = vmatpush1.bf16.msra.mxu0 %v695
  %720 = vmatprep.subr.bf16.mxu0 0
  %721 = vmatpush1.bf16.msra.mxu0 0
  %722 = vmatprep.subr.bf16.mxu0 0
  %723 = vmatpush1.bf16.msra.mxu0 0
  %724 = vmatprep.subr.bf16.mxu0 0
  %725 = vmatpush1.bf16.msra.mxu0 0
  %726 = vmatprep.subr.bf16.mxu0 0
  %727 = vmatpush1.bf16.msra.mxu0 0
  %728 = vmatprep.subr.bf16.mxu0 0
  %729 = vmatpush1.bf16.msra.mxu0 0
  %730 = vmatprep.subr.bf16.mxu0 0
  %731 = vmatpush1.bf16.msra.mxu0 0
  %732 = vmatprep.subr.bf16.mxu0 0
  %733 = vmatpush1.bf16.msra.mxu0 0
  %734 = vmatprep.subr.bf16.mxu0 0
  %735 = vmatpush1.bf16.msra.mxu0 0
  %736 = vmatprep.mubr.bf16.mxu0 0
  %737 = vmatmul.mubr.bf16.gmra.mrb[0].mxu0 %v608
  %v738 = vpop.f32.mrb[0].mxu0
  %v739 = vadd.f32 0.0, %v738
  %v740 = vpop.f32.mrb[0].mxu0
  %v741 = vpop.f32.mrb[0].mxu0
  %v742 = vadd.f32 0.0, %v741
  %v743 = vpop.f32.mrb[0].mxu0
  %744 = vmatprep.mubr.bf16.mxu0 0
  %745 = vmatmul.mubr.bf16.gmra.mrb[0].mxu0 %v609
  %v746 = vpop.f32.mrb[0].mxu0
  %v747 = vadd.f32 0.0, %v746
  %v748 = vpop.f32.mrb[0].mxu0
  %v749 = vpop.f32.mrb[0].mxu0
  %v750 = vadd.f32 0.0, %v749
  %v751 = vpop.f32.mrb[0].mxu0
  %752 = vmatprep.mubr.bf16.mxu0 0
  %753 = vmatmul.mubr.bf16.gmra.mrb[0].mxu0 %v610
  %v754 = vpop.f32.mrb[0].mxu0
  %v755 = vadd.f32 0.0, %v754
  %v756 = vpop.f32.mrb[0].mxu0
  %v757 = vpop.f32.mrb[0].mxu0
  %v758 = vadd.f32 0.0, %v757
  %v759 = vpop.f32.mrb[0].mxu0
  %760 = vmatprep.mubr.bf16.mxu0 0
  %761 = vmatmul.mubr.bf16.gmra.mrb[0].mxu0 %v611
  %v762 = vpop.f32.mrb[0].mxu0
  %v763 = vadd.f32 0.0, %v762
  %v764 = vpop.f32.mrb[0].mxu0
  %v765 = vpop.f32.mrb[0].mxu0
  %v766 = vadd.f32 0.0, %v765
  %v767 = vpop.f32.mrb[0].mxu0
  %768 = vmatprep.mubr.bf16.mxu0 0
  %769 = vmatmul.mubr.bf16.gmra.mrb[0].mxu0 %v612
  %v770 = vpop.f32.mrb[0].mxu0
  %v771 = vadd.f32 0.0, %v770
  %v772 = vpop.f32.mrb[0].mxu0
  %v773 = vpop.f32.mrb[0].mxu0
  %v774 = vadd.f32 0.0, %v773
  %v775 = vpop.f32.mrb[0].mxu0
  %776 = vmatprep.mubr.bf16.mxu0 0
  %777 = vmatmul.mubr.bf16.gmra.mrb[0].mxu0 %v613
  %v778 = vpop.f32.mrb[0].mxu0
  %v779 = vadd.f32 0.0, %v778
  %v780 = vpop.f32.mrb[0].mxu0
  %v781 = vpop.f32.mrb[0].mxu0
  %v782 = vadd.f32 0.0, %v781
  %v783 = vpop.f32.mrb[0].mxu0
  %784 = vmatprep.mubr.bf16.mxu0 0
  %785 = vmatmul.mubr.bf16.gmra.mrb[0].mxu0 %v614
  %v786 = vpop.f32.mrb[0].mxu0
  %v787 = vadd.f32 0.0, %v786
  %v788 = vpop.f32.mrb[0].mxu0
  %v789 = vpop.f32.mrb[0].mxu0
  %v790 = vadd.f32 0.0, %v789
  %v791 = vpop.f32.mrb[0].mxu0
  %792 = vmatprep.mubr.bf16.mxu0 0
  %793 = vmatmul.mubr.bf16.gmra.mrb[0].mxu0 %v615
  %v794 = vpop.f32.mrb[0].mxu0
  %v795 = vadd.f32 0.0, %v794
  %v796 = vpop.f32.mrb[0].mxu0
  %v797 = vpop.f32.mrb[0].mxu0
  %v798 = vadd.f32 0.0, %v797
  %v799 = vpop.f32.mrb[0].mxu0
  %800 = vmatprep.mubr.bf16.mxu0 0
  %801 = vmatmul.mubr.bf16.gmra.mrb[0].mxu0 %v616
  %v802 = vpop.f32.mrb[0].mxu0
  %v803 = vadd.f32 0.0, %v802
  %v804 = vpop.f32.mrb[0].mxu0
  %v805 = vpop.f32.mrb[0].mxu0
  %v806 = vadd.f32 0.0, %v805
  %v807 = vpop.f32.mrb[0].mxu0
  %808 = vmatprep.mubr.bf16.mxu0 0
  %809 = vmatmul.mubr.bf16.gmra.mrb[0].mxu0 %v617
  %v810 = vpop.f32.mrb[0].mxu0
  %v811 = vadd.f32 0.0, %v810
  %v812 = vpop.f32.mrb[0].mxu0
  %v813 = vpop.f32.mrb[0].mxu0
  %v814 = vadd.f32 0.0, %v813
  %v815 = vpop.f32.mrb[0].mxu0
  %816 = vmatprep.mubr.bf16.mxu0 0
  %817 = vmatmul.mubr.bf16.gmra.mrb[0].mxu0 %v618
  %v818 = vpop.f32.mrb[0].mxu0
  %v819 = vadd.f32 0.0, %v818
  %v820 = vpop.f32.mrb[0].mxu0
  %v821 = vpop.f32.mrb[0].mxu0
  %v822 = vadd.f32 0.0, %v821
  %v823 = vpop.f32.mrb[0].mxu0
  %824 = vmatprep.mubr.bf16.mxu0 0
  %825 = vmatmul.mubr.bf16.gmra.mrb[0].mxu0 %v619
  %v826 = vpop.f32.mrb[0].mxu0
  %v827 = vadd.f32 0.0, %v826
  %v828 = vpop.f32.mrb[0].mxu0
  %v829 = vpop.f32.mrb[0].mxu0
  %v830 = vadd.f32 0.0, %v829
  %v831 = vpop.f32.mrb[0].mxu0
  %832 = vmatprep.mubr.bf16.mxu0 0
  %833 = vmatmul.mubr.bf16.gmra.mrb[0].mxu0 %v620
  %v834 = vpop.f32.mrb[0].mxu0
  %v835 = vadd.f32 0.0, %v834
  %v836 = vpop.f32.mrb[0].mxu0
  %v837 = vpop.f32.mrb[0].mxu0
  %v838 = vadd.f32 0.0, %v837
  %v839 = vpop.f32.mrb[0].mxu0
  %840 = vmatprep.mubr.bf16.mxu0 0
  %841 = vmatmul.mubr.bf16.gmra.mrb[0].mxu0 %v621
  %v842 = vpop.f32.mrb[0].mxu0
  %v843 = vadd.f32 0.0, %v842
  %v844 = vpop.f32.mrb[0].mxu0
  %v845 = vpop.f32.mrb[0].mxu0
  %v846 = vadd.f32 0.0, %v845
  %v847 = vpop.f32.mrb[0].mxu0
  %848 = vmatprep.mubr.bf16.mxu0 0
  %849 = vmatmul.mubr.bf16.gmra.mrb[0].mxu0 %v622
  %v850 = vpop.f32.mrb[0].mxu0
  %v851 = vadd.f32 0.0, %v850
  %v852 = vpop.f32.mrb[0].mxu0
  %v853 = vpop.f32.mrb[0].mxu0
  %v854 = vadd.f32 0.0, %v853
  %v855 = vpop.f32.mrb[0].mxu0
  %856 = vmatprep.mubr.bf16.mxu0 0
  %857 = vmatmul.mubr.bf16.gmra.mrb[0].mxu0 %v623
  %v858 = vpop.f32.mrb[0].mxu0
  %v859 = vadd.f32 0.0, %v858
  %v860 = vpop.f32.mrb[0].mxu0
  %v861 = vpop.f32.mrb[0].mxu0
  %v862 = vadd.f32 0.0, %v861
  %v863 = vpop.f32.mrb[0].mxu0
  %864 = vmatprep.mubr.bf16.mxu0 0
  %865 = vmatmul.mubr.bf16.gmra.mrb[0].mxu0 %v624
  %v866 = vpop.f32.mrb[0].mxu0
  %v867 = vadd.f32 0.0, %v866
  %v868 = vpop.f32.mrb[0].mxu0
  %v869 = vpop.f32.mrb[0].mxu0
  %v870 = vadd.f32 0.0, %v869
  %v871 = vpop.f32.mrb[0].mxu0
  %872 = vmatprep.mubr.bf16.mxu0 0
  %873 = vmatmul.mubr.bf16.gmra.mrb[0].mxu0 %v625
  %v874 = vpop.f32.mrb[0].mxu0
  %v875 = vadd.f32 0.0, %v874
  %v876 = vpop.f32.mrb[0].mxu0
  %v877 = vpop.f32.mrb[0].mxu0
  %v878 = vadd.f32 0.0, %v877
  %v879 = vpop.f32.mrb[0].mxu0
  %880 = vmatprep.mubr.bf16.mxu0 0
  %881 = vmatmul.mubr.bf16.gmra.mrb[0].mxu0 %v626
  %v882 = vpop.f32.mrb[0].mxu0
  %v883 = vadd.f32 0.0, %v882
  %v884 = vpop.f32.mrb[0].mxu0
  %v885 = vpop.f32.mrb[0].mxu0
  %v886 = vadd.f32 0.0, %v885
  %v887 = vpop.f32.mrb[0].mxu0
  %888 = vmatprep.mubr.bf16.mxu0 0
  %889 = vmatmul.mubr.bf16.gmra.mrb[0].mxu0 %v627
  %v890 = vpop.f32.mrb[0].mxu0
  %v891 = vadd.f32 0.0, %v890
  %v892 = vpop.f32.mrb[0].mxu0
  %v893 = vpop.f32.mrb[0].mxu0
  %v894 = vadd.f32 0.0, %v893
  %v895 = vpop.f32.mrb[0].mxu0
  %896 = vmatprep.mubr.bf16.mxu0 0
  %897 = vmatmul.mubr.bf16.gmra.mrb[0].mxu0 %v628
  %v898 = vpop.f32.mrb[0].mxu0
  %v899 = vadd.f32 0.0, %v898
  %v900 = vpop.f32.mrb[0].mxu0
  %v901 = vpop.f32.mrb[0].mxu0
  %v902 = vadd.f32 0.0, %v901
  %v903 = vpop.f32.mrb[0].mxu0
  %904 = vmatprep.mubr.bf16.mxu0 0
  %905 = vmatmul.mubr.bf16.gmra.mrb[0].mxu0 %v629
  %v906 = vpop.f32.mrb[0].mxu0
  %v907 = vadd.f32 0.0, %v906
  %v908 = vpop.f32.mrb[0].mxu0
  %v909 = vpop.f32.mrb[0].mxu0
  %v910 = vadd.f32 0.0, %v909
  %v911 = vpop.f32.mrb[0].mxu0
  %912 = vmatprep.mubr.bf16.mxu0 0
  %913 = vmatmul.mubr.bf16.gmra.mrb[0].mxu0 %v630
  %v914 = vpop.f32.mrb[0].mxu0
  %v915 = vadd.f32 0.0, %v914
  %v916 = vpop.f32.mrb[0].mxu0
  %v917 = vpop.f32.mrb[0].mxu0
  %v918 = vadd.f32 0.0, %v917
  %v919 = vpop.f32.mrb[0].mxu0
  %920 = vmatprep.mubr.bf16.mxu0 0
  %921 = vmatmul.mubr.bf16.gmra.mrb[0].mxu0 %v631
  %v922 = vpop.f32.mrb[0].mxu0
  %v923 = vadd.f32 0.0, %v922
  %v924 = vpop.f32.mrb[0].mxu0
  %v925 = vpop.f32.mrb[0].mxu0
  %v926 = vadd.f32 0.0, %v925
  %v927 = vpop.f32.mrb[0].mxu0
  %928 = vmatprep.mubr.bf16.mxu0 0
  %929 = vmatmul.mubr.bf16.gmra.mrb[0].mxu0 %v632
  %v930 = vpop.f32.mrb[0].mxu0
  %v931 = vadd.f32 0.0, %v930
  %v932 = vpop.f32.mrb[0].mxu0
  %v933 = vpop.f32.mrb[0].mxu0
  %v934 = vadd.f32 0.0, %v933
  %v935 = vpop.f32.mrb[0].mxu0
  %936 = vmatprep.mubr.bf16.mxu0 0
  %937 = vmatmul.mubr.bf16.gmra.mrb[0].mxu0 %v633
  %v938 = vpop.f32.mrb[0].mxu0
  %v939 = vadd.f32 0.0, %v938
  %v940 = vpop.f32.mrb[0].mxu0
  %v941 = vpop.f32.mrb[0].mxu0
  %v942 = vadd.f32 0.0, %v941
  %v943 = vpop.f32.mrb[0].mxu0
  %944 = vmatprep.mubr.bf16.mxu0 0
  %945 = vmatmul.mubr.bf16.gmra.mrb[0].mxu0 %v634
  %v946 = vpop.f32.mrb[0].mxu0
  %v947 = vadd.f32 0.0, %v946
  %v948 = vpop.f32.mrb[0].mxu0
  %v949 = vpop.f32.mrb[0].mxu0
  %v950 = vadd.f32 0.0, %v949
  %v951 = vpop.f32.mrb[0].mxu0
  %952 = vmatprep.mubr.bf16.mxu0 0
  %953 = vmatmul.mubr.bf16.gmra.mrb[0].mxu0 %v635
  %v954 = vpop.f32.mrb[0].mxu0
  %v955 = vadd.f32 0.0, %v954
  %v956 = vpop.f32.mrb[0].mxu0
  %v957 = vpop.f32.mrb[0].mxu0
  %v958 = vadd.f32 0.0, %v957
  %v959 = vpop.f32.mrb[0].mxu0
  %960 = vmatprep.mubr.bf16.mxu0 0
  %961 = vmatmul.mubr.bf16.gmra.mrb[0].mxu0 %v636
  %v962 = vpop.f32.mrb[0].mxu0
  %v963 = vadd.f32 0.0, %v962
  %v964 = vpop.f32.mrb[0].mxu0
  %v965 = vpop.f32.mrb[0].mxu0
  %v966 = vadd.f32 0.0, %v965
  %v967 = vpop.f32.mrb[0].mxu0
  %968 = vmatprep.mubr.bf16.mxu0 0
  %969 = vmatmul.mubr.bf16.gmra.mrb[0].mxu0 %v637
  %v970 = vpop.f32.mrb[0].mxu0
  %v971 = vadd.f32 0.0, %v970
  %v972 = vpop.f32.mrb[0].mxu0
  %v973 = vpop.f32.mrb[0].mxu0
  %v974 = vadd.f32 0.0, %v973
  %v975 = vpop.f32.mrb[0].mxu0
  %976 = vmatprep.mubr.bf16.mxu0 0
  %977 = vmatmul.mubr.bf16.gmra.mrb[0].mxu0 %v638
  %v978 = vpop.f32.mrb[0].mxu0
  %v979 = vadd.f32 0.0, %v978
  %v980 = vpop.f32.mrb[0].mxu0
  %v981 = vpop.f32.mrb[0].mxu0
  %v982 = vadd.f32 0.0, %v981
  %v983 = vpop.f32.mrb[0].mxu0
  %984 = vmatprep.mubr.bf16.mxu0 0
  %985 = vmatmul.mubr.bf16.gmra.mrb[0].mxu0 %v639
  %v986 = vpop.f32.mrb[0].mxu0
  %v987 = vadd.f32 0.0, %v986
  %v988 = vpop.f32.mrb[0].mxu0
  %v989 = vpop.f32.mrb[0].mxu0
  %v990 = vadd.f32 0.0, %v989
  %v991 = vpop.f32.mrb[0].mxu0
  %992 = vdwg.mxu0
  %v993 = vmul.f32 %v739, 2e-05
  %v994 = vmul.f32 %v742, 2e-05
  %v995 = vmul.f32 %v747, 2e-05
  %v996 = vmul.f32 %v750, 2e-05
  %v997 = vmul.f32 %v755, 2e-05
  %v998 = vmul.f32 %v758, 2e-05
  %v999 = vmul.f32 %v763, 2e-05
  %v1000 = vmul.f32 %v766, 2e-05
  %v1001 = vmul.f32 %v771, 2e-05
  %v1002 = vmul.f32 %v774, 2e-05
  %v1003 = vmul.f32 %v779, 2e-05
  %v1004 = vmul.f32 %v782, 2e-05
  %v1005 = vmul.f32 %v787, 2e-05
  %v1006 = vmul.f32 %v790, 2e-05
  %v1007 = vmul.f32 %v795, 2e-05
  %v1008 = vmul.f32 %v798, 2e-05
  %v1009 = vmul.f32 %v803, 2e-05
  %v1010 = vmul.f32 %v806, 2e-05
  %v1011 = vmul.f32 %v811, 2e-05
  %v1012 = vmul.f32 %v814, 2e-05
  %v1013 = vmul.f32 %v819, 2e-05
  %v1014 = vmul.f32 %v822, 2e-05
  %v1015 = vmul.f32 %v827, 2e-05
  %v1016 = vmul.f32 %v830, 2e-05
  %v1017 = vmul.f32 %v835, 2e-05
  %v1018 = vmul.f32 %v838, 2e-05
  %v1019 = vmul.f32 %v843, 2e-05
  %v1020 = vmul.f32 %v846, 2e-05
  %v1021 = vmul.f32 %v851, 2e-05
  %v1022 = vmul.f32 %v854, 2e-05
  %v1023 = vmul.f32 %v859, 2e-05
  %v1024 = vmul.f32 %v862, 2e-05
  %v1025 = vmul.f32 %v867, 2e-05
  %v1026 = vmul.f32 %v870, 2e-05
  %v1027 = vmul.f32 %v875, 2e-05
  %v1028 = vmul.f32 %v878, 2e-05
  %v1029 = vmul.f32 %v883, 2e-05
  %v1030 = vmul.f32 %v886, 2e-05
  %v1031 = vmul.f32 %v891, 2e-05
  %v1032 = vmul.f32 %v894, 2e-05
  %v1033 = vmul.f32 %v899, 2e-05
  %v1034 = vmul.f32 %v902, 2e-05
  %v1035 = vmul.f32 %v907, 2e-05
  %v1036 = vmul.f32 %v910, 2e-05
  %v1037 = vmul.f32 %v915, 2e-05
  %v1038 = vmul.f32 %v918, 2e-05
  %v1039 = vmul.f32 %v923, 2e-05
  %v1040 = vmul.f32 %v926, 2e-05
  %v1041 = vmul.f32 %v931, 2e-05
  %v1042 = vmul.f32 %v934, 2e-05
  %v1043 = vmul.f32 %v939, 2e-05
  %v1044 = vmul.f32 %v942, 2e-05
  %v1045 = vmul.f32 %v947, 2e-05
  %v1046 = vmul.f32 %v950, 2e-05
  %v1047 = vmul.f32 %v955, 2e-05
  %v1048 = vmul.f32 %v958, 2e-05
  %v1049 = vmul.f32 %v963, 2e-05
  %v1050 = vmul.f32 %v966, 2e-05
  %v1051 = vmul.f32 %v971, 2e-05
  %v1052 = vmul.f32 %v974, 2e-05
  %v1053 = vmul.f32 %v979, 2e-05
  %v1054 = vmul.f32 %v982, 2e-05
  %v1055 = vmul.f32 %v987, 2e-05
  %v1056 = vmul.f32 %v990, 2e-05
  %v1057 = vadd.f32 %v993, 2.0
  %v1058 = vadd.f32 %v994, 2.0
  %v1059 = vadd.f32 %v995, 2.0
  %v1060 = vadd.f32 %v996, 2.0
  %v1061 = vadd.f32 %v997, 2.0
  %v1062 = vadd.f32 %v998, 2.0
  %v1063 = vadd.f32 %v999, 2.0
  %v1064 = vadd.f32 %v1000, 2.0
  %v1065 = vadd.f32 %v1001, 2.0
  %v1066 = vadd.f32 %v1002, 2.0
  %v1067 = vadd.f32 %v1003, 2.0
  %v1068 = vadd.f32 %v1004, 2.0
  %v1069 = vadd.f32 %v1005, 2.0
  %v1070 = vadd.f32 %v1006, 2.0
  %v1071 = vadd.f32 %v1007, 2.0
  %v1072 = vadd.f32 %v1008, 2.0
  %v1073 = vadd.f32 %v1009, 2.0
  %v1074 = vadd.f32 %v1010, 2.0
  %v1075 = vadd.f32 %v1011, 2.0
  %v1076 = vadd.f32 %v1012, 2.0
  %v1077 = vadd.f32 %v1013, 2.0
  %v1078 = vadd.f32 %v1014, 2.0
  %v1079 = vadd.f32 %v1015, 2.0
  %v1080 = vadd.f32 %v1016, 2.0
  %v1081 = vadd.f32 %v1017, 2.0
  %v1082 = vadd.f32 %v1018, 2.0
  %v1083 = vadd.f32 %v1019, 2.0
  %v1084 = vadd.f32 %v1020, 2.0
  %v1085 = vadd.f32 %v1021, 2.0
  %v1086 = vadd.f32 %v1022, 2.0
  %v1087 = vadd.f32 %v1023, 2.0
  %v1088 = vadd.f32 %v1024, 2.0
  %v1089 = vadd.f32 %v1025, 2.0
  %v1090 = vadd.f32 %v1026, 2.0
  %v1091 = vadd.f32 %v1027, 2.0
  %v1092 = vadd.f32 %v1028, 2.0
  %v1093 = vadd.f32 %v1029, 2.0
  %v1094 = vadd.f32 %v1030, 2.0
  %v1095 = vadd.f32 %v1031, 2.0
  %v1096 = vadd.f32 %v1032, 2.0
  %v1097 = vadd.f32 %v1033, 2.0
  %v1098 = vadd.f32 %v1034, 2.0
  %v1099 = vadd.f32 %v1035, 2.0
  %v1100 = vadd.f32 %v1036, 2.0
  %v1101 = vadd.f32 %v1037, 2.0
  %v1102 = vadd.f32 %v1038, 2.0
  %v1103 = vadd.f32 %v1039, 2.0
  %v1104 = vadd.f32 %v1040, 2.0
  %v1105 = vadd.f32 %v1041, 2.0
  %v1106 = vadd.f32 %v1042, 2.0
  %v1107 = vadd.f32 %v1043, 2.0
  %v1108 = vadd.f32 %v1044, 2.0
  %v1109 = vadd.f32 %v1045, 2.0
  %v1110 = vadd.f32 %v1046, 2.0
  %v1111 = vadd.f32 %v1047, 2.0
  %v1112 = vadd.f32 %v1048, 2.0
  %v1113 = vadd.f32 %v1049, 2.0
  %v1114 = vadd.f32 %v1050, 2.0
  %v1115 = vadd.f32 %v1051, 2.0
  %v1116 = vadd.f32 %v1052, 2.0
  %v1117 = vadd.f32 %v1053, 2.0
  %v1118 = vadd.f32 %v1054, 2.0
  %v1119 = vadd.f32 %v1055, 2.0
  %v1120 = vadd.f32 %v1056, 2.0
  %v1121 = vrsqrt.pop %v1057
  %v1122 = vrsqrt.pop %v1058
  %v1123 = vrsqrt.pop %v1059
  %v1124 = vrsqrt.pop %v1060
  %v1125 = vrsqrt.pop %v1061
  %v1126 = vrsqrt.pop %v1062
  %v1127 = vrsqrt.pop %v1063
  %v1128 = vrsqrt.pop %v1064
  %v1129 = vrsqrt.pop %v1065
  %v1130 = vrsqrt.pop %v1066
  %v1131 = vrsqrt.pop %v1067
  %v1132 = vrsqrt.pop %v1068
  %v1133 = vrsqrt.pop %v1069
  %v1134 = vrsqrt.pop %v1070
  %v1135 = vrsqrt.pop %v1071
  %v1136 = vrsqrt.pop %v1072
  %v1137 = vrsqrt.pop %v1073
  %v1138 = vrsqrt.pop %v1074
  %v1139 = vrsqrt.pop %v1075
  %v1140 = vrsqrt.pop %v1076
  %v1141 = vrsqrt.pop %v1077
  %v1142 = vrsqrt.pop %v1078
  %v1143 = vrsqrt.pop %v1079
  %v1144 = vrsqrt.pop %v1080
  %v1145 = vrsqrt.pop %v1081
  %v1146 = vrsqrt.pop %v1082
  %v1147 = vrsqrt.pop %v1083
  %v1148 = vrsqrt.pop %v1084
  %v1149 = vrsqrt.pop %v1085
  %v1150 = vrsqrt.pop %v1086
  %v1151 = vrsqrt.pop %v1087
  %v1152 = vrsqrt.pop %v1088
  %v1153 = vrsqrt.pop %v1089
  %v1154 = vrsqrt.pop %v1090
  %v1155 = vrsqrt.pop %v1091
  %v1156 = vrsqrt.pop %v1092
  %v1157 = vrsqrt.pop %v1093
  %v1158 = vrsqrt.pop %v1094
  %v1159 = vrsqrt.pop %v1095
  %v1160 = vrsqrt.pop %v1096
  %v1161 = vrsqrt.pop %v1097
  %v1162 = vrsqrt.pop %v1098
  %v1163 = vrsqrt.pop %v1099
  %v1164 = vrsqrt.pop %v1100
  %v1165 = vrsqrt.pop %v1101
  %v1166 = vrsqrt.pop %v1102
  %v1167 = vrsqrt.pop %v1103
  %v1168 = vrsqrt.pop %v1104
  %v1169 = vrsqrt.pop %v1105
  %v1170 = vrsqrt.pop %v1106
  %v1171 = vrsqrt.pop %v1107
  %v1172 = vrsqrt.pop %v1108
  %v1173 = vrsqrt.pop %v1109
  %v1174 = vrsqrt.pop %v1110
  %v1175 = vrsqrt.pop %v1111
  %v1176 = vrsqrt.pop %v1112
  %v1177 = vrsqrt.pop %v1113
  %v1178 = vrsqrt.pop %v1114
  %v1179 = vrsqrt.pop %v1115
  %v1180 = vrsqrt.pop %v1116
  %v1181 = vrsqrt.pop %v1117
  %v1182 = vrsqrt.pop %v1118
  %v1183 = vrsqrt.pop %v1119
  %v1184 = vrsqrt.pop %v1120
  %v1185 = vrsqrt.pop %v1121
  %v1186 = vmul.f32 %v1121, %v1185
  %vm1187 = vcmp.eq.f32.partialorder %v1121, inf
  %v1188 = vsel %vm1187, %v1121, %v1186
  %vm1189 = vcmp.eq.f32.partialorder %v1121, 0.0
  %v1190 = vand.u32 %v1121, 2147483648
  %v1191 = vsel %vm1189, %v1190, %v1188
  %v1192 = vrsqrt.pop %v1122
  %v1193 = vmul.f32 %v1122, %v1192
  %vm1194 = vcmp.eq.f32.partialorder %v1122, inf
  %v1195 = vsel %vm1194, %v1122, %v1193
  %vm1196 = vcmp.eq.f32.partialorder %v1122, 0.0
  %v1197 = vand.u32 %v1122, 2147483648
  %v1198 = vsel %vm1196, %v1197, %v1195
  %v1199 = vrsqrt.pop %v1123
  %v1200 = vmul.f32 %v1123, %v1199
  %vm1201 = vcmp.eq.f32.partialorder %v1123, inf
  %v1202 = vsel %vm1201, %v1123, %v1200
  %vm1203 = vcmp.eq.f32.partialorder %v1123, 0.0
  %v1204 = vand.u32 %v1123, 2147483648
  %v1205 = vsel %vm1203, %v1204, %v1202
  %v1206 = vrsqrt.pop %v1124
  %v1207 = vmul.f32 %v1124, %v1206
  %vm1208 = vcmp.eq.f32.partialorder %v1124, inf
  %v1209 = vsel %vm1208, %v1124, %v1207
  %vm1210 = vcmp.eq.f32.partialorder %v1124, 0.0
  %v1211 = vand.u32 %v1124, 2147483648
  %v1212 = vsel %vm1210, %v1211, %v1209
  %v1213 = vrsqrt.pop %v1125
  %v1214 = vmul.f32 %v1125, %v1213
  %vm1215 = vcmp.eq.f32.partialorder %v1125, inf
  %v1216 = vsel %vm1215, %v1125, %v1214
  %vm1217 = vcmp.eq.f32.partialorder %v1125, 0.0
  %v1218 = vand.u32 %v1125, 2147483648
  %v1219 = vsel %vm1217, %v1218, %v1216
  %v1220 = vrsqrt.pop %v1126
  %v1221 = vmul.f32 %v1126, %v1220
  %vm1222 = vcmp.eq.f32.partialorder %v1126, inf
  %v1223 = vsel %vm1222, %v1126, %v1221
  %vm1224 = vcmp.eq.f32.partialorder %v1126, 0.0
  %v1225 = vand.u32 %v1126, 2147483648
  %v1226 = vsel %vm1224, %v1225, %v1223
  %v1227 = vrsqrt.pop %v1127
  %v1228 = vmul.f32 %v1127, %v1227
  %vm1229 = vcmp.eq.f32.partialorder %v1127, inf
  %v1230 = vsel %vm1229, %v1127, %v1228
  %vm1231 = vcmp.eq.f32.partialorder %v1127, 0.0
  %v1232 = vand.u32 %v1127, 2147483648
  %v1233 = vsel %vm1231, %v1232, %v1230
  %v1234 = vrsqrt.pop %v1128
  %v1235 = vmul.f32 %v1128, %v1234
  %vm1236 = vcmp.eq.f32.partialorder %v1128, inf
  %v1237 = vsel %vm1236, %v1128, %v1235
  %vm1238 = vcmp.eq.f32.partialorder %v1128, 0.0
  %v1239 = vand.u32 %v1128, 2147483648
  %v1240 = vsel %vm1238, %v1239, %v1237
  %v1241 = vrsqrt.pop %v1129
  %v1242 = vmul.f32 %v1129, %v1241
  %vm1243 = vcmp.eq.f32.partialorder %v1129, inf
  %v1244 = vsel %vm1243, %v1129, %v1242
  %vm1245 = vcmp.eq.f32.partialorder %v1129, 0.0
  %v1246 = vand.u32 %v1129, 2147483648
  %v1247 = vsel %vm1245, %v1246, %v1244
  %v1248 = vrsqrt.pop %v1130
  %v1249 = vmul.f32 %v1130, %v1248
  %vm1250 = vcmp.eq.f32.partialorder %v1130, inf
  %v1251 = vsel %vm1250, %v1130, %v1249
  %vm1252 = vcmp.eq.f32.partialorder %v1130, 0.0
  %v1253 = vand.u32 %v1130, 2147483648
  %v1254 = vsel %vm1252, %v1253, %v1251
  %v1255 = vrsqrt.pop %v1131
  %v1256 = vmul.f32 %v1131, %v1255
  %vm1257 = vcmp.eq.f32.partialorder %v1131, inf
  %v1258 = vsel %vm1257, %v1131, %v1256
  %vm1259 = vcmp.eq.f32.partialorder %v1131, 0.0
  %v1260 = vand.u32 %v1131, 2147483648
  %v1261 = vsel %vm1259, %v1260, %v1258
  %v1262 = vrsqrt.pop %v1132
  %v1263 = vmul.f32 %v1132, %v1262
  %vm1264 = vcmp.eq.f32.partialorder %v1132, inf
  %v1265 = vsel %vm1264, %v1132, %v1263
  %vm1266 = vcmp.eq.f32.partialorder %v1132, 0.0
  %v1267 = vand.u32 %v1132, 2147483648
  %v1268 = vsel %vm1266, %v1267, %v1265
  %v1269 = vrsqrt.pop %v1133
  %v1270 = vmul.f32 %v1133, %v1269
  %vm1271 = vcmp.eq.f32.partialorder %v1133, inf
  %v1272 = vsel %vm1271, %v1133, %v1270
  %vm1273 = vcmp.eq.f32.partialorder %v1133, 0.0
  %v1274 = vand.u32 %v1133, 2147483648
  %v1275 = vsel %vm1273, %v1274, %v1272
  %v1276 = vrsqrt.pop %v1134
  %v1277 = vmul.f32 %v1134, %v1276
  %vm1278 = vcmp.eq.f32.partialorder %v1134, inf
  %v1279 = vsel %vm1278, %v1134, %v1277
  %vm1280 = vcmp.eq.f32.partialorder %v1134, 0.0
  %v1281 = vand.u32 %v1134, 2147483648
  %v1282 = vsel %vm1280, %v1281, %v1279
  %v1283 = vrsqrt.pop %v1135
  %v1284 = vmul.f32 %v1135, %v1283
  %vm1285 = vcmp.eq.f32.partialorder %v1135, inf
  %v1286 = vsel %vm1285, %v1135, %v1284
  %vm1287 = vcmp.eq.f32.partialorder %v1135, 0.0
  %v1288 = vand.u32 %v1135, 2147483648
  %v1289 = vsel %vm1287, %v1288, %v1286
  %v1290 = vrsqrt.pop %v1136
  %v1291 = vmul.f32 %v1136, %v1290
  %vm1292 = vcmp.eq.f32.partialorder %v1136, inf
  %v1293 = vsel %vm1292, %v1136, %v1291
  %vm1294 = vcmp.eq.f32.partialorder %v1136, 0.0
  %v1295 = vand.u32 %v1136, 2147483648
  %v1296 = vsel %vm1294, %v1295, %v1293
  %v1297 = vrsqrt.pop %v1137
  %v1298 = vmul.f32 %v1137, %v1297
  %vm1299 = vcmp.eq.f32.partialorder %v1137, inf
  %v1300 = vsel %vm1299, %v1137, %v1298
  %vm1301 = vcmp.eq.f32.partialorder %v1137, 0.0
  %v1302 = vand.u32 %v1137, 2147483648
  %v1303 = vsel %vm1301, %v1302, %v1300
  %v1304 = vrsqrt.pop %v1138
  %v1305 = vmul.f32 %v1138, %v1304
  %vm1306 = vcmp.eq.f32.partialorder %v1138, inf
  %v1307 = vsel %vm1306, %v1138, %v1305
  %vm1308 = vcmp.eq.f32.partialorder %v1138, 0.0
  %v1309 = vand.u32 %v1138, 2147483648
  %v1310 = vsel %vm1308, %v1309, %v1307
  %v1311 = vrsqrt.pop %v1139
  %v1312 = vmul.f32 %v1139, %v1311
  %vm1313 = vcmp.eq.f32.partialorder %v1139, inf
  %v1314 = vsel %vm1313, %v1139, %v1312
  %vm1315 = vcmp.eq.f32.partialorder %v1139, 0.0
  %v1316 = vand.u32 %v1139, 2147483648
  %v1317 = vsel %vm1315, %v1316, %v1314
  %v1318 = vrsqrt.pop %v1140
  %v1319 = vmul.f32 %v1140, %v1318
  %vm1320 = vcmp.eq.f32.partialorder %v1140, inf
  %v1321 = vsel %vm1320, %v1140, %v1319
  %vm1322 = vcmp.eq.f32.partialorder %v1140, 0.0
  %v1323 = vand.u32 %v1140, 2147483648
  %v1324 = vsel %vm1322, %v1323, %v1321
  %v1325 = vrsqrt.pop %v1141
  %v1326 = vmul.f32 %v1141, %v1325
  %vm1327 = vcmp.eq.f32.partialorder %v1141, inf
  %v1328 = vsel %vm1327, %v1141, %v1326
  %vm1329 = vcmp.eq.f32.partialorder %v1141, 0.0
  %v1330 = vand.u32 %v1141, 2147483648
  %v1331 = vsel %vm1329, %v1330, %v1328
  %v1332 = vrsqrt.pop %v1142
  %v1333 = vmul.f32 %v1142, %v1332
  %vm1334 = vcmp.eq.f32.partialorder %v1142, inf
  %v1335 = vsel %vm1334, %v1142, %v1333
  %vm1336 = vcmp.eq.f32.partialorder %v1142, 0.0
  %v1337 = vand.u32 %v1142, 2147483648
  %v1338 = vsel %vm1336, %v1337, %v1335
  %v1339 = vrsqrt.pop %v1143
  %v1340 = vmul.f32 %v1143, %v1339
  %vm1341 = vcmp.eq.f32.partialorder %v1143, inf
  %v1342 = vsel %vm1341, %v1143, %v1340
  %vm1343 = vcmp.eq.f32.partialorder %v1143, 0.0
  %v1344 = vand.u32 %v1143, 2147483648
  %v1345 = vsel %vm1343, %v1344, %v1342
  %v1346 = vrsqrt.pop %v1144
  %v1347 = vmul.f32 %v1144, %v1346
  %vm1348 = vcmp.eq.f32.partialorder %v1144, inf
  %v1349 = vsel %vm1348, %v1144, %v1347
  %vm1350 = vcmp.eq.f32.partialorder %v1144, 0.0
  %v1351 = vand.u32 %v1144, 2147483648
  %v1352 = vsel %vm1350, %v1351, %v1349
  %v1353 = vrsqrt.pop %v1145
  %v1354 = vmul.f32 %v1145, %v1353
  %vm1355 = vcmp.eq.f32.partialorder %v1145, inf
  %v1356 = vsel %vm1355, %v1145, %v1354
  %vm1357 = vcmp.eq.f32.partialorder %v1145, 0.0
  %v1358 = vand.u32 %v1145, 2147483648
  %v1359 = vsel %vm1357, %v1358, %v1356
  %v1360 = vrsqrt.pop %v1146
  %v1361 = vmul.f32 %v1146, %v1360
  %vm1362 = vcmp.eq.f32.partialorder %v1146, inf
  %v1363 = vsel %vm1362, %v1146, %v1361
  %vm1364 = vcmp.eq.f32.partialorder %v1146, 0.0
  %v1365 = vand.u32 %v1146, 2147483648
  %v1366 = vsel %vm1364, %v1365, %v1363
  %v1367 = vrsqrt.pop %v1147
  %v1368 = vmul.f32 %v1147, %v1367
  %vm1369 = vcmp.eq.f32.partialorder %v1147, inf
  %v1370 = vsel %vm1369, %v1147, %v1368
  %vm1371 = vcmp.eq.f32.partialorder %v1147, 0.0
  %v1372 = vand.u32 %v1147, 2147483648
  %v1373 = vsel %vm1371, %v1372, %v1370
  %v1374 = vrsqrt.pop %v1148
  %v1375 = vmul.f32 %v1148, %v1374
  %vm1376 = vcmp.eq.f32.partialorder %v1148, inf
  %v1377 = vsel %vm1376, %v1148, %v1375
  %vm1378 = vcmp.eq.f32.partialorder %v1148, 0.0
  %v1379 = vand.u32 %v1148, 2147483648
  %v1380 = vsel %vm1378, %v1379, %v1377
  %v1381 = vrsqrt.pop %v1149
  %v1382 = vmul.f32 %v1149, %v1381
  %vm1383 = vcmp.eq.f32.partialorder %v1149, inf
  %v1384 = vsel %vm1383, %v1149, %v1382
  %vm1385 = vcmp.eq.f32.partialorder %v1149, 0.0
  %v1386 = vand.u32 %v1149, 2147483648
  %v1387 = vsel %vm1385, %v1386, %v1384
  %v1388 = vrsqrt.pop %v1150
  %v1389 = vmul.f32 %v1150, %v1388
  %vm1390 = vcmp.eq.f32.partialorder %v1150, inf
  %v1391 = vsel %vm1390, %v1150, %v1389
  %vm1392 = vcmp.eq.f32.partialorder %v1150, 0.0
  %v1393 = vand.u32 %v1150, 2147483648
  %v1394 = vsel %vm1392, %v1393, %v1391
  %v1395 = vrsqrt.pop %v1151
  %v1396 = vmul.f32 %v1151, %v1395
  %vm1397 = vcmp.eq.f32.partialorder %v1151, inf
  %v1398 = vsel %vm1397, %v1151, %v1396
  %vm1399 = vcmp.eq.f32.partialorder %v1151, 0.0
  %v1400 = vand.u32 %v1151, 2147483648
  %v1401 = vsel %vm1399, %v1400, %v1398
  %v1402 = vrsqrt.pop %v1152
  %v1403 = vmul.f32 %v1152, %v1402
  %vm1404 = vcmp.eq.f32.partialorder %v1152, inf
  %v1405 = vsel %vm1404, %v1152, %v1403
  %vm1406 = vcmp.eq.f32.partialorder %v1152, 0.0
  %v1407 = vand.u32 %v1152, 2147483648
  %v1408 = vsel %vm1406, %v1407, %v1405
  %v1409 = vrsqrt.pop %v1153
  %v1410 = vmul.f32 %v1153, %v1409
  %vm1411 = vcmp.eq.f32.partialorder %v1153, inf
  %v1412 = vsel %vm1411, %v1153, %v1410
  %vm1413 = vcmp.eq.f32.partialorder %v1153, 0.0
  %v1414 = vand.u32 %v1153, 2147483648
  %v1415 = vsel %vm1413, %v1414, %v1412
  %v1416 = vrsqrt.pop %v1154
  %v1417 = vmul.f32 %v1154, %v1416
  %vm1418 = vcmp.eq.f32.partialorder %v1154, inf
  %v1419 = vsel %vm1418, %v1154, %v1417
  %vm1420 = vcmp.eq.f32.partialorder %v1154, 0.0
  %v1421 = vand.u32 %v1154, 2147483648
  %v1422 = vsel %vm1420, %v1421, %v1419
  %v1423 = vrsqrt.pop %v1155
  %v1424 = vmul.f32 %v1155, %v1423
  %vm1425 = vcmp.eq.f32.partialorder %v1155, inf
  %v1426 = vsel %vm1425, %v1155, %v1424
  %vm1427 = vcmp.eq.f32.partialorder %v1155, 0.0
  %v1428 = vand.u32 %v1155, 2147483648
  %v1429 = vsel %vm1427, %v1428, %v1426
  %v1430 = vrsqrt.pop %v1156
  %v1431 = vmul.f32 %v1156, %v1430
  %vm1432 = vcmp.eq.f32.partialorder %v1156, inf
  %v1433 = vsel %vm1432, %v1156, %v1431
  %vm1434 = vcmp.eq.f32.partialorder %v1156, 0.0
  %v1435 = vand.u32 %v1156, 2147483648
  %v1436 = vsel %vm1434, %v1435, %v1433
  %v1437 = vrsqrt.pop %v1157
  %v1438 = vmul.f32 %v1157, %v1437
  %vm1439 = vcmp.eq.f32.partialorder %v1157, inf
  %v1440 = vsel %vm1439, %v1157, %v1438
  %vm1441 = vcmp.eq.f32.partialorder %v1157, 0.0
  %v1442 = vand.u32 %v1157, 2147483648
  %v1443 = vsel %vm1441, %v1442, %v1440
  %v1444 = vrsqrt.pop %v1158
  %v1445 = vmul.f32 %v1158, %v1444
  %vm1446 = vcmp.eq.f32.partialorder %v1158, inf
  %v1447 = vsel %vm1446, %v1158, %v1445
  %vm1448 = vcmp.eq.f32.partialorder %v1158, 0.0
  %v1449 = vand.u32 %v1158, 2147483648
  %v1450 = vsel %vm1448, %v1449, %v1447
  %v1451 = vrsqrt.pop %v1159
  %v1452 = vmul.f32 %v1159, %v1451
  %vm1453 = vcmp.eq.f32.partialorder %v1159, inf
  %v1454 = vsel %vm1453, %v1159, %v1452
  %vm1455 = vcmp.eq.f32.partialorder %v1159, 0.0
  %v1456 = vand.u32 %v1159, 2147483648
  %v1457 = vsel %vm1455, %v1456, %v1454
  %v1458 = vrsqrt.pop %v1160
  %v1459 = vmul.f32 %v1160, %v1458
  %vm1460 = vcmp.eq.f32.partialorder %v1160, inf
  %v1461 = vsel %vm1460, %v1160, %v1459
  %vm1462 = vcmp.eq.f32.partialorder %v1160, 0.0
  %v1463 = vand.u32 %v1160, 2147483648
  %v1464 = vsel %vm1462, %v1463, %v1461
  %v1465 = vrsqrt.pop %v1161
  %v1466 = vmul.f32 %v1161, %v1465
  %vm1467 = vcmp.eq.f32.partialorder %v1161, inf
  %v1468 = vsel %vm1467, %v1161, %v1466
  %vm1469 = vcmp.eq.f32.partialorder %v1161, 0.0
  %v1470 = vand.u32 %v1161, 2147483648
  %v1471 = vsel %vm1469, %v1470, %v1468
  %v1472 = vrsqrt.pop %v1162
  %v1473 = vmul.f32 %v1162, %v1472
  %vm1474 = vcmp.eq.f32.partialorder %v1162, inf
  %v1475 = vsel %vm1474, %v1162, %v1473
  %vm1476 = vcmp.eq.f32.partialorder %v1162, 0.0
  %v1477 = vand.u32 %v1162, 2147483648
  %v1478 = vsel %vm1476, %v1477, %v1475
  %v1479 = vrsqrt.pop %v1163
  %v1480 = vmul.f32 %v1163, %v1479
  %vm1481 = vcmp.eq.f32.partialorder %v1163, inf
  %v1482 = vsel %vm1481, %v1163, %v1480
  %vm1483 = vcmp.eq.f32.partialorder %v1163, 0.0
  %v1484 = vand.u32 %v1163, 2147483648
  %v1485 = vsel %vm1483, %v1484, %v1482
  %v1486 = vrsqrt.pop %v1164
  %v1487 = vmul.f32 %v1164, %v1486
  %vm1488 = vcmp.eq.f32.partialorder %v1164, inf
  %v1489 = vsel %vm1488, %v1164, %v1487
  %vm1490 = vcmp.eq.f32.partialorder %v1164, 0.0
  %v1491 = vand.u32 %v1164, 2147483648
  %v1492 = vsel %vm1490, %v1491, %v1489
  %v1493 = vrsqrt.pop %v1165
  %v1494 = vmul.f32 %v1165, %v1493
  %vm1495 = vcmp.eq.f32.partialorder %v1165, inf
  %v1496 = vsel %vm1495, %v1165, %v1494
  %vm1497 = vcmp.eq.f32.partialorder %v1165, 0.0
  %v1498 = vand.u32 %v1165, 2147483648
  %v1499 = vsel %vm1497, %v1498, %v1496
  %v1500 = vrsqrt.pop %v1166
  %v1501 = vmul.f32 %v1166, %v1500
  %vm1502 = vcmp.eq.f32.partialorder %v1166, inf
  %v1503 = vsel %vm1502, %v1166, %v1501
  %vm1504 = vcmp.eq.f32.partialorder %v1166, 0.0
  %v1505 = vand.u32 %v1166, 2147483648
  %v1506 = vsel %vm1504, %v1505, %v1503
  %v1507 = vrsqrt.pop %v1167
  %v1508 = vmul.f32 %v1167, %v1507
  %vm1509 = vcmp.eq.f32.partialorder %v1167, inf
  %v1510 = vsel %vm1509, %v1167, %v1508
  %vm1511 = vcmp.eq.f32.partialorder %v1167, 0.0
  %v1512 = vand.u32 %v1167, 2147483648
  %v1513 = vsel %vm1511, %v1512, %v1510
  %v1514 = vrsqrt.pop %v1168
  %v1515 = vmul.f32 %v1168, %v1514
  %vm1516 = vcmp.eq.f32.partialorder %v1168, inf
  %v1517 = vsel %vm1516, %v1168, %v1515
  %vm1518 = vcmp.eq.f32.partialorder %v1168, 0.0
  %v1519 = vand.u32 %v1168, 2147483648
  %v1520 = vsel %vm1518, %v1519, %v1517
  %v1521 = vrsqrt.pop %v1169
  %v1522 = vmul.f32 %v1169, %v1521
  %vm1523 = vcmp.eq.f32.partialorder %v1169, inf
  %v1524 = vsel %vm1523, %v1169, %v1522
  %vm1525 = vcmp.eq.f32.partialorder %v1169, 0.0
  %v1526 = vand.u32 %v1169, 2147483648
  %v1527 = vsel %vm1525, %v1526, %v1524
  %v1528 = vrsqrt.pop %v1170
  %v1529 = vmul.f32 %v1170, %v1528
  %vm1530 = vcmp.eq.f32.partialorder %v1170, inf
  %v1531 = vsel %vm1530, %v1170, %v1529
  %vm1532 = vcmp.eq.f32.partialorder %v1170, 0.0
  %v1533 = vand.u32 %v1170, 2147483648
  %v1534 = vsel %vm1532, %v1533, %v1531
  %v1535 = vrsqrt.pop %v1171
  %v1536 = vmul.f32 %v1171, %v1535
  %vm1537 = vcmp.eq.f32.partialorder %v1171, inf
  %v1538 = vsel %vm1537, %v1171, %v1536
  %vm1539 = vcmp.eq.f32.partialorder %v1171, 0.0
  %v1540 = vand.u32 %v1171, 2147483648
  %v1541 = vsel %vm1539, %v1540, %v1538
  %v1542 = vrsqrt.pop %v1172
  %v1543 = vmul.f32 %v1172, %v1542
  %vm1544 = vcmp.eq.f32.partialorder %v1172, inf
  %v1545 = vsel %vm1544, %v1172, %v1543
  %vm1546 = vcmp.eq.f32.partialorder %v1172, 0.0
  %v1547 = vand.u32 %v1172, 2147483648
  %v1548 = vsel %vm1546, %v1547, %v1545
  %v1549 = vrsqrt.pop %v1173
  %v1550 = vmul.f32 %v1173, %v1549
  %vm1551 = vcmp.eq.f32.partialorder %v1173, inf
  %v1552 = vsel %vm1551, %v1173, %v1550
  %vm1553 = vcmp.eq.f32.partialorder %v1173, 0.0
  %v1554 = vand.u32 %v1173, 2147483648
  %v1555 = vsel %vm1553, %v1554, %v1552
  %v1556 = vrsqrt.pop %v1174
  %v1557 = vmul.f32 %v1174, %v1556
  %vm1558 = vcmp.eq.f32.partialorder %v1174, inf
  %v1559 = vsel %vm1558, %v1174, %v1557
  %vm1560 = vcmp.eq.f32.partialorder %v1174, 0.0
  %v1561 = vand.u32 %v1174, 2147483648
  %v1562 = vsel %vm1560, %v1561, %v1559
  %v1563 = vrsqrt.pop %v1175
  %v1564 = vmul.f32 %v1175, %v1563
  %vm1565 = vcmp.eq.f32.partialorder %v1175, inf
  %v1566 = vsel %vm1565, %v1175, %v1564
  %vm1567 = vcmp.eq.f32.partialorder %v1175, 0.0
  %v1568 = vand.u32 %v1175, 2147483648
  %v1569 = vsel %vm1567, %v1568, %v1566
  %v1570 = vrsqrt.pop %v1176
  %v1571 = vmul.f32 %v1176, %v1570
  %vm1572 = vcmp.eq.f32.partialorder %v1176, inf
  %v1573 = vsel %vm1572, %v1176, %v1571
  %vm1574 = vcmp.eq.f32.partialorder %v1176, 0.0
  %v1575 = vand.u32 %v1176, 2147483648
  %v1576 = vsel %vm1574, %v1575, %v1573
  %v1577 = vrsqrt.pop %v1177
  %v1578 = vmul.f32 %v1177, %v1577
  %vm1579 = vcmp.eq.f32.partialorder %v1177, inf
  %v1580 = vsel %vm1579, %v1177, %v1578
  %vm1581 = vcmp.eq.f32.partialorder %v1177, 0.0
  %v1582 = vand.u32 %v1177, 2147483648
  %v1583 = vsel %vm1581, %v1582, %v1580
  %v1584 = vrsqrt.pop %v1178
  %v1585 = vmul.f32 %v1178, %v1584
  %vm1586 = vcmp.eq.f32.partialorder %v1178, inf
  %v1587 = vsel %vm1586, %v1178, %v1585
  %vm1588 = vcmp.eq.f32.partialorder %v1178, 0.0
  %v1589 = vand.u32 %v1178, 2147483648
  %v1590 = vsel %vm1588, %v1589, %v1587
  %v1591 = vrsqrt.pop %v1179
  %v1592 = vmul.f32 %v1179, %v1591
  %vm1593 = vcmp.eq.f32.partialorder %v1179, inf
  %v1594 = vsel %vm1593, %v1179, %v1592
  %vm1595 = vcmp.eq.f32.partialorder %v1179, 0.0
  %v1596 = vand.u32 %v1179, 2147483648
  %v1597 = vsel %vm1595, %v1596, %v1594
  %v1598 = vrsqrt.pop %v1180
  %v1599 = vmul.f32 %v1180, %v1598
  %vm1600 = vcmp.eq.f32.partialorder %v1180, inf
  %v1601 = vsel %vm1600, %v1180, %v1599
  %vm1602 = vcmp.eq.f32.partialorder %v1180, 0.0
  %v1603 = vand.u32 %v1180, 2147483648
  %v1604 = vsel %vm1602, %v1603, %v1601
  %v1605 = vrsqrt.pop %v1181
  %v1606 = vmul.f32 %v1181, %v1605
  %vm1607 = vcmp.eq.f32.partialorder %v1181, inf
  %v1608 = vsel %vm1607, %v1181, %v1606
  %vm1609 = vcmp.eq.f32.partialorder %v1181, 0.0
  %v1610 = vand.u32 %v1181, 2147483648
  %v1611 = vsel %vm1609, %v1610, %v1608
  %v1612 = vrsqrt.pop %v1182
  %v1613 = vmul.f32 %v1182, %v1612
  %vm1614 = vcmp.eq.f32.partialorder %v1182, inf
  %v1615 = vsel %vm1614, %v1182, %v1613
  %vm1616 = vcmp.eq.f32.partialorder %v1182, 0.0
  %v1617 = vand.u32 %v1182, 2147483648
  %v1618 = vsel %vm1616, %v1617, %v1615
  %v1619 = vrsqrt.pop %v1183
  %v1620 = vmul.f32 %v1183, %v1619
  %vm1621 = vcmp.eq.f32.partialorder %v1183, inf
  %v1622 = vsel %vm1621, %v1183, %v1620
  %vm1623 = vcmp.eq.f32.partialorder %v1183, 0.0
  %v1624 = vand.u32 %v1183, 2147483648
  %v1625 = vsel %vm1623, %v1624, %v1622
  %v1626 = vrsqrt.pop %v1184
  %v1627 = vmul.f32 %v1184, %v1626
  %vm1628 = vcmp.eq.f32.partialorder %v1184, inf
  %v1629 = vsel %vm1628, %v1184, %v1627
  %vm1630 = vcmp.eq.f32.partialorder %v1184, 0.0
  %v1631 = vand.u32 %v1184, 2147483648
  %v1632 = vsel %vm1630, %v1631, %v1629
  %v1633 = vmul.f32 %v1121, %v1191
  %v1634 = vmul.f32 %v1122, %v1198
  %v1635 = vmul.f32 %v1123, %v1205
  %v1636 = vmul.f32 %v1124, %v1212
  %v1637 = vmul.f32 %v1125, %v1219
  %v1638 = vmul.f32 %v1126, %v1226
  %v1639 = vmul.f32 %v1127, %v1233
  %v1640 = vmul.f32 %v1128, %v1240
  %v1641 = vmul.f32 %v1129, %v1247
  %v1642 = vmul.f32 %v1130, %v1254
  %v1643 = vmul.f32 %v1131, %v1261
  %v1644 = vmul.f32 %v1132, %v1268
  %v1645 = vmul.f32 %v1133, %v1275
  %v1646 = vmul.f32 %v1134, %v1282
  %v1647 = vmul.f32 %v1135, %v1289
  %v1648 = vmul.f32 %v1136, %v1296
  %v1649 = vmul.f32 %v1137, %v1303
  %v1650 = vmul.f32 %v1138, %v1310
  %v1651 = vmul.f32 %v1139, %v1317
  %v1652 = vmul.f32 %v1140, %v1324
  %v1653 = vmul.f32 %v1141, %v1331
  %v1654 = vmul.f32 %v1142, %v1338
  %v1655 = vmul.f32 %v1143, %v1345
  %v1656 = vmul.f32 %v1144, %v1352
  %v1657 = vmul.f32 %v1145, %v1359
  %v1658 = vmul.f32 %v1146, %v1366
  %v1659 = vmul.f32 %v1147, %v1373
  %v1660 = vmul.f32 %v1148, %v1380
  %v1661 = vmul.f32 %v1149, %v1387
  %v1662 = vmul.f32 %v1150, %v1394
  %v1663 = vmul.f32 %v1151, %v1401
  %v1664 = vmul.f32 %v1152, %v1408
  %v1665 = vmul.f32 %v1153, %v1415
  %v1666 = vmul.f32 %v1154, %v1422
  %v1667 = vmul.f32 %v1155, %v1429
  %v1668 = vmul.f32 %v1156, %v1436
  %v1669 = vmul.f32 %v1157, %v1443
  %v1670 = vmul.f32 %v1158, %v1450
  %v1671 = vmul.f32 %v1159, %v1457
  %v1672 = vmul.f32 %v1160, %v1464
  %v1673 = vmul.f32 %v1161, %v1471
  %v1674 = vmul.f32 %v1162, %v1478
  %v1675 = vmul.f32 %v1163, %v1485
  %v1676 = vmul.f32 %v1164, %v1492
  %v1677 = vmul.f32 %v1165, %v1499
  %v1678 = vmul.f32 %v1166, %v1506
  %v1679 = vmul.f32 %v1167, %v1513
  %v1680 = vmul.f32 %v1168, %v1520
  %v1681 = vmul.f32 %v1169, %v1527
  %v1682 = vmul.f32 %v1170, %v1534
  %v1683 = vmul.f32 %v1171, %v1541
  %v1684 = vmul.f32 %v1172, %v1548
  %v1685 = vmul.f32 %v1173, %v1555
  %v1686 = vmul.f32 %v1174, %v1562
  %v1687 = vmul.f32 %v1175, %v1569
  %v1688 = vmul.f32 %v1176, %v1576
  %v1689 = vmul.f32 %v1177, %v1583
  %v1690 = vmul.f32 %v1178, %v1590
  %v1691 = vmul.f32 %v1179, %v1597
  %v1692 = vmul.f32 %v1180, %v1604
  %v1693 = vmul.f32 %v1181, %v1611
  %v1694 = vmul.f32 %v1182, %v1618
  %v1695 = vmul.f32 %v1183, %v1625
  %v1696 = vmul.f32 %v1184, %v1632
  %v1697 = vmul.f32 %v480, %v1633
  %v1698 = vmul.f32 %v481, %v1634
  %v1699 = vmul.f32 %v482, %v1635
  %v1700 = vmul.f32 %v483, %v1636
  %v1701 = vmul.f32 %v484, %v1637
  %v1702 = vmul.f32 %v485, %v1638
  %v1703 = vmul.f32 %v486, %v1639
  %v1704 = vmul.f32 %v487, %v1640
  %v1705 = vmul.f32 %v488, %v1641
  %v1706 = vmul.f32 %v489, %v1642
  %v1707 = vmul.f32 %v490, %v1643
  %v1708 = vmul.f32 %v491, %v1644
  %v1709 = vmul.f32 %v492, %v1645
  %v1710 = vmul.f32 %v493, %v1646
  %v1711 = vmul.f32 %v494, %v1647
  %v1712 = vmul.f32 %v495, %v1648
  %v1713 = vmul.f32 %v496, %v1649
  %v1714 = vmul.f32 %v497, %v1650
  %v1715 = vmul.f32 %v498, %v1651
  %v1716 = vmul.f32 %v499, %v1652
  %v1717 = vmul.f32 %v500, %v1653
  %v1718 = vmul.f32 %v501, %v1654
  %v1719 = vmul.f32 %v502, %v1655
  %v1720 = vmul.f32 %v503, %v1656
  %v1721 = vmul.f32 %v504, %v1657
  %v1722 = vmul.f32 %v505, %v1658
  %v1723 = vmul.f32 %v506, %v1659
  %v1724 = vmul.f32 %v507, %v1660
  %v1725 = vmul.f32 %v508, %v1661
  %v1726 = vmul.f32 %v509, %v1662
  %v1727 = vmul.f32 %v510, %v1663
  %v1728 = vmul.f32 %v511, %v1664
  %v1729 = vmul.f32 %v512, %v1665
  %v1730 = vmul.f32 %v513, %v1666
  %v1731 = vmul.f32 %v514, %v1667
  %v1732 = vmul.f32 %v515, %v1668
  %v1733 = vmul.f32 %v516, %v1669
  %v1734 = vmul.f32 %v517, %v1670
  %v1735 = vmul.f32 %v518, %v1671
  %v1736 = vmul.f32 %v519, %v1672
  %v1737 = vmul.f32 %v520, %v1673
  %v1738 = vmul.f32 %v521, %v1674
  %v1739 = vmul.f32 %v522, %v1675
  %v1740 = vmul.f32 %v523, %v1676
  %v1741 = vmul.f32 %v524, %v1677
  %v1742 = vmul.f32 %v525, %v1678
  %v1743 = vmul.f32 %v526, %v1679
  %v1744 = vmul.f32 %v527, %v1680
  %v1745 = vmul.f32 %v528, %v1681
  %v1746 = vmul.f32 %v529, %v1682
  %v1747 = vmul.f32 %v530, %v1683
  %v1748 = vmul.f32 %v531, %v1684
  %v1749 = vmul.f32 %v532, %v1685
  %v1750 = vmul.f32 %v533, %v1686
  %v1751 = vmul.f32 %v534, %v1687
  %v1752 = vmul.f32 %v535, %v1688
  %v1753 = vmul.f32 %v536, %v1689
  %v1754 = vmul.f32 %v537, %v1690
  %v1755 = vmul.f32 %v538, %v1691
  %v1756 = vmul.f32 %v539, %v1692
  %v1757 = vmul.f32 %v540, %v1693
  %v1758 = vmul.f32 %v541, %v1694
  %v1759 = vmul.f32 %v542, %v1695
  %v1760 = vmul.f32 %v543, %v1696
  %1761 = vst [vmem:[%s3] sm:$0xff] %v1697
  %1762 = vst [vmem:[%s3 + $0x8] sm:$0xff] %v1698
  %1763 = vst [vmem:[%s3 + $0x10] sm:$0xff] %v1699
  %1764 = vst [vmem:[%s3 + $0x18] sm:$0xff] %v1700
  %1765 = vst [vmem:[%s3 + $0x20] sm:$0xff] %v1701
  %1766 = vst [vmem:[%s3 + $0x28] sm:$0xff] %v1702
  %1767 = vst [vmem:[%s3 + $0x30] sm:$0xff] %v1703
  %1768 = vst [vmem:[%s3 + $0x38] sm:$0xff] %v1704
  %1769 = vst [vmem:[%s3 + $0x40] sm:$0xff] %v1705
  %1770 = vst [vmem:[%s3 + $0x48] sm:$0xff] %v1706
  %1771 = vst [vmem:[%s3 + $0x50] sm:$0xff] %v1707
  %1772 = vst [vmem:[%s3 + $0x58] sm:$0xff] %v1708
  %1773 = vst [vmem:[%s3 + $0x60] sm:$0xff] %v1709
  %1774 = vst [vmem:[%s3 + $0x68] sm:$0xff] %v1710
  %1775 = vst [vmem:[%s3 + $0x70] sm:$0xff] %v1711
  %1776 = vst [vmem:[%s3 + $0x78] sm:$0xff] %v1712
  %1777 = vst [vmem:[%s3 + $0x80] sm:$0xff] %v1713
  %1778 = vst [vmem:[%s3 + $0x88] sm:$0xff] %v1714
  %1779 = vst [vmem:[%s3 + $0x90] sm:$0xff] %v1715
  %1780 = vst [vmem:[%s3 + $0x98] sm:$0xff] %v1716
  %1781 = vst [vmem:[%s3 + $0xa0] sm:$0xff] %v1717
  %1782 = vst [vmem:[%s3 + $0xa8] sm:$0xff] %v1718
  %1783 = vst [vmem:[%s3 + $0xb0] sm:$0xff] %v1719
  %1784 = vst [vmem:[%s3 + $0xb8] sm:$0xff] %v1720
  %1785 = vst [vmem:[%s3 + $0xc0] sm:$0xff] %v1721
  %1786 = vst [vmem:[%s3 + $0xc8] sm:$0xff] %v1722
  %1787 = vst [vmem:[%s3 + $0xd0] sm:$0xff] %v1723
  %1788 = vst [vmem:[%s3 + $0xd8] sm:$0xff] %v1724
  %1789 = vst [vmem:[%s3 + $0xe0] sm:$0xff] %v1725
  %1790 = vst [vmem:[%s3 + $0xe8] sm:$0xff] %v1726
  %1791 = vst [vmem:[%s3 + $0xf0] sm:$0xff] %v1727
  %1792 = vst [vmem:[%s3 + $0xf8] sm:$0xff] %v1728
  %1793 = vst [vmem:[%s3 + $0x100] sm:$0xff] %v1729
  %1794 = vst [vmem:[%s3 + $0x108] sm:$0xff] %v1730
  %1795 = vst [vmem:[%s3 + $0x110] sm:$0xff] %v1731
  %1796 = vst [vmem:[%s3 + $0x118] sm:$0xff] %v1732
  %1797 = vst [vmem:[%s3 + $0x120] sm:$0xff] %v1733
  %1798 = vst [vmem:[%s3 + $0x128] sm:$0xff] %v1734
  %1799 = vst [vmem:[%s3 + $0x130] sm:$0xff] %v1735
  %1800 = vst [vmem:[%s3 + $0x138] sm:$0xff] %v1736
  %1801 = vst [vmem:[%s3 + $0x140] sm:$0xff] %v1737
  %1802 = vst [vmem:[%s3 + $0x148] sm:$0xff] %v1738
  %1803 = vst [vmem:[%s3 + $0x150] sm:$0xff] %v1739
  %1804 = vst [vmem:[%s3 + $0x158] sm:$0xff] %v1740
  %1805 = vst [vmem:[%s3 + $0x160] sm:$0xff] %v1741
  %1806 = vst [vmem:[%s3 + $0x168] sm:$0xff] %v1742
  %1807 = vst [vmem:[%s3 + $0x170] sm:$0xff] %v1743
  %1808 = vst [vmem:[%s3 + $0x178] sm:$0xff] %v1744
  %1809 = vst [vmem:[%s3 + $0x180] sm:$0xff] %v1745
  %1810 = vst [vmem:[%s3 + $0x188] sm:$0xff] %v1746
  %1811 = vst [vmem:[%s3 + $0x190] sm:$0xff] %v1747
  %1812 = vst [vmem:[%s3 + $0x198] sm:$0xff] %v1748
  %1813 = vst [vmem:[%s3 + $0x1a0] sm:$0xff] %v1749
  %1814 = vst [vmem:[%s3 + $0x1a8] sm:$0xff] %v1750
  %1815 = vst [vmem:[%s3 + $0x1b0] sm:$0xff] %v1751
  %1816 = vst [vmem:[%s3 + $0x1b8] sm:$0xff] %v1752
  %1817 = vst [vmem:[%s3 + $0x1c0] sm:$0xff] %v1753
  %1818 = vst [vmem:[%s3 + $0x1c8] sm:$0xff] %v1754
  %1819 = vst [vmem:[%s3 + $0x1d0] sm:$0xff] %v1755
  %1820 = vst [vmem:[%s3 + $0x1d8] sm:$0xff] %v1756
  %1821 = vst [vmem:[%s3 + $0x1e0] sm:$0xff] %v1757
  %1822 = vst [vmem:[%s3 + $0x1e8] sm:$0xff] %v1758
  %1823 = vst [vmem:[%s3 + $0x1f0] sm:$0xff] %v1759
  %1824 = vst [vmem:[%s3 + $0x1f8] sm:$0xff] %v1760
  // Predicated region
  $region14: #{crnm_forward.2} parent=0 // pred_check
    _
  $region15: #{crnm_forward.2} parent=0 // pred_check_branch
    %1826 = sbr.rel (0) target = $region17
  $region16: #{crnm_forward.2} parent=0 // pred_region
    _
  $region17: #{crnm_forward.2} parent=0 // pred_fallthru
    _
  // Predicated region
  $region18: #{crnm_forward.2} parent=0 // pred_check
    _
  $region19: #{crnm_forward.2} parent=0 // pred_check_branch
    %1828 = sbr.rel (0) target = $region21
  $region20: #{crnm_forward.2} parent=0 // pred_region
    _
  $region21: #{crnm_forward.2} parent=0 // pred_fallthru
    _

// kernel: crnm_forward.3
$region0: #{crnm_forward.3}
  #allocation0 [shape = 'u32[]', space=smem, size = 0x4, offset = 0x4, fixed_abs, tag = 'smem constant byte address 0x4 - core index']
  #allocation1 [shape = 'u32[144,128]{1,0:T(1,128)}', space=vmem, size = 0x12000, scoped, tag = 'internal scratch']
  #allocation2 [shape = 'f32[15,16,2,128]{3,2,1,0:T(2,128)}', space=vmem, size = 0x3c000, scoped, tag = 'scratch operand']
  #allocation4 [shape = 's32[]', space=sflag, size = 0x4, offset = 0, fixed_abs, tag = 'sflag constant byte address 0x0 - dummy sync flag']
  %s0 = inlined_call_operand.vmem [shape: f32[16,16,2,128], index: 0, kind: input, shape index: {}]
  %s1 = inlined_call_operand.vmem [shape: f32[7,7,2,128], index: 1, kind: output, shape index: {}]
  %s2 = sld [smem:[#allocation0]]
  $region45: #{crnm_forward.3} parent=0
    _
  %s4 = ssub.s32 1, %s2
  %s5 = scalar_select 0, %s4, %s2
  %s6 = smul.u32 0, 14
  $region2: #{crnm_forward.3} parent=0
    #allocation3 [shape = 's32[1]{0}', space=sflag, size = 0x4, scoped, tag = 'scoped memory for crnm_forward.3']
    %s7 = smul.u32 %s6, 32
    %s8 = scalar_lea.vmem %s0, %s7
    %p10 = scmp.lt.u32.totalorder 480, 8
    %p11 = pneg %p10
    // Predicated region
    $region3: #{crnm_forward.3} parent=2 // pred_check
      _
    $region4: #{crnm_forward.3} parent=2 // pred_check_branch
      %13 = sbr.rel (%p10) target = $region6
    $region5: #{crnm_forward.3} parent=2 // pred_region
      %s28 = sand.u32 480, 7
      %p29 = scmp.eq.s32.totalorder %s28, 0
      // Predicated region
      $region18: #{crnm_forward.3} parent=5 // pred_check
        %p30 = pneg %p29
      $region19: #{crnm_forward.3} parent=5 // pred_check_branch
        %32 = sbr.rel (%p30) target = $region21
      $region20: #{crnm_forward.3} parent=5 // pred_region
        loop: start=0, step=1, limit=1
        $region22: #{crnm_forward.3} parent=20 // loop_pre_header
          _
        $region23: #{crnm_forward.3} parent=20 // loop_header
          %s34 = sphi 0, %s38
          %p35 = scmp.ge.s32.totalorder %s34, 1
          %s39 = sphi %s8, %s8
          %s40 = sphi [#allocation2], [#allocation2]
        $region24: #{crnm_forward.3} parent=20 // loop_header_branch
          %37 = sbr.rel (%p35) target = $region28
        $region25: #{crnm_forward.3} parent=20 // loop_body
          %v41 = vld [vmem:[%s39] sm:$0xff]
          %42 = vst [vmem:[%s40] sm:$0xff] %v41
          %v43 = vld [vmem:[%s39 + $0x8] sm:$0xff]
          %44 = vst [vmem:[%s40 + $0x8] sm:$0xff] %v43
          %v45 = vld [vmem:[%s39 + $0x10] sm:$0xff]
          %46 = vst [vmem:[%s40 + $0x10] sm:$0xff] %v45
          %v47 = vld [vmem:[%s39 + $0x18] sm:$0xff]
          %48 = vst [vmem:[%s40 + $0x18] sm:$0xff] %v47
          %v49 = vld [vmem:[%s39 + $0x20] sm:$0xff]
          %50 = vst [vmem:[%s40 + $0x20] sm:$0xff] %v49
          %v51 = vld [vmem:[%s39 + $0x28] sm:$0xff]
          %52 = vst [vmem:[%s40 + $0x28] sm:$0xff] %v51
          %v53 = vld [vmem:[%s39 + $0x30] sm:$0xff]
          %54 = vst [vmem:[%s40 + $0x30] sm:$0xff] %v53
          %v55 = vld [vmem:[%s39 + $0x38] sm:$0xff]
          %56 = vst [vmem:[%s40 + $0x38] sm:$0xff] %v55
          %v57 = vld [vmem:[%s39 + $0x40] sm:$0xff]
          %58 = vst [vmem:[%s40 + $0x40] sm:$0xff] %v57
          %v59 = vld [vmem:[%s39 + $0x48] sm:$0xff]
          %60 = vst [vmem:[%s40 + $0x48] sm:$0xff] %v59
          %v61 = vld [vmem:[%s39 + $0x50] sm:$0xff]
          %62 = vst [vmem:[%s40 + $0x50] sm:$0xff] %v61
          %v63 = vld [vmem:[%s39 + $0x58] sm:$0xff]
          %64 = vst [vmem:[%s40 + $0x58] sm:$0xff] %v63
          %v65 = vld [vmem:[%s39 + $0x60] sm:$0xff]
          %66 = vst [vmem:[%s40 + $0x60] sm:$0xff] %v65
          %v67 = vld [vmem:[%s39 + $0x68] sm:$0xff]
          %68 = vst [vmem:[%s40 + $0x68] sm:$0xff] %v67
          %v69 = vld [vmem:[%s39 + $0x70] sm:$0xff]
          %70 = vst [vmem:[%s40 + $0x70] sm:$0xff] %v69
          %v71 = vld [vmem:[%s39 + $0x78] sm:$0xff]
          %72 = vst [vmem:[%s40 + $0x78] sm:$0xff] %v71
          %v73 = vld [vmem:[%s39 + $0x80] sm:$0xff]
          %74 = vst [vmem:[%s40 + $0x80] sm:$0xff] %v73
          %v75 = vld [vmem:[%s39 + $0x88] sm:$0xff]
          %76 = vst [vmem:[%s40 + $0x88] sm:$0xff] %v75
          %v77 = vld [vmem:[%s39 + $0x90] sm:$0xff]
          %78 = vst [vmem:[%s40 + $0x90] sm:$0xff] %v77
          %v79 = vld [vmem:[%s39 + $0x98] sm:$0xff]
          %80 = vst [vmem:[%s40 + $0x98] sm:$0xff] %v79
          %v81 = vld [vmem:[%s39 + $0xa0] sm:$0xff]
          %82 = vst [vmem:[%s40 + $0xa0] sm:$0xff] %v81
          %v83 = vld [vmem:[%s39 + $0xa8] sm:$0xff]
          %84 = vst [vmem:[%s40 + $0xa8] sm:$0xff] %v83
          %v85 = vld [vmem:[%s39 + $0xb0] sm:$0xff]
          %86 = vst [vmem:[%s40 + $0xb0] sm:$0xff] %v85
          %v87 = vld [vmem:[%s39 + $0xb8] sm:$0xff]
          %88 = vst [vmem:[%s40 + $0xb8] sm:$0xff] %v87
          %v89 = vld [vmem:[%s39 + $0xc0] sm:$0xff]
          %90 = vst [vmem:[%s40 + $0xc0] sm:$0xff] %v89
          %v91 = vld [vmem:[%s39 + $0xc8] sm:$0xff]
          %92 = vst [vmem:[%s40 + $0xc8] sm:$0xff] %v91
          %v93 = vld [vmem:[%s39 + $0xd0] sm:$0xff]
          %94 = vst [vmem:[%s40 + $0xd0] sm:$0xff] %v93
          %v95 = vld [vmem:[%s39 + $0xd8] sm:$0xff]
          %96 = vst [vmem:[%s40 + $0xd8] sm:$0xff] %v95
          %v97 = vld [vmem:[%s39 + $0xe0] sm:$0xff]
          %98 = vst [vmem:[%s40 + $0xe0] sm:$0xff] %v97
          %v99 = vld [vmem:[%s39 + $0xe8] sm:$0xff]
          %100 = vst [vmem:[%s40 + $0xe8] sm:$0xff] %v99
          %v101 = vld [vmem:[%s39 + $0xf0] sm:$0xff]
          %102 = vst [vmem:[%s40 + $0xf0] sm:$0xff] %v101
          %v103 = vld [vmem:[%s39 + $0xf8] sm:$0xff]
          %104 = vst [vmem:[%s40 + $0xf8] sm:$0xff] %v103
          %v105 = vld [vmem:[%s39 + $0x100] sm:$0xff]
          %106 = vst [vmem:[%s40 + $0x100] sm:$0xff] %v105
          %v107 = vld [vmem:[%s39 + $0x108] sm:$0xff]
          %108 = vst [vmem:[%s40 + $0x108] sm:$0xff] %v107
          %v109 = vld [vmem:[%s39 + $0x110] sm:$0xff]
          %110 = vst [vmem:[%s40 + $0x110] sm:$0xff] %v109
          %v111 = vld [vmem:[%s39 + $0x118] sm:$0xff]
          %112 = vst [vmem:[%s40 + $0x118] sm:$0xff] %v111
          %v113 = vld [vmem:[%s39 + $0x120] sm:$0xff]
          %114 = vst [vmem:[%s40 + $0x120] sm:$0xff] %v113
          %v115 = vld [vmem:[%s39 + $0x128] sm:$0xff]
          %116 = vst [vmem:[%s40 + $0x128] sm:$0xff] %v115
          %v117 = vld [vmem:[%s39 + $0x130] sm:$0xff]
          %118 = vst [vmem:[%s40 + $0x130] sm:$0xff] %v117
          %v119 = vld [vmem:[%s39 + $0x138] sm:$0xff]
          %120 = vst [vmem:[%s40 + $0x138] sm:$0xff] %v119
          %v121 = vld [vmem:[%s39 + $0x140] sm:$0xff]
          %122 = vst [vmem:[%s40 + $0x140] sm:$0xff] %v121
          %v123 = vld [vmem:[%s39 + $0x148] sm:$0xff]
          %124 = vst [vmem:[%s40 + $0x148] sm:$0xff] %v123
          %v125 = vld [vmem:[%s39 + $0x150] sm:$0xff]
          %126 = vst [vmem:[%s40 + $0x150] sm:$0xff] %v125
          %v127 = vld [vmem:[%s39 + $0x158] sm:$0xff]
          %128 = vst [vmem:[%s40 + $0x158] sm:$0xff] %v127
          %v129 = vld [vmem:[%s39 + $0x160] sm:$0xff]
          %130 = vst [vmem:[%s40 + $0x160] sm:$0xff] %v129
          %v131 = vld [vmem:[%s39 + $0x168] sm:$0xff]
          %132 = vst [vmem:[%s40 + $0x168] sm:$0xff] %v131
          %v133 = vld [vmem:[%s39 + $0x170] sm:$0xff]
          %134 = vst [vmem:[%s40 + $0x170] sm:$0xff] %v133
          %v135 = vld [vmem:[%s39 + $0x178] sm:$0xff]
          %136 = vst [vmem:[%s40 + $0x178] sm:$0xff] %v135
          %v137 = vld [vmem:[%s39 + $0x180] sm:$0xff]
          %138 = vst [vmem:[%s40 + $0x180] sm:$0xff] %v137
          %v139 = vld [vmem:[%s39 + $0x188] sm:$0xff]
          %140 = vst [vmem:[%s40 + $0x188] sm:$0xff] %v139
          %v141 = vld [vmem:[%s39 + $0x190] sm:$0xff]
          %142 = vst [vmem:[%s40 + $0x190] sm:$0xff] %v141
          %v143 = vld [vmem:[%s39 + $0x198] sm:$0xff]
          %144 = vst [vmem:[%s40 + $0x198] sm:$0xff] %v143
          %v145 = vld [vmem:[%s39 + $0x1a0] sm:$0xff]
          %146 = vst [vmem:[%s40 + $0x1a0] sm:$0xff] %v145
          %v147 = vld [vmem:[%s39 + $0x1a8] sm:$0xff]
          %148 = vst [vmem:[%s40 + $0x1a8] sm:$0xff] %v147
          %v149 = vld [vmem:[%s39 + $0x1b0] sm:$0xff]
          %150 = vst [vmem:[%s40 + $0x1b0] sm:$0xff] %v149
          %v151 = vld [vmem:[%s39 + $0x1b8] sm:$0xff]
          %152 = vst [vmem:[%s40 + $0x1b8] sm:$0xff] %v151
          %v153 = vld [vmem:[%s39 + $0x1c0] sm:$0xff]
          %154 = vst [vmem:[%s40 + $0x1c0] sm:$0xff] %v153
          %v155 = vld [vmem:[%s39 + $0x1c8] sm:$0xff]
          %156 = vst [vmem:[%s40 + $0x1c8] sm:$0xff] %v155
          %v157 = vld [vmem:[%s39 + $0x1d0] sm:$0xff]
          %158 = vst [vmem:[%s40 + $0x1d0] sm:$0xff] %v157
          %v159 = vld [vmem:[%s39 + $0x1d8] sm:$0xff]
          %160 = vst [vmem:[%s40 + $0x1d8] sm:$0xff] %v159
        $region26: #{crnm_forward.3} parent=20 // loop_footer
          %s38 = sadd.s32 1, %s34
        $region27: #{crnm_forward.3} parent=20 // loop_footer_branch
          %33 = sbr.rel target = $region23
        $region28: #{crnm_forward.3} parent=20 // loop_exit
          _
      $region21: #{crnm_forward.3} parent=5 // pred_fallthru
        _
      %p161 = pneg %p29
      // Predicated region
      $region29: #{crnm_forward.3} parent=5 // pred_check
        _
      $region30: #{crnm_forward.3} parent=5 // pred_check_branch
        %163 = sbr.rel (%p29) target = $region32
      $region31: #{crnm_forward.3} parent=5 // pred_region
        %s164 = sand.u32 480, 7
      $region32: #{crnm_forward.3} parent=5 // pred_fallthru
        _
    $region6: #{crnm_forward.3} parent=2 // pred_fallthru
      _
    // Predicated region
    $region7: #{crnm_forward.3} parent=2 // pred_check
      %p14 = pneg %p10
    $region8: #{crnm_forward.3} parent=2 // pred_check_branch
      %16 = sbr.rel (%p14) target = $region10
    $region9: #{crnm_forward.3} parent=2 // pred_region
      %s17 = sshllo.u32 0, 480
      loop: start=0, step=1, limit=1
      $region11: #{crnm_forward.3} parent=9 // loop_pre_header
        _
      $region12: #{crnm_forward.3} parent=9 // loop_header
        %s19 = sphi 0, %s23
        %p20 = scmp.ge.s32.totalorder %s19, 1
        %s24 = sphi %s8, %s8
        %s25 = sphi [#allocation2], [#allocation2]
      $region13: #{crnm_forward.3} parent=9 // loop_header_branch
        %22 = sbr.rel (%p20) target = $region17
      $region14: #{crnm_forward.3} parent=9 // loop_body
        %v26 = vld [vmem:[%s24] sm:%s17]
        %27 = vst [vmem:[%s25] sm:%s17] %v26
      $region15: #{crnm_forward.3} parent=9 // loop_footer
        %s23 = sadd.s32 1, %s19
      $region16: #{crnm_forward.3} parent=9 // loop_footer_branch
        %18 = sbr.rel target = $region12
      $region17: #{crnm_forward.3} parent=9 // loop_exit
        _
    $region10: #{crnm_forward.3} parent=2 // pred_fallthru
      _
    // Predicated region
    $region33: #{crnm_forward.3} parent=2 // pred_check
      _
    $region34: #{crnm_forward.3} parent=2 // pred_check_branch
      %167 = sbr.rel (0) target = $region36
    $region35: #{crnm_forward.3} parent=2 // pred_region
      %168 = vsyncadd [#allocation3], 7680
    $region36: #{crnm_forward.3} parent=2 // pred_fallthru
      _
    %s169 = smul.u32 15, 16
    %s170 = smul.u32 %s169, 2
    %s171 = smul.u32 %s170, 1
    %s172 = sshll.u32 %s171, 4
    %173 = dma.done [#allocation3], %s172
  %v174 = vld [vmem:[#allocation2] sm:$0x3]
  %v175 = vld [vmem:[#allocation2 + $0x2] sm:$0x3]
  %v176 = vld [vmem:[#allocation2 + $0x4] sm:$0x3]
  %v177 = vld [vmem:[#allocation2 + $0x6] sm:$0x3]
  %v178 = vld [vmem:[#allocation2 + $0x8] sm:$0x3]
  %v179 = vld [vmem:[#allocation2 + $0xa] sm:$0x3]
  %v180 = vld [vmem:[#allocation2 + $0xc] sm:$0x3]
  %v181 = vld [vmem:[#allocation2 + $0xe] sm:$0x3]
  %v182 = vld [vmem:[#allocation2 + $0x10] sm:$0x3]
  %v183 = vld [vmem:[#allocation2 + $0x12] sm:$0x3]
  %v184 = vld [vmem:[#allocation2 + $0x14] sm:$0x3]
  %v185 = vld [vmem:[#allocation2 + $0x16] sm:$0x3]
  %v186 = vld [vmem:[#allocation2 + $0x18] sm:$0x3]
  %v187 = vld [vmem:[#allocation2 + $0x1a] sm:$0x3]
  %v188 = vld [vmem:[#allocation2 + $0x1c] sm:$0x3]
  %v189 = vld [vmem:[#allocation2 + $0x20] sm:$0x3]
  %v190 = vld [vmem:[#allocation2 + $0x22] sm:$0x3]
  %v191 = vld [vmem:[#allocation2 + $0x24] sm:$0x3]
  %v192 = vld [vmem:[#allocation2 + $0x26] sm:$0x3]
  %v193 = vld [vmem:[#allocation2 + $0x28] sm:$0x3]
  %v194 = vld [vmem:[#allocation2 + $0x2a] sm:$0x3]
  %v195 = vld [vmem:[#allocation2 + $0x2c] sm:$0x3]
  %v196 = vld [vmem:[#allocation2 + $0x2e] sm:$0x3]
  %v197 = vld [vmem:[#allocation2 + $0x30] sm:$0x3]
  %v198 = vld [vmem:[#allocation2 + $0x32] sm:$0x3]
  %v199 = vld [vmem:[#allocation2 + $0x34] sm:$0x3]
  %v200 = vld [vmem:[#allocation2 + $0x36] sm:$0x3]
  %v201 = vld [vmem:[#allocation2 + $0x38] sm:$0x3]
  %v202 = vld [vmem:[#allocation2 + $0x3a] sm:$0x3]
  %v203 = vld [vmem:[#allocation2 + $0x3c] sm:$0x3]
  %v204 = vld [vmem:[#allocation2 + $0x40] sm:$0x3]
  %v205 = vld [vmem:[#allocation2 + $0x42] sm:$0x3]
  %v206 = vld [vmem:[#allocation2 + $0x44] sm:$0x3]
  %v207 = vld [vmem:[#allocation2 + $0x46] sm:$0x3]
  %v208 = vld [vmem:[#allocation2 + $0x48] sm:$0x3]
  %v209 = vld [vmem:[#allocation2 + $0x4a] sm:$0x3]
  %v210 = vld [vmem:[#allocation2 + $0x4c] sm:$0x3]
  %v211 = vld [vmem:[#allocation2 + $0x4e] sm:$0x3]
  %v212 = vld [vmem:[#allocation2 + $0x50] sm:$0x3]
  %v213 = vld [vmem:[#allocation2 + $0x52] sm:$0x3]
  %v214 = vld [vmem:[#allocation2 + $0x54] sm:$0x3]
  %v215 = vld [vmem:[#allocation2 + $0x56] sm:$0x3]
  %v216 = vld [vmem:[#allocation2 + $0x58] sm:$0x3]
  %v217 = vld [vmem:[#allocation2 + $0x5a] sm:$0x3]
  %v218 = vld [vmem:[#allocation2 + $0x5c] sm:$0x3]
  %v219 = vld [vmem:[#allocation2 + $0x60] sm:$0x3]
  %v220 = vld [vmem:[#allocation2 + $0x62] sm:$0x3]
  %v221 = vld [vmem:[#allocation2 + $0x64] sm:$0x3]
  %v222 = vld [vmem:[#allocation2 + $0x66] sm:$0x3]
  %v223 = vld [vmem:[#allocation2 + $0x68] sm:$0x3]
  %v224 = vld [vmem:[#allocation2 + $0x6a] sm:$0x3]
  %v225 = vld [vmem:[#allocation2 + $0x6c] sm:$0x3]
  %v226 = vld [vmem:[#allocation2 + $0x6e] sm:$0x3]
  %v227 = vld [vmem:[#allocation2 + $0x70] sm:$0x3]
  %v228 = vld [vmem:[#allocation2 + $0x72] sm:$0x3]
  %v229 = vld [vmem:[#allocation2 + $0x74] sm:$0x3]
  %v230 = vld [vmem:[#allocation2 + $0x76] sm:$0x3]
  %v231 = vld [vmem:[#allocation2 + $0x78] sm:$0x3]
  %v232 = vld [vmem:[#allocation2 + $0x7a] sm:$0x3]
  %v233 = vld [vmem:[#allocation2 + $0x7c] sm:$0x3]
  %v234 = vld [vmem:[#allocation2 + $0x80] sm:$0x3]
  %v235 = vld [vmem:[#allocation2 + $0x82] sm:$0x3]
  %v236 = vld [vmem:[#allocation2 + $0x84] sm:$0x3]
  %v237 = vld [vmem:[#allocation2 + $0x86] sm:$0x3]
  %v238 = vld [vmem:[#allocation2 + $0x88] sm:$0x3]
  %v239 = vld [vmem:[#allocation2 + $0x8a] sm:$0x3]
  %v240 = vld [vmem:[#allocation2 + $0x8c] sm:$0x3]
  %v241 = vld [vmem:[#allocation2 + $0x8e] sm:$0x3]
  %v242 = vld [vmem:[#allocation2 + $0x90] sm:$0x3]
  %v243 = vld [vmem:[#allocation2 + $0x92] sm:$0x3]
  %v244 = vld [vmem:[#allocation2 + $0x94] sm:$0x3]
  %v245 = vld [vmem:[#allocation2 + $0x96] sm:$0x3]
  %v246 = vld [vmem:[#allocation2 + $0x98] sm:$0x3]
  %v247 = vld [vmem:[#allocation2 + $0x9a] sm:$0x3]
  %v248 = vld [vmem:[#allocation2 + $0x9c] sm:$0x3]
  %v249 = vld [vmem:[#allocation2 + $0xa0] sm:$0x3]
  %v250 = vld [vmem:[#allocation2 + $0xa2] sm:$0x3]
  %v251 = vld [vmem:[#allocation2 + $0xa4] sm:$0x3]
  %v252 = vld [vmem:[#allocation2 + $0xa6] sm:$0x3]
  %v253 = vld [vmem:[#allocation2 + $0xa8] sm:$0x3]
  %v254 = vld [vmem:[#allocation2 + $0xaa] sm:$0x3]
  %v255 = vld [vmem:[#allocation2 + $0xac] sm:$0x3]
  %v256 = vld [vmem:[#allocation2 + $0xae] sm:$0x3]
  %v257 = vld [vmem:[#allocation2 + $0xb0] sm:$0x3]
  %v258 = vld [vmem:[#allocation2 + $0xb2] sm:$0x3]
  %v259 = vld [vmem:[#allocation2 + $0xb4] sm:$0x3]
  %v260 = vld [vmem:[#allocation2 + $0xb6] sm:$0x3]
  %v261 = vld [vmem:[#allocation2 + $0xb8] sm:$0x3]
  %v262 = vld [vmem:[#allocation2 + $0xba] sm:$0x3]
  %v263 = vld [vmem:[#allocation2 + $0xbc] sm:$0x3]
  %v264 = vld [vmem:[#allocation2 + $0xc0] sm:$0x3]
  %v265 = vld [vmem:[#allocation2 + $0xc2] sm:$0x3]
  %v266 = vld [vmem:[#allocation2 + $0xc4] sm:$0x3]
  %v267 = vld [vmem:[#allocation2 + $0xc6] sm:$0x3]
  %v268 = vld [vmem:[#allocation2 + $0xc8] sm:$0x3]
  %v269 = vld [vmem:[#allocation2 + $0xca] sm:$0x3]
  %v270 = vld [vmem:[#allocation2 + $0xcc] sm:$0x3]
  %v271 = vld [vmem:[#allocation2 + $0xce] sm:$0x3]
  %v272 = vld [vmem:[#allocation2 + $0xd0] sm:$0x3]
  %v273 = vld [vmem:[#allocation2 + $0xd2] sm:$0x3]
  %v274 = vld [vmem:[#allocation2 + $0xd4] sm:$0x3]
  %v275 = vld [vmem:[#allocation2 + $0xd6] sm:$0x3]
  %v276 = vld [vmem:[#allocation2 + $0xd8] sm:$0x3]
  %v277 = vld [vmem:[#allocation2 + $0xda] sm:$0x3]
  %v278 = vld [vmem:[#allocation2 + $0xdc] sm:$0x3]
  %v279 = vld [vmem:[#allocation2 + $0xe0] sm:$0x3]
  %v280 = vld [vmem:[#allocation2 + $0xe2] sm:$0x3]
  %v281 = vld [vmem:[#allocation2 + $0xe4] sm:$0x3]
  %v282 = vld [vmem:[#allocation2 + $0xe6] sm:$0x3]
  %v283 = vld [vmem:[#allocation2 + $0xe8] sm:$0x3]
  %v284 = vld [vmem:[#allocation2 + $0xea] sm:$0x3]
  %v285 = vld [vmem:[#allocation2 + $0xec] sm:$0x3]
  %v286 = vld [vmem:[#allocation2 + $0xee] sm:$0x3]
  %v287 = vld [vmem:[#allocation2 + $0xf0] sm:$0x3]
  %v288 = vld [vmem:[#allocation2 + $0xf2] sm:$0x3]
  %v289 = vld [vmem:[#allocation2 + $0xf4] sm:$0x3]
  %v290 = vld [vmem:[#allocation2 + $0xf6] sm:$0x3]
  %v291 = vld [vmem:[#allocation2 + $0xf8] sm:$0x3]
  %v292 = vld [vmem:[#allocation2 + $0xfa] sm:$0x3]
  %v293 = vld [vmem:[#allocation2 + $0xfc] sm:$0x3]
  %v294 = vld [vmem:[#allocation2 + $0x100] sm:$0x3]
  %v295 = vld [vmem:[#allocation2 + $0x102] sm:$0x3]
  %v296 = vld [vmem:[#allocation2 + $0x104] sm:$0x3]
  %v297 = vld [vmem:[#allocation2 + $0x106] sm:$0x3]
  %v298 = vld [vmem:[#allocation2 + $0x108] sm:$0x3]
  %v299 = vld [vmem:[#allocation2 + $0x10a] sm:$0x3]
  %v300 = vld [vmem:[#allocation2 + $0x10c] sm:$0x3]
  %v301 = vld [vmem:[#allocation2 + $0x10e] sm:$0x3]
  %v302 = vld [vmem:[#allocation2 + $0x110] sm:$0x3]
  %v303 = vld [vmem:[#allocation2 + $0x112] sm:$0x3]
  %v304 = vld [vmem:[#allocation2 + $0x114] sm:$0x3]
  %v305 = vld [vmem:[#allocation2 + $0x116] sm:$0x3]
  %v306 = vld [vmem:[#allocation2 + $0x118] sm:$0x3]
  %v307 = vld [vmem:[#allocation2 + $0x11a] sm:$0x3]
  %v308 = vld [vmem:[#allocation2 + $0x11c] sm:$0x3]
  %v309 = vld [vmem:[#allocation2 + $0x120] sm:$0x3]
  %v310 = vld [vmem:[#allocation2 + $0x122] sm:$0x3]
  %v311 = vld [vmem:[#allocation2 + $0x124] sm:$0x3]
  %v312 = vld [vmem:[#allocation2 + $0x126] sm:$0x3]
  %v313 = vld [vmem:[#allocation2 + $0x128] sm:$0x3]
  %v314 = vld [vmem:[#allocation2 + $0x12a] sm:$0x3]
  %v315 = vld [vmem:[#allocation2 + $0x12c] sm:$0x3]
  %v316 = vld [vmem:[#allocation2 + $0x12e] sm:$0x3]
  %v317 = vld [vmem:[#allocation2 + $0x130] sm:$0x3]
  %v318 = vld [vmem:[#allocation2 + $0x132] sm:$0x3]
  %v319 = vld [vmem:[#allocation2 + $0x134] sm:$0x3]
  %v320 = vld [vmem:[#allocation2 + $0x136] sm:$0x3]
  %v321 = vld [vmem:[#allocation2 + $0x138] sm:$0x3]
  %v322 = vld [vmem:[#allocation2 + $0x13a] sm:$0x3]
  %v323 = vld [vmem:[#allocation2 + $0x13c] sm:$0x3]
  %v324 = vld [vmem:[#allocation2 + $0x140] sm:$0x3]
  %v325 = vld [vmem:[#allocation2 + $0x142] sm:$0x3]
  %v326 = vld [vmem:[#allocation2 + $0x144] sm:$0x3]
  %v327 = vld [vmem:[#allocation2 + $0x146] sm:$0x3]
  %v328 = vld [vmem:[#allocation2 + $0x148] sm:$0x3]
  %v329 = vld [vmem:[#allocation2 + $0x14a] sm:$0x3]
  %v330 = vld [vmem:[#allocation2 + $0x14c] sm:$0x3]
  %v331 = vld [vmem:[#allocation2 + $0x14e] sm:$0x3]
  %v332 = vld [vmem:[#allocation2 + $0x150] sm:$0x3]
  %v333 = vld [vmem:[#allocation2 + $0x152] sm:$0x3]
  %v334 = vld [vmem:[#allocation2 + $0x154] sm:$0x3]
  %v335 = vld [vmem:[#allocation2 + $0x156] sm:$0x3]
  %v336 = vld [vmem:[#allocation2 + $0x158] sm:$0x3]
  %v337 = vld [vmem:[#allocation2 + $0x15a] sm:$0x3]
  %v338 = vld [vmem:[#allocation2 + $0x15c] sm:$0x3]
  %v339 = vld [vmem:[#allocation2 + $0x160] sm:$0x3]
  %v340 = vld [vmem:[#allocation2 + $0x162] sm:$0x3]
  %v341 = vld [vmem:[#allocation2 + $0x164] sm:$0x3]
  %v342 = vld [vmem:[#allocation2 + $0x166] sm:$0x3]
  %v343 = vld [vmem:[#allocation2 + $0x168] sm:$0x3]
  %v344 = vld [vmem:[#allocation2 + $0x16a] sm:$0x3]
  %v345 = vld [vmem:[#allocation2 + $0x16c] sm:$0x3]
  %v346 = vld [vmem:[#allocation2 + $0x16e] sm:$0x3]
  %v347 = vld [vmem:[#allocation2 + $0x170] sm:$0x3]
  %v348 = vld [vmem:[#allocation2 + $0x172] sm:$0x3]
  %v349 = vld [vmem:[#allocation2 + $0x174] sm:$0x3]
  %v350 = vld [vmem:[#allocation2 + $0x176] sm:$0x3]
  %v351 = vld [vmem:[#allocation2 + $0x178] sm:$0x3]
  %v352 = vld [vmem:[#allocation2 + $0x17a] sm:$0x3]
  %v353 = vld [vmem:[#allocation2 + $0x17c] sm:$0x3]
  %v354 = vld [vmem:[#allocation2 + $0x180] sm:$0x3]
  %v355 = vld [vmem:[#allocation2 + $0x182] sm:$0x3]
  %v356 = vld [vmem:[#allocation2 + $0x184] sm:$0x3]
  %v357 = vld [vmem:[#allocation2 + $0x186] sm:$0x3]
  %v358 = vld [vmem:[#allocation2 + $0x188] sm:$0x3]
  %v359 = vld [vmem:[#allocation2 + $0x18a] sm:$0x3]
  %v360 = vld [vmem:[#allocation2 + $0x18c] sm:$0x3]
  %v361 = vld [vmem:[#allocation2 + $0x18e] sm:$0x3]
  %v362 = vld [vmem:[#allocation2 + $0x190] sm:$0x3]
  %v363 = vld [vmem:[#allocation2 + $0x192] sm:$0x3]
  %v364 = vld [vmem:[#allocation2 + $0x194] sm:$0x3]
  %v365 = vld [vmem:[#allocation2 + $0x196] sm:$0x3]
  %v366 = vld [vmem:[#allocation2 + $0x198] sm:$0x3]
  %v367 = vld [vmem:[#allocation2 + $0x19a] sm:$0x3]
  %v368 = vld [vmem:[#allocation2 + $0x19c] sm:$0x3]
  %v369 = vld [vmem:[#allocation2 + $0x1a0] sm:$0x3]
  %v370 = vld [vmem:[#allocation2 + $0x1a2] sm:$0x3]
  %v371 = vld [vmem:[#allocation2 + $0x1a4] sm:$0x3]
  %v372 = vld [vmem:[#allocation2 + $0x1a6] sm:$0x3]
  %v373 = vld [vmem:[#allocation2 + $0x1a8] sm:$0x3]
  %v374 = vld [vmem:[#allocation2 + $0x1aa] sm:$0x3]
  %v375 = vld [vmem:[#allocation2 + $0x1ac] sm:$0x3]
  %v376 = vld [vmem:[#allocation2 + $0x1ae] sm:$0x3]
  %v377 = vld [vmem:[#allocation2 + $0x1b0] sm:$0x3]
  %v378 = vld [vmem:[#allocation2 + $0x1b2] sm:$0x3]
  %v379 = vld [vmem:[#allocation2 + $0x1b4] sm:$0x3]
  %v380 = vld [vmem:[#allocation2 + $0x1b6] sm:$0x3]
  %v381 = vld [vmem:[#allocation2 + $0x1b8] sm:$0x3]
  %v382 = vld [vmem:[#allocation2 + $0x1ba] sm:$0x3]
  %v383 = vld [vmem:[#allocation2 + $0x1bc] sm:$0x3]
  %v384 = vld [vmem:[#allocation2 + $0x1c0] sm:$0x3]
  %v385 = vld [vmem:[#allocation2 + $0x1c2] sm:$0x3]
  %v386 = vld [vmem:[#allocation2 + $0x1c4] sm:$0x3]
  %v387 = vld [vmem:[#allocation2 + $0x1c6] sm:$0x3]
  %v388 = vld [vmem:[#allocation2 + $0x1c8] sm:$0x3]
  %v389 = vld [vmem:[#allocation2 + $0x1ca] sm:$0x3]
  %v390 = vld [vmem:[#allocation2 + $0x1cc] sm:$0x3]
  %v391 = vld [vmem:[#allocation2 + $0x1ce] sm:$0x3]
  %v392 = vld [vmem:[#allocation2 + $0x1d0] sm:$0x3]
  %v393 = vld [vmem:[#allocation2 + $0x1d2] sm:$0x3]
  %v394 = vld [vmem:[#allocation2 + $0x1d4] sm:$0x3]
  %v395 = vld [vmem:[#allocation2 + $0x1d6] sm:$0x3]
  %v396 = vld [vmem:[#allocation2 + $0x1d8] sm:$0x3]
  %v397 = vld [vmem:[#allocation2 + $0x1da] sm:$0x3]
  %v398 = vld [vmem:[#allocation2 + $0x1dc] sm:$0x3]
  %vm399 = vcmask 1041408
  %v400 = vsel %vm399, %v174, -inf
  %v401 = vsel %vm399, %v189, -inf
  %v402 = vmax.f32 %v400, %v401
  %v403 = vsel %vm399, %v175, -inf
  %v404 = vsel %vm399, %v190, -inf
  %v405 = vmax.f32 %v403, %v404
  %v406 = vsel %vm399, %v176, -inf
  %v407 = vsel %vm399, %v191, -inf
  %v408 = vmax.f32 %v406, %v407
  %v409 = vsel %vm399, %v177, -inf
  %v410 = vsel %vm399, %v192, -inf
  %v411 = vmax.f32 %v409, %v410
  %v412 = vsel %vm399, %v178, -inf
  %v413 = vsel %vm399, %v193, -inf
  %v414 = vmax.f32 %v412, %v413
  %v415 = vsel %vm399, %v179, -inf
  %v416 = vsel %vm399, %v194, -inf
  %v417 = vmax.f32 %v415, %v416
  %v418 = vsel %vm399, %v180, -inf
  %v419 = vsel %vm399, %v195, -inf
  %v420 = vmax.f32 %v418, %v419
  %v421 = vsel %vm399, %v181, -inf
  %v422 = vsel %vm399, %v196, -inf
  %v423 = vmax.f32 %v421, %v422
  %v424 = vsel %vm399, %v182, -inf
  %v425 = vsel %vm399, %v197, -inf
  %v426 = vmax.f32 %v424, %v425
  %v427 = vsel %vm399, %v183, -inf
  %v428 = vsel %vm399, %v198, -inf
  %v429 = vmax.f32 %v427, %v428
  %v430 = vsel %vm399, %v184, -inf
  %v431 = vsel %vm399, %v199, -inf
  %v432 = vmax.f32 %v430, %v431
  %v433 = vsel %vm399, %v185, -inf
  %v434 = vsel %vm399, %v200, -inf
  %v435 = vmax.f32 %v433, %v434
  %v436 = vsel %vm399, %v186, -inf
  %v437 = vsel %vm399, %v201, -inf
  %v438 = vmax.f32 %v436, %v437
  %v439 = vsel %vm399, %v187, -inf
  %v440 = vsel %vm399, %v202, -inf
  %v441 = vmax.f32 %v439, %v440
  %v442 = vsel %vm399, %v188, -inf
  %v443 = vsel %vm399, %v203, -inf
  %v444 = vmax.f32 %v442, %v443
  %v445 = vsel %vm399, %v204, -inf
  %v446 = vsel %vm399, %v219, -inf
  %v447 = vmax.f32 %v445, %v446
  %v448 = vsel %vm399, %v205, -inf
  %v449 = vsel %vm399, %v220, -inf
  %v450 = vmax.f32 %v448, %v449
  %v451 = vsel %vm399, %v206, -inf
  %v452 = vsel %vm399, %v221, -inf
  %v453 = vmax.f32 %v451, %v452
  %v454 = vsel %vm399, %v207, -inf
  %v455 = vsel %vm399, %v222, -inf
  %v456 = vmax.f32 %v454, %v455
  %v457 = vsel %vm399, %v208, -inf
  %v458 = vsel %vm399, %v223, -inf
  %v459 = vmax.f32 %v457, %v458
  %v460 = vsel %vm399, %v209, -inf
  %v461 = vsel %vm399, %v224, -inf
  %v462 = vmax.f32 %v460, %v461
  %v463 = vsel %vm399, %v210, -inf
  %v464 = vsel %vm399, %v225, -inf
  %v465 = vmax.f32 %v463, %v464
  %v466 = vsel %vm399, %v211, -inf
  %v467 = vsel %vm399, %v226, -inf
  %v468 = vmax.f32 %v466, %v467
  %v469 = vsel %vm399, %v212, -inf
  %v470 = vsel %vm399, %v227, -inf
  %v471 = vmax.f32 %v469, %v470
  %v472 = vsel %vm399, %v213, -inf
  %v473 = vsel %vm399, %v228, -inf
  %v474 = vmax.f32 %v472, %v473
  %v475 = vsel %vm399, %v214, -inf
  %v476 = vsel %vm399, %v229, -inf
  %v477 = vmax.f32 %v475, %v476
  %v478 = vsel %vm399, %v215, -inf
  %v479 = vsel %vm399, %v230, -inf
  %v480 = vmax.f32 %v478, %v479
  %v481 = vsel %vm399, %v216, -inf
  %v482 = vsel %vm399, %v231, -inf
  %v483 = vmax.f32 %v481, %v482
  %v484 = vsel %vm399, %v217, -inf
  %v485 = vsel %vm399, %v232, -inf
  %v486 = vmax.f32 %v484, %v485
  %v487 = vsel %vm399, %v218, -inf
  %v488 = vsel %vm399, %v233, -inf
  %v489 = vmax.f32 %v487, %v488
  %v490 = vsel %vm399, %v234, -inf
  %v491 = vsel %vm399, %v249, -inf
  %v492 = vmax.f32 %v490, %v491
  %v493 = vsel %vm399, %v235, -inf
  %v494 = vsel %vm399, %v250, -inf
  %v495 = vmax.f32 %v493, %v494
  %v496 = vsel %vm399, %v236, -inf
  %v497 = vsel %vm399, %v251, -inf
  %v498 = vmax.f32 %v496, %v497
  %v499 = vsel %vm399, %v237, -inf
  %v500 = vsel %vm399, %v252, -inf
  %v501 = vmax.f32 %v499, %v500
  %v502 = vsel %vm399, %v238, -inf
  %v503 = vsel %vm399, %v253, -inf
  %v504 = vmax.f32 %v502, %v503
  %v505 = vsel %vm399, %v239, -inf
  %v506 = vsel %vm399, %v254, -inf
  %v507 = vmax.f32 %v505, %v506
  %v508 = vsel %vm399, %v240, -inf
  %v509 = vsel %vm399, %v255, -inf
  %v510 = vmax.f32 %v508, %v509
  %v511 = vsel %vm399, %v241, -inf
  %v512 = vsel %vm399, %v256, -inf
  %v513 = vmax.f32 %v511, %v512
  %v514 = vsel %vm399, %v242, -inf
  %v515 = vsel %vm399, %v257, -inf
  %v516 = vmax.f32 %v514, %v515
  %v517 = vsel %vm399, %v243, -inf
  %v518 = vsel %vm399, %v258, -inf
  %v519 = vmax.f32 %v517, %v518
  %v520 = vsel %vm399, %v244, -inf
  %v521 = vsel %vm399, %v259, -inf
  %v522 = vmax.f32 %v520, %v521
  %v523 = vsel %vm399, %v245, -inf
  %v524 = vsel %vm399, %v260, -inf
  %v525 = vmax.f32 %v523, %v524
  %v526 = vsel %vm399, %v246, -inf
  %v527 = vsel %vm399, %v261, -inf
  %v528 = vmax.f32 %v526, %v527
  %v529 = vsel %vm399, %v247, -inf
  %v530 = vsel %vm399, %v262, -inf
  %v531 = vmax.f32 %v529, %v530
  %v532 = vsel %vm399, %v248, -inf
  %v533 = vsel %vm399, %v263, -inf
  %v534 = vmax.f32 %v532, %v533
  %v535 = vsel %vm399, %v264, -inf
  %v536 = vsel %vm399, %v279, -inf
  %v537 = vmax.f32 %v535, %v536
  %v538 = vsel %vm399, %v265, -inf
  %v539 = vsel %vm399, %v280, -inf
  %v540 = vmax.f32 %v538, %v539
  %v541 = vsel %vm399, %v266, -inf
  %v542 = vsel %vm399, %v281, -inf
  %v543 = vmax.f32 %v541, %v542
  %v544 = vsel %vm399, %v267, -inf
  %v545 = vsel %vm399, %v282, -inf
  %v546 = vmax.f32 %v544, %v545
  %v547 = vsel %vm399, %v268, -inf
  %v548 = vsel %vm399, %v283, -inf
  %v549 = vmax.f32 %v547, %v548
  %v550 = vsel %vm399, %v269, -inf
  %v551 = vsel %vm399, %v284, -inf
  %v552 = vmax.f32 %v550, %v551
  %v553 = vsel %vm399, %v270, -inf
  %v554 = vsel %vm399, %v285, -inf
  %v555 = vmax.f32 %v553, %v554
  %v556 = vsel %vm399, %v271, -inf
  %v557 = vsel %vm399, %v286, -inf
  %v558 = vmax.f32 %v556, %v557
  %v559 = vsel %vm399, %v272, -inf
  %v560 = vsel %vm399, %v287, -inf
  %v561 = vmax.f32 %v559, %v560
  %v562 = vsel %vm399, %v273, -inf
  %v563 = vsel %vm399, %v288, -inf
  %v564 = vmax.f32 %v562, %v563
  %v565 = vsel %vm399, %v274, -inf
  %v566 = vsel %vm399, %v289, -inf
  %v567 = vmax.f32 %v565, %v566
  %v568 = vsel %vm399, %v275, -inf
  %v569 = vsel %vm399, %v290, -inf
  %v570 = vmax.f32 %v568, %v569
  %v571 = vsel %vm399, %v276, -inf
  %v572 = vsel %vm399, %v291, -inf
  %v573 = vmax.f32 %v571, %v572
  %v574 = vsel %vm399, %v277, -inf
  %v575 = vsel %vm399, %v292, -inf
  %v576 = vmax.f32 %v574, %v575
  %v577 = vsel %vm399, %v278, -inf
  %v578 = vsel %vm399, %v293, -inf
  %v579 = vmax.f32 %v577, %v578
  %v580 = vsel %vm399, %v294, -inf
  %v581 = vsel %vm399, %v309, -inf
  %v582 = vmax.f32 %v580, %v581
  %v583 = vsel %vm399, %v295, -inf
  %v584 = vsel %vm399, %v310, -inf
  %v585 = vmax.f32 %v583, %v584
  %v586 = vsel %vm399, %v296, -inf
  %v587 = vsel %vm399, %v311, -inf
  %v588 = vmax.f32 %v586, %v587
  %v589 = vsel %vm399, %v297, -inf
  %v590 = vsel %vm399, %v312, -inf
  %v591 = vmax.f32 %v589, %v590
  %v592 = vsel %vm399, %v298, -inf
  %v593 = vsel %vm399, %v313, -inf
  %v594 = vmax.f32 %v592, %v593
  %v595 = vsel %vm399, %v299, -inf
  %v596 = vsel %vm399, %v314, -inf
  %v597 = vmax.f32 %v595, %v596
  %v598 = vsel %vm399, %v300, -inf
  %v599 = vsel %vm399, %v315, -inf
  %v600 = vmax.f32 %v598, %v599
  %v601 = vsel %vm399, %v301, -inf
  %v602 = vsel %vm399, %v316, -inf
  %v603 = vmax.f32 %v601, %v602
  %v604 = vsel %vm399, %v302, -inf
  %v605 = vsel %vm399, %v317, -inf
  %v606 = vmax.f32 %v604, %v605
  %v607 = vsel %vm399, %v303, -inf
  %v608 = vsel %vm399, %v318, -inf
  %v609 = vmax.f32 %v607, %v608
  %v610 = vsel %vm399, %v304, -inf
  %v611 = vsel %vm399, %v319, -inf
  %v612 = vmax.f32 %v610, %v611
  %v613 = vsel %vm399, %v305, -inf
  %v614 = vsel %vm399, %v320, -inf
  %v615 = vmax.f32 %v613, %v614
  %v616 = vsel %vm399, %v306, -inf
  %v617 = vsel %vm399, %v321, -inf
  %v618 = vmax.f32 %v616, %v617
  %v619 = vsel %vm399, %v307, -inf
  %v620 = vsel %vm399, %v322, -inf
  %v621 = vmax.f32 %v619, %v620
  %v622 = vsel %vm399, %v308, -inf
  %v623 = vsel %vm399, %v323, -inf
  %v624 = vmax.f32 %v622, %v623
  %v625 = vsel %vm399, %v324, -inf
  %v626 = vsel %vm399, %v339, -inf
  %v627 = vmax.f32 %v625, %v626
  %v628 = vsel %vm399, %v325, -inf
  %v629 = vsel %vm399, %v340, -inf
  %v630 = vmax.f32 %v628, %v629
  %v631 = vsel %vm399, %v326, -inf
  %v632 = vsel %vm399, %v341, -inf
  %v633 = vmax.f32 %v631, %v632
  %v634 = vsel %vm399, %v327, -inf
  %v635 = vsel %vm399, %v342, -inf
  %v636 = vmax.f32 %v634, %v635
  %v637 = vsel %vm399, %v328, -inf
  %v638 = vsel %vm399, %v343, -inf
  %v639 = vmax.f32 %v637, %v638
  %v640 = vsel %vm399, %v329, -inf
  %v641 = vsel %vm399, %v344, -inf
  %v642 = vmax.f32 %v640, %v641
  %v643 = vsel %vm399, %v330, -inf
  %v644 = vsel %vm399, %v345, -inf
  %v645 = vmax.f32 %v643, %v644
  %v646 = vsel %vm399, %v331, -inf
  %v647 = vsel %vm399, %v346, -inf
  %v648 = vmax.f32 %v646, %v647
  %v649 = vsel %vm399, %v332, -inf
  %v650 = vsel %vm399, %v347, -inf
  %v651 = vmax.f32 %v649, %v650
  %v652 = vsel %vm399, %v333, -inf
  %v653 = vsel %vm399, %v348, -inf
  %v654 = vmax.f32 %v652, %v653
  %v655 = vsel %vm399, %v334, -inf
  %v656 = vsel %vm399, %v349, -inf
  %v657 = vmax.f32 %v655, %v656
  %v658 = vsel %vm399, %v335, -inf
  %v659 = vsel %vm399, %v350, -inf
  %v660 = vmax.f32 %v658, %v659
  %v661 = vsel %vm399, %v336, -inf
  %v662 = vsel %vm399, %v351, -inf
  %v663 = vmax.f32 %v661, %v662
  %v664 = vsel %vm399, %v337, -inf
  %v665 = vsel %vm399, %v352, -inf
  %v666 = vmax.f32 %v664, %v665
  %v667 = vsel %vm399, %v338, -inf
  %v668 = vsel %vm399, %v353, -inf
  %v669 = vmax.f32 %v667, %v668
  %v670 = vsel %vm399, %v354, -inf
  %v671 = vsel %vm399, %v369, -inf
  %v672 = vmax.f32 %v670, %v671
  %v673 = vsel %vm399, %v355, -inf
  %v674 = vsel %vm399, %v370, -inf
  %v675 = vmax.f32 %v673, %v674
  %v676 = vsel %vm399, %v356, -inf
  %v677 = vsel %vm399, %v371, -inf
  %v678 = vmax.f32 %v676, %v677
  %v679 = vsel %vm399, %v357, -inf
  %v680 = vsel %vm399, %v372, -inf
  %v681 = vmax.f32 %v679, %v680
  %v682 = vsel %vm399, %v358, -inf
  %v683 = vsel %vm399, %v373, -inf
  %v684 = vmax.f32 %v682, %v683
  %v685 = vsel %vm399, %v359, -inf
  %v686 = vsel %vm399, %v374, -inf
  %v687 = vmax.f32 %v685, %v686
  %v688 = vsel %vm399, %v360, -inf
  %v689 = vsel %vm399, %v375, -inf
  %v690 = vmax.f32 %v688, %v689
  %v691 = vsel %vm399, %v361, -inf
  %v692 = vsel %vm399, %v376, -inf
  %v693 = vmax.f32 %v691, %v692
  %v694 = vsel %vm399, %v362, -inf
  %v695 = vsel %vm399, %v377, -inf
  %v696 = vmax.f32 %v694, %v695
  %v697 = vsel %vm399, %v363, -inf
  %v698 = vsel %vm399, %v378, -inf
  %v699 = vmax.f32 %v697, %v698
  %v700 = vsel %vm399, %v364, -inf
  %v701 = vsel %vm399, %v379, -inf
  %v702 = vmax.f32 %v700, %v701
  %v703 = vsel %vm399, %v365, -inf
  %v704 = vsel %vm399, %v380, -inf
  %v705 = vmax.f32 %v703, %v704
  %v706 = vsel %vm399, %v366, -inf
  %v707 = vsel %vm399, %v381, -inf
  %v708 = vmax.f32 %v706, %v707
  %v709 = vsel %vm399, %v367, -inf
  %v710 = vsel %vm399, %v382, -inf
  %v711 = vmax.f32 %v709, %v710
  %v712 = vsel %vm399, %v368, -inf
  %v713 = vsel %vm399, %v383, -inf
  %v714 = vmax.f32 %v712, %v713
  %v715 = vmax.f32 %v401, %v445
  %v716 = vmax.f32 %v404, %v448
  %v717 = vmax.f32 %v407, %v451
  %v718 = vmax.f32 %v410, %v454
  %v719 = vmax.f32 %v413, %v457
  %v720 = vmax.f32 %v416, %v460
  %v721 = vmax.f32 %v419, %v463
  %v722 = vmax.f32 %v422, %v466
  %v723 = vmax.f32 %v425, %v469
  %v724 = vmax.f32 %v428, %v472
  %v725 = vmax.f32 %v431, %v475
  %v726 = vmax.f32 %v434, %v478
  %v727 = vmax.f32 %v437, %v481
  %v728 = vmax.f32 %v440, %v484
  %v729 = vmax.f32 %v443, %v487
  %v730 = vmax.f32 %v446, %v490
  %v731 = vmax.f32 %v449, %v493
  %v732 = vmax.f32 %v452, %v496
  %v733 = vmax.f32 %v455, %v499
  %v734 = vmax.f32 %v458, %v502
  %v735 = vmax.f32 %v461, %v505
  %v736 = vmax.f32 %v464, %v508
  %v737 = vmax.f32 %v467, %v511
  %v738 = vmax.f32 %v470, %v514
  %v739 = vmax.f32 %v473, %v517
  %v740 = vmax.f32 %v476, %v520
  %v741 = vmax.f32 %v479, %v523
  %v742 = vmax.f32 %v482, %v526
  %v743 = vmax.f32 %v485, %v529
  %v744 = vmax.f32 %v488, %v532
  %v745 = vmax.f32 %v491, %v535
  %v746 = vmax.f32 %v494, %v538
  %v747 = vmax.f32 %v497, %v541
  %v748 = vmax.f32 %v500, %v544
  %v749 = vmax.f32 %v503, %v547
  %v750 = vmax.f32 %v506, %v550
  %v751 = vmax.f32 %v509, %v553
  %v752 = vmax.f32 %v512, %v556
  %v753 = vmax.f32 %v515, %v559
  %v754 = vmax.f32 %v518, %v562
  %v755 = vmax.f32 %v521, %v565
  %v756 = vmax.f32 %v524, %v568
  %v757 = vmax.f32 %v527, %v571
  %v758 = vmax.f32 %v530, %v574
  %v759 = vmax.f32 %v533, %v577
  %v760 = vmax.f32 %v536, %v580
  %v761 = vmax.f32 %v539, %v583
  %v762 = vmax.f32 %v542, %v586
  %v763 = vmax.f32 %v545, %v589
  %v764 = vmax.f32 %v548, %v592
  %v765 = vmax.f32 %v551, %v595
  %v766 = vmax.f32 %v554, %v598
  %v767 = vmax.f32 %v557, %v601
  %v768 = vmax.f32 %v560, %v604
  %v769 = vmax.f32 %v563, %v607
  %v770 = vmax.f32 %v566, %v610
  %v771 = vmax.f32 %v569, %v613
  %v772 = vmax.f32 %v572, %v616
  %v773 = vmax.f32 %v575, %v619
  %v774 = vmax.f32 %v578, %v622
  %v775 = vmax.f32 %v581, %v625
  %v776 = vmax.f32 %v584, %v628
  %v777 = vmax.f32 %v587, %v631
  %v778 = vmax.f32 %v590, %v634
  %v779 = vmax.f32 %v593, %v637
  %v780 = vmax.f32 %v596, %v640
  %v781 = vmax.f32 %v599, %v643
  %v782 = vmax.f32 %v602, %v646
  %v783 = vmax.f32 %v605, %v649
  %v784 = vmax.f32 %v608, %v652
  %v785 = vmax.f32 %v611, %v655
  %v786 = vmax.f32 %v614, %v658
  %v787 = vmax.f32 %v617, %v661
  %v788 = vmax.f32 %v620, %v664
  %v789 = vmax.f32 %v623, %v667
  %v790 = vmax.f32 %v626, %v670
  %v791 = vmax.f32 %v629, %v673
  %v792 = vmax.f32 %v632, %v676
  %v793 = vmax.f32 %v635, %v679
  %v794 = vmax.f32 %v638, %v682
  %v795 = vmax.f32 %v641, %v685
  %v796 = vmax.f32 %v644, %v688
  %v797 = vmax.f32 %v647, %v691
  %v798 = vmax.f32 %v650, %v694
  %v799 = vmax.f32 %v653, %v697
  %v800 = vmax.f32 %v656, %v700
  %v801 = vmax.f32 %v659, %v703
  %v802 = vmax.f32 %v662, %v706
  %v803 = vmax.f32 %v665, %v709
  %v804 = vmax.f32 %v668, %v712
  %v805 = vsel %vm399, %v384, -inf
  %v806 = vmax.f32 %v671, %v805
  %v807 = vsel %vm399, %v385, -inf
  %v808 = vmax.f32 %v674, %v807
  %v809 = vsel %vm399, %v386, -inf
  %v810 = vmax.f32 %v677, %v809
  %v811 = vsel %vm399, %v387, -inf
  %v812 = vmax.f32 %v680, %v811
  %v813 = vsel %vm399, %v388, -inf
  %v814 = vmax.f32 %v683, %v813
  %v815 = vsel %vm399, %v389, -inf
  %v816 = vmax.f32 %v686, %v815
  %v817 = vsel %vm399, %v390, -inf
  %v818 = vmax.f32 %v689, %v817
  %v819 = vsel %vm399, %v391, -inf
  %v820 = vmax.f32 %v692, %v819
  %v821 = vsel %vm399, %v392, -inf
  %v822 = vmax.f32 %v695, %v821
  %v823 = vsel %vm399, %v393, -inf
  %v824 = vmax.f32 %v698, %v823
  %v825 = vsel %vm399, %v394, -inf
  %v826 = vmax.f32 %v701, %v825
  %v827 = vsel %vm399, %v395, -inf
  %v828 = vmax.f32 %v704, %v827
  %v829 = vsel %vm399, %v396, -inf
  %v830 = vmax.f32 %v707, %v829
  %v831 = vsel %vm399, %v397, -inf
  %v832 = vmax.f32 %v710, %v831
  %v833 = vsel %vm399, %v398, -inf
  %v834 = vmax.f32 %v713, %v833
  %v835 = vmax.f32 %v402, %v715
  %v836 = vmax.f32 %v405, %v716
  %v837 = vmax.f32 %v408, %v717
  %v838 = vmax.f32 %v411, %v718
  %v839 = vmax.f32 %v414, %v719
  %v840 = vmax.f32 %v417, %v720
  %v841 = vmax.f32 %v420, %v721
  %v842 = vmax.f32 %v423, %v722
  %v843 = vmax.f32 %v426, %v723
  %v844 = vmax.f32 %v429, %v724
  %v845 = vmax.f32 %v432, %v725
  %v846 = vmax.f32 %v435, %v726
  %v847 = vmax.f32 %v438, %v727
  %v848 = vmax.f32 %v441, %v728
  %v849 = vmax.f32 %v444, %v729
  %v850 = vmax.f32 %v447, %v730
  %v851 = vmax.f32 %v450, %v731
  %v852 = vmax.f32 %v453, %v732
  %v853 = vmax.f32 %v456, %v733
  %v854 = vmax.f32 %v459, %v734
  %v855 = vmax.f32 %v462, %v735
  %v856 = vmax.f32 %v465, %v736
  %v857 = vmax.f32 %v468, %v737
  %v858 = vmax.f32 %v471, %v738
  %v859 = vmax.f32 %v474, %v739
  %v860 = vmax.f32 %v477, %v740
  %v861 = vmax.f32 %v480, %v741
  %v862 = vmax.f32 %v483, %v742
  %v863 = vmax.f32 %v486, %v743
  %v864 = vmax.f32 %v489, %v744
  %v865 = vmax.f32 %v492, %v745
  %v866 = vmax.f32 %v495, %v746
  %v867 = vmax.f32 %v498, %v747
  %v868 = vmax.f32 %v501, %v748
  %v869 = vmax.f32 %v504, %v749
  %v870 = vmax.f32 %v507, %v750
  %v871 = vmax.f32 %v510, %v751
  %v872 = vmax.f32 %v513, %v752
  %v873 = vmax.f32 %v516, %v753
  %v874 = vmax.f32 %v519, %v754
  %v875 = vmax.f32 %v522, %v755
  %v876 = vmax.f32 %v525, %v756
  %v877 = vmax.f32 %v528, %v757
  %v878 = vmax.f32 %v531, %v758
  %v879 = vmax.f32 %v534, %v759
  %v880 = vmax.f32 %v537, %v760
  %v881 = vmax.f32 %v540, %v761
  %v882 = vmax.f32 %v543, %v762
  %v883 = vmax.f32 %v546, %v763
  %v884 = vmax.f32 %v549, %v764
  %v885 = vmax.f32 %v552, %v765
  %v886 = vmax.f32 %v555, %v766
  %v887 = vmax.f32 %v558, %v767
  %v888 = vmax.f32 %v561, %v768
  %v889 = vmax.f32 %v564, %v769
  %v890 = vmax.f32 %v567, %v770
  %v891 = vmax.f32 %v570, %v771
  %v892 = vmax.f32 %v573, %v772
  %v893 = vmax.f32 %v576, %v773
  %v894 = vmax.f32 %v579, %v774
  %v895 = vmax.f32 %v582, %v775
  %v896 = vmax.f32 %v585, %v776
  %v897 = vmax.f32 %v588, %v777
  %v898 = vmax.f32 %v591, %v778
  %v899 = vmax.f32 %v594, %v779
  %v900 = vmax.f32 %v597, %v780
  %v901 = vmax.f32 %v600, %v781
  %v902 = vmax.f32 %v603, %v782
  %v903 = vmax.f32 %v606, %v783
  %v904 = vmax.f32 %v609, %v784
  %v905 = vmax.f32 %v612, %v785
  %v906 = vmax.f32 %v615, %v786
  %v907 = vmax.f32 %v618, %v787
  %v908 = vmax.f32 %v621, %v788
  %v909 = vmax.f32 %v624, %v789
  %v910 = vmax.f32 %v627, %v790
  %v911 = vmax.f32 %v630, %v791
  %v912 = vmax.f32 %v633, %v792
  %v913 = vmax.f32 %v636, %v793
  %v914 = vmax.f32 %v639, %v794
  %v915 = vmax.f32 %v642, %v795
  %v916 = vmax.f32 %v645, %v796
  %v917 = vmax.f32 %v648, %v797
  %v918 = vmax.f32 %v651, %v798
  %v919 = vmax.f32 %v654, %v799
  %v920 = vmax.f32 %v657, %v800
  %v921 = vmax.f32 %v660, %v801
  %v922 = vmax.f32 %v663, %v802
  %v923 = vmax.f32 %v666, %v803
  %v924 = vmax.f32 %v669, %v804
  %v925 = vmax.f32 %v672, %v806
  %v926 = vmax.f32 %v675, %v808
  %v927 = vmax.f32 %v678, %v810
  %v928 = vmax.f32 %v681, %v812
  %v929 = vmax.f32 %v684, %v814
  %v930 = vmax.f32 %v687, %v816
  %v931 = vmax.f32 %v690, %v818
  %v932 = vmax.f32 %v693, %v820
  %v933 = vmax.f32 %v696, %v822
  %v934 = vmax.f32 %v699, %v824
  %v935 = vmax.f32 %v702, %v826
  %v936 = vmax.f32 %v705, %v828
  %v937 = vmax.f32 %v708, %v830
  %v938 = vmax.f32 %v711, %v832
  %v939 = vmax.f32 %v714, %v834
  %v940 = vsel %vm399, %v835, -inf
  %v941 = vsel %vm399, %v836, -inf
  %v942 = vmax.f32 %v940, %v941
  %v943 = vsel %vm399, %v837, -inf
  %v944 = vsel %vm399, %v838, -inf
  %v945 = vmax.f32 %v943, %v944
  %v946 = vsel %vm399, %v839, -inf
  %v947 = vsel %vm399, %v840, -inf
  %v948 = vmax.f32 %v946, %v947
  %v949 = vsel %vm399, %v841, -inf
  %v950 = vsel %vm399, %v842, -inf
  %v951 = vmax.f32 %v949, %v950
  %v952 = vsel %vm399, %v843, -inf
  %v953 = vsel %vm399, %v844, -inf
  %v954 = vmax.f32 %v952, %v953
  %v955 = vsel %vm399, %v845, -inf
  %v956 = vsel %vm399, %v846, -inf
  %v957 = vmax.f32 %v955, %v956
  %v958 = vsel %vm399, %v847, -inf
  %v959 = vsel %vm399, %v848, -inf
  %v960 = vmax.f32 %v958, %v959
  %v961 = vsel %vm399, %v850, -inf
  %v962 = vsel %vm399, %v851, -inf
  %v963 = vmax.f32 %v961, %v962
  %v964 = vsel %vm399, %v852, -inf
  %v965 = vsel %vm399, %v853, -inf
  %v966 = vmax.f32 %v964, %v965
  %v967 = vsel %vm399, %v854, -inf
  %v968 = vsel %vm399, %v855, -inf
  %v969 = vmax.f32 %v967, %v968
  %v970 = vsel %vm399, %v856, -inf
  %v971 = vsel %vm399, %v857, -inf
  %v972 = vmax.f32 %v970, %v971
  %v973 = vsel %vm399, %v858, -inf
  %v974 = vsel %vm399, %v859, -inf
  %v975 = vmax.f32 %v973, %v974
  %v976 = vsel %vm399, %v860, -inf
  %v977 = vsel %vm399, %v861, -inf
  %v978 = vmax.f32 %v976, %v977
  %v979 = vsel %vm399, %v862, -inf
  %v980 = vsel %vm399, %v863, -inf
  %v981 = vmax.f32 %v979, %v980
  %v982 = vsel %vm399, %v865, -inf
  %v983 = vsel %vm399, %v866, -inf
  %v984 = vmax.f32 %v982, %v983
  %v985 = vsel %vm399, %v867, -inf
  %v986 = vsel %vm399, %v868, -inf
  %v987 = vmax.f32 %v985, %v986
  %v988 = vsel %vm399, %v869, -inf
  %v989 = vsel %vm399, %v870, -inf
  %v990 = vmax.f32 %v988, %v989
  %v991 = vsel %vm399, %v871, -inf
  %v992 = vsel %vm399, %v872, -inf
  %v993 = vmax.f32 %v991, %v992
  %v994 = vsel %vm399, %v873, -inf
  %v995 = vsel %vm399, %v874, -inf
  %v996 = vmax.f32 %v994, %v995
  %v997 = vsel %vm399, %v875, -inf
  %v998 = vsel %vm399, %v876, -inf
  %v999 = vmax.f32 %v997, %v998
  %v1000 = vsel %vm399, %v877, -inf
  %v1001 = vsel %vm399, %v878, -inf
  %v1002 = vmax.f32 %v1000, %v1001
  %v1003 = vsel %vm399, %v880, -inf
  %v1004 = vsel %vm399, %v881, -inf
  %v1005 = vmax.f32 %v1003, %v1004
  %v1006 = vsel %vm399, %v882, -inf
  %v1007 = vsel %vm399, %v883, -inf
  %v1008 = vmax.f32 %v1006, %v1007
  %v1009 = vsel %vm399, %v884, -inf
  %v1010 = vsel %vm399, %v885, -inf
  %v1011 = vmax.f32 %v1009, %v1010
  %v1012 = vsel %vm399, %v886, -inf
  %v1013 = vsel %vm399, %v887, -inf
  %v1014 = vmax.f32 %v1012, %v1013
  %v1015 = vsel %vm399, %v888, -inf
  %v1016 = vsel %vm399, %v889, -inf
  %v1017 = vmax.f32 %v1015, %v1016
  %v1018 = vsel %vm399, %v890, -inf
  %v1019 = vsel %vm399, %v891, -inf
  %v1020 = vmax.f32 %v1018, %v1019
  %v1021 = vsel %vm399, %v892, -inf
  %v1022 = vsel %vm399, %v893, -inf
  %v1023 = vmax.f32 %v1021, %v1022
  %v1024 = vsel %vm399, %v895, -inf
  %v1025 = vsel %vm399, %v896, -inf
  %v1026 = vmax.f32 %v1024, %v1025
  %v1027 = vsel %vm399, %v897, -inf
  %v1028 = vsel %vm399, %v898, -inf
  %v1029 = vmax.f32 %v1027, %v1028
  %v1030 = vsel %vm399, %v899, -inf
  %v1031 = vsel %vm399, %v900, -inf
  %v1032 = vmax.f32 %v1030, %v1031
  %v1033 = vsel %vm399, %v901, -inf
  %v1034 = vsel %vm399, %v902, -inf
  %v1035 = vmax.f32 %v1033, %v1034
  %v1036 = vsel %vm399, %v903, -inf
  %v1037 = vsel %vm399, %v904, -inf
  %v1038 = vmax.f32 %v1036, %v1037
  %v1039 = vsel %vm399, %v905, -inf
  %v1040 = vsel %vm399, %v906, -inf
  %v1041 = vmax.f32 %v1039, %v1040
  %v1042 = vsel %vm399, %v907, -inf
  %v1043 = vsel %vm399, %v908, -inf
  %v1044 = vmax.f32 %v1042, %v1043
  %v1045 = vsel %vm399, %v910, -inf
  %v1046 = vsel %vm399, %v911, -inf
  %v1047 = vmax.f32 %v1045, %v1046
  %v1048 = vsel %vm399, %v912, -inf
  %v1049 = vsel %vm399, %v913, -inf
  %v1050 = vmax.f32 %v1048, %v1049
  %v1051 = vsel %vm399, %v914, -inf
  %v1052 = vsel %vm399, %v915, -inf
  %v1053 = vmax.f32 %v1051, %v1052
  %v1054 = vsel %vm399, %v916, -inf
  %v1055 = vsel %vm399, %v917, -inf
  %v1056 = vmax.f32 %v1054, %v1055
  %v1057 = vsel %vm399, %v918, -inf
  %v1058 = vsel %vm399, %v919, -inf
  %v1059 = vmax.f32 %v1057, %v1058
  %v1060 = vsel %vm399, %v920, -inf
  %v1061 = vsel %vm399, %v921, -inf
  %v1062 = vmax.f32 %v1060, %v1061
  %v1063 = vsel %vm399, %v922, -inf
  %v1064 = vsel %vm399, %v923, -inf
  %v1065 = vmax.f32 %v1063, %v1064
  %v1066 = vsel %vm399, %v925, -inf
  %v1067 = vsel %vm399, %v926, -inf
  %v1068 = vmax.f32 %v1066, %v1067
  %v1069 = vsel %vm399, %v927, -inf
  %v1070 = vsel %vm399, %v928, -inf
  %v1071 = vmax.f32 %v1069, %v1070
  %v1072 = vsel %vm399, %v929, -inf
  %v1073 = vsel %vm399, %v930, -inf
  %v1074 = vmax.f32 %v1072, %v1073
  %v1075 = vsel %vm399, %v931, -inf
  %v1076 = vsel %vm399, %v932, -inf
  %v1077 = vmax.f32 %v1075, %v1076
  %v1078 = vsel %vm399, %v933, -inf
  %v1079 = vsel %vm399, %v934, -inf
  %v1080 = vmax.f32 %v1078, %v1079
  %v1081 = vsel %vm399, %v935, -inf
  %v1082 = vsel %vm399, %v936, -inf
  %v1083 = vmax.f32 %v1081, %v1082
  %v1084 = vsel %vm399, %v937, -inf
  %v1085 = vsel %vm399, %v938, -inf
  %v1086 = vmax.f32 %v1084, %v1085
  %v1087 = vmax.f32 %v941, %v943
  %v1088 = vmax.f32 %v944, %v946
  %v1089 = vmax.f32 %v947, %v949
  %v1090 = vmax.f32 %v950, %v952
  %v1091 = vmax.f32 %v953, %v955
  %v1092 = vmax.f32 %v956, %v958
  %v1093 = vsel %vm399, %v849, -inf
  %v1094 = vmax.f32 %v959, %v1093
  %v1095 = vmax.f32 %v962, %v964
  %v1096 = vmax.f32 %v965, %v967
  %v1097 = vmax.f32 %v968, %v970
  %v1098 = vmax.f32 %v971, %v973
  %v1099 = vmax.f32 %v974, %v976
  %v1100 = vmax.f32 %v977, %v979
  %v1101 = vsel %vm399, %v864, -inf
  %v1102 = vmax.f32 %v980, %v1101
  %v1103 = vmax.f32 %v983, %v985
  %v1104 = vmax.f32 %v986, %v988
  %v1105 = vmax.f32 %v989, %v991
  %v1106 = vmax.f32 %v992, %v994
  %v1107 = vmax.f32 %v995, %v997
  %v1108 = vmax.f32 %v998, %v1000
  %v1109 = vsel %vm399, %v879, -inf
  %v1110 = vmax.f32 %v1001, %v1109
  %v1111 = vmax.f32 %v1004, %v1006
  %v1112 = vmax.f32 %v1007, %v1009
  %v1113 = vmax.f32 %v1010, %v1012
  %v1114 = vmax.f32 %v1013, %v1015
  %v1115 = vmax.f32 %v1016, %v1018
  %v1116 = vmax.f32 %v1019, %v1021
  %v1117 = vsel %vm399, %v894, -inf
  %v1118 = vmax.f32 %v1022, %v1117
  %v1119 = vmax.f32 %v1025, %v1027
  %v1120 = vmax.f32 %v1028, %v1030
  %v1121 = vmax.f32 %v1031, %v1033
  %v1122 = vmax.f32 %v1034, %v1036
  %v1123 = vmax.f32 %v1037, %v1039
  %v1124 = vmax.f32 %v1040, %v1042
  %v1125 = vsel %vm399, %v909, -inf
  %v1126 = vmax.f32 %v1043, %v1125
  %v1127 = vmax.f32 %v1046, %v1048
  %v1128 = vmax.f32 %v1049, %v1051
  %v1129 = vmax.f32 %v1052, %v1054
  %v1130 = vmax.f32 %v1055, %v1057
  %v1131 = vmax.f32 %v1058, %v1060
  %v1132 = vmax.f32 %v1061, %v1063
  %v1133 = vsel %vm399, %v924, -inf
  %v1134 = vmax.f32 %v1064, %v1133
  %v1135 = vmax.f32 %v1067, %v1069
  %v1136 = vmax.f32 %v1070, %v1072
  %v1137 = vmax.f32 %v1073, %v1075
  %v1138 = vmax.f32 %v1076, %v1078
  %v1139 = vmax.f32 %v1079, %v1081
  %v1140 = vmax.f32 %v1082, %v1084
  %v1141 = vsel %vm399, %v939, -inf
  %v1142 = vmax.f32 %v1085, %v1141
  %v1143 = vmax.f32 %v942, %v1087
  %v1144 = vmax.f32 %v945, %v1088
  %v1145 = vmax.f32 %v948, %v1089
  %v1146 = vmax.f32 %v951, %v1090
  %v1147 = vmax.f32 %v954, %v1091
  %v1148 = vmax.f32 %v957, %v1092
  %v1149 = vmax.f32 %v960, %v1094
  %v1150 = vmax.f32 %v963, %v1095
  %v1151 = vmax.f32 %v966, %v1096
  %v1152 = vmax.f32 %v969, %v1097
  %v1153 = vmax.f32 %v972, %v1098
  %v1154 = vmax.f32 %v975, %v1099
  %v1155 = vmax.f32 %v978, %v1100
  %v1156 = vmax.f32 %v981, %v1102
  %v1157 = vmax.f32 %v984, %v1103
  %v1158 = vmax.f32 %v987, %v1104
  %v1159 = vmax.f32 %v990, %v1105
  %v1160 = vmax.f32 %v993, %v1106
  %v1161 = vmax.f32 %v996, %v1107
  %v1162 = vmax.f32 %v999, %v1108
  %v1163 = vmax.f32 %v1002, %v1110
  %v1164 = vmax.f32 %v1005, %v1111
  %v1165 = vmax.f32 %v1008, %v1112
  %v1166 = vmax.f32 %v1011, %v1113
  %v1167 = vmax.f32 %v1014, %v1114
  %v1168 = vmax.f32 %v1017, %v1115
  %v1169 = vmax.f32 %v1020, %v1116
  %v1170 = vmax.f32 %v1023, %v1118
  %v1171 = vmax.f32 %v1026, %v1119
  %v1172 = vmax.f32 %v1029, %v1120
  %v1173 = vmax.f32 %v1032, %v1121
  %v1174 = vmax.f32 %v1035, %v1122
  %v1175 = vmax.f32 %v1038, %v1123
  %v1176 = vmax.f32 %v1041, %v1124
  %v1177 = vmax.f32 %v1044, %v1126
  %v1178 = vmax.f32 %v1047, %v1127
  %v1179 = vmax.f32 %v1050, %v1128
  %v1180 = vmax.f32 %v1053, %v1129
  %v1181 = vmax.f32 %v1056, %v1130
  %v1182 = vmax.f32 %v1059, %v1131
  %v1183 = vmax.f32 %v1062, %v1132
  %v1184 = vmax.f32 %v1065, %v1134
  %v1185 = vmax.f32 %v1068, %v1135
  %v1186 = vmax.f32 %v1071, %v1136
  %v1187 = vmax.f32 %v1074, %v1137
  %v1188 = vmax.f32 %v1077, %v1138
  %v1189 = vmax.f32 %v1080, %v1139
  %v1190 = vmax.f32 %v1083, %v1140
  %v1191 = vmax.f32 %v1086, %v1142
  %1192 = vst [vmem:[%s1] sm:$0x3] %v1143
  %1193 = vst [vmem:[%s1 + $0x2] sm:$0x3] %v1144
  %1194 = vst [vmem:[%s1 + $0x4] sm:$0x3] %v1145
  %1195 = vst [vmem:[%s1 + $0x6] sm:$0x3] %v1146
  %1196 = vst [vmem:[%s1 + $0x8] sm:$0x3] %v1147
  %1197 = vst [vmem:[%s1 + $0xa] sm:$0x3] %v1148
  %1198 = vst [vmem:[%s1 + $0xc] sm:$0x3] %v1149
  %1199 = vst [vmem:[%s1 + $0xe] sm:$0x3] %v1150
  %1200 = vst [vmem:[%s1 + $0x10] sm:$0x3] %v1151
  %1201 = vst [vmem:[%s1 + $0x12] sm:$0x3] %v1152
  %1202 = vst [vmem:[%s1 + $0x14] sm:$0x3] %v1153
  %1203 = vst [vmem:[%s1 + $0x16] sm:$0x3] %v1154
  %1204 = vst [vmem:[%s1 + $0x18] sm:$0x3] %v1155
  %1205 = vst [vmem:[%s1 + $0x1a] sm:$0x3] %v1156
  %1206 = vst [vmem:[%s1 + $0x1c] sm:$0x3] %v1157
  %1207 = vst [vmem:[%s1 + $0x1e] sm:$0x3] %v1158
  %1208 = vst [vmem:[%s1 + $0x20] sm:$0x3] %v1159
  %1209 = vst [vmem:[%s1 + $0x22] sm:$0x3] %v1160
  %1210 = vst [vmem:[%s1 + $0x24] sm:$0x3] %v1161
  %1211 = vst [vmem:[%s1 + $0x26] sm:$0x3] %v1162
  %1212 = vst [vmem:[%s1 + $0x28] sm:$0x3] %v1163
  %1213 = vst [vmem:[%s1 + $0x2a] sm:$0x3] %v1164
  %1214 = vst [vmem:[%s1 + $0x2c] sm:$0x3] %v1165
  %1215 = vst [vmem:[%s1 + $0x2e] sm:$0x3] %v1166
  %1216 = vst [vmem:[%s1 + $0x30] sm:$0x3] %v1167
  %1217 = vst [vmem:[%s1 + $0x32] sm:$0x3] %v1168
  %1218 = vst [vmem:[%s1 + $0x34] sm:$0x3] %v1169
  %1219 = vst [vmem:[%s1 + $0x36] sm:$0x3] %v1170
  %1220 = vst [vmem:[%s1 + $0x38] sm:$0x3] %v1171
  %1221 = vst [vmem:[%s1 + $0x3a] sm:$0x3] %v1172
  %1222 = vst [vmem:[%s1 + $0x3c] sm:$0x3] %v1173
  %1223 = vst [vmem:[%s1 + $0x3e] sm:$0x3] %v1174
  %1224 = vst [vmem:[%s1 + $0x40] sm:$0x3] %v1175
  %1225 = vst [vmem:[%s1 + $0x42] sm:$0x3] %v1176
  %1226 = vst [vmem:[%s1 + $0x44] sm:$0x3] %v1177
  %1227 = vst [vmem:[%s1 + $0x46] sm:$0x3] %v1178
  %1228 = vst [vmem:[%s1 + $0x48] sm:$0x3] %v1179
  %1229 = vst [vmem:[%s1 + $0x4a] sm:$0x3] %v1180
  %1230 = vst [vmem:[%s1 + $0x4c] sm:$0x3] %v1181
  %1231 = vst [vmem:[%s1 + $0x4e] sm:$0x3] %v1182
  %1232 = vst [vmem:[%s1 + $0x50] sm:$0x3] %v1183
  %1233 = vst [vmem:[%s1 + $0x52] sm:$0x3] %v1184
  %1234 = vst [vmem:[%s1 + $0x54] sm:$0x3] %v1185
  %1235 = vst [vmem:[%s1 + $0x56] sm:$0x3] %v1186
  %1236 = vst [vmem:[%s1 + $0x58] sm:$0x3] %v1187
  %1237 = vst [vmem:[%s1 + $0x5a] sm:$0x3] %v1188
  %1238 = vst [vmem:[%s1 + $0x5c] sm:$0x3] %v1189
  %1239 = vst [vmem:[%s1 + $0x5e] sm:$0x3] %v1190
  %1240 = vst [vmem:[%s1 + $0x60] sm:$0x3] %v1191
  // Predicated region
  $region37: #{crnm_forward.3} parent=0 // pred_check
    _
  $region38: #{crnm_forward.3} parent=0 // pred_check_branch
    %1242 = sbr.rel (0) target = $region40
  $region39: #{crnm_forward.3} parent=0 // pred_region
    _
  $region40: #{crnm_forward.3} parent=0 // pred_fallthru
    _
  // Predicated region
  $region41: #{crnm_forward.3} parent=0 // pred_check
    _
  $region42: #{crnm_forward.3} parent=0 // pred_check_branch
    %1244 = sbr.rel (0) target = $region44
  $region43: #{crnm_forward.3} parent=0 // pred_region
    _
  $region44: #{crnm_forward.3} parent=0 // pred_fallthru
    _

</llo_original>
